<compile_context>
chip_gen: v7x
topology: tpu7x:2x2x1
jax: 0.10.0
libtpu: 0.0.40
codegen_flags: <defaults>
</compile_context>

<pallas_src>
import jax
import jax.numpy as jnp
from jax.experimental import pallas as pl
from jax.experimental.pallas import tpu as pltpu

Z_DIM = 20
IN_DIM = 784
HID = 512

# Lane-dense padded dims (multiples of 128).
IN_PAD = 896            # 7 * 128  (784 -> 896)
Z_PAD = 128             # 20 -> 128
HEAD_PAD = 2 * Z_PAD    # fused mean||logvar head: mean in [:,:128], logvar in [:,128:]

try:
    _DEVICE_KIND = jax.devices()[0].device_kind.lower()
except Exception:  # pragma: no cover - be robust if backend query fails
    _DEVICE_KIND = ""


def _round_up(x, m):
    return (x + m - 1) // m * m


def _cdiv(a, b):
    return -(-a // b)


def _batch_tile(batch):
    """Pick the batch tile per chip (see header notes)."""
    is_v5e = ("v5 lite" in _DEVICE_KIND) or ("v5e" in _DEVICE_KIND) \
        or ("v5litepod" in _DEVICE_KIND)
    cap = 128 if is_v5e else 256          # v6e/v7x: fill the 256-row MXU
    n_tc = 2 if "v7" in _DEVICE_KIND else 1  # v7x: 2 TensorCores per chip
    steps = max(n_tc, _cdiv(batch, cap))  # >=2 steps on v7x when B allows
    tb = min(cap, max(8, _round_up(_cdiv(batch, steps), 8)))
    return tb


def _softplus(x):
    # numerically stable softplus in f32: max(x,0) + log(1 + exp(-|x|))
    return jnp.maximum(x, 0.0) + jnp.log(1.0 + jnp.exp(-jnp.abs(x)))


def vae_kernel(x_ref, eps_ref,
               w1_ref, s1_ref, b1_ref,
               w2_ref, s2_ref, b2_ref,
               wms_ref, sms_ref, bms_ref,
               wd1_ref, sd1_ref, bd1_ref,
               wd2_ref, sd2_ref, bd2_ref,
               wd3_ref, sd3_ref, bd3_ref,
               recon_ref, mean_ref, logvar_ref):
    bf16 = jnp.bfloat16
    f32 = jnp.float32

    def qdot(a, wq_ref, s_ref, b_ref):
        # int8 weights -> bf16 (exact: |q| <= 127), bf16 MXU, f32 accumulation.
        # Per-output-channel scale applied to the accumulator, not the weights.
        w = wq_ref[...].astype(f32).astype(bf16)
        acc = jnp.dot(a.astype(bf16), w, preferred_element_type=f32)
        return acc * s_ref[...] + b_ref[...]

    x = x_ref[...]

    # ---- encoder ----
    h = _softplus(qdot(x, w1_ref, s1_ref, b1_ref))
    h = _softplus(qdot(h, w2_ref, s2_ref, b2_ref))

    # ---- fused mean / logvar head (single N=256 MXU pass) ----
    head = qdot(h, wms_ref, sms_ref, bms_ref)
    mean_p = head[:, :Z_PAD]       # clean 128-lane split
    logvar_p = head[:, Z_PAD:]

    # ---- reparameterization: z = mean + eps * exp(0.5 * logvar) ----
    # Padded lanes: mean = logvar = eps = 0  ->  z = 0, contributes nothing below.
    z = mean_p + eps_ref[...] * jnp.exp(0.5 * logvar_p)

    # ---- decoder ----
    d = _softplus(qdot(z, wd1_ref, sd1_ref, bd1_ref))
    d = _softplus(qdot(d, wd2_ref, sd2_ref, bd2_ref))
    logits = qdot(d, wd3_ref, sd3_ref, bd3_ref)

    # sigmoid(x) = 0.5*tanh(0.5*x) + 0.5 : one EUP op, exact.
    # (Padded recon columns therefore hold 0.5; the wrapper slices them off.)
    recon_ref[...] = 0.5 * jnp.tanh(0.5 * logits) + 0.5
    mean_ref[...] = mean_p
    logvar_ref[...] = logvar_p


def init_linear(key, fan_in, fan_out):
    """PyTorch nn.Linear default init: U(-1/sqrt(fan_in), 1/sqrt(fan_in)).

    Returns W as [in, out] (transposed vs. PyTorch storage) and b as [1, out].
    """
    kw, kb = jax.random.split(key)
    bound = 1.0 / jnp.sqrt(jnp.float32(fan_in))
    w = jax.random.uniform(kw, (fan_in, fan_out), jnp.float32, -bound, bound)
    b = jax.random.uniform(kb, (1, fan_out), jnp.float32, -bound, bound)
    return w, b


def init_vae_params(key):
    """Raw f32 parameters, PyTorch-equivalent layout (W as [in, out])."""
    keys = jax.random.split(key, 7)
    w1, b1 = init_linear(keys[0], IN_DIM, HID)      # encoder[0]
    w2, b2 = init_linear(keys[1], HID, HID)         # encoder[2]
    wm, bm = init_linear(keys[2], HID, Z_DIM)       # encoder_mean
    ws, bs = init_linear(keys[3], HID, Z_DIM)       # encoder_std (logvar head)
    wd1, bd1 = init_linear(keys[4], Z_DIM, HID)     # decoder[0]
    wd2, bd2 = init_linear(keys[5], HID, HID)       # decoder[2]
    wd3, bd3 = init_linear(keys[6], HID, IN_DIM)    # decoder[4]
    return (w1, b1, w2, b2, wm, bm, ws, bs, wd1, bd1, wd2, bd2, wd3, bd3)


def _quantize_cols(w):
    """Symmetric per-output-channel int8 quantization of an [in, out] f32 weight."""
    amax = jnp.max(jnp.abs(w), axis=0, keepdims=True)            # [1, out]
    scale = jnp.where(amax > 0, amax / 127.0, 1.0)               # [1, out]
    q = jnp.clip(jnp.round(w / scale), -127, 127).astype(jnp.int8)
    return q, scale


def pack_params(raw):
    """Pad to lane-dense shapes, fuse mean/logvar heads, quantize weights to int8.

    Returns (q, scale, bias) triples per layer, in kernel argument order.
    Biases / scales stay f32 (tiny; elementwise math stays in f32).
    """
    (w1, b1, w2, b2, wm, bm, ws, bs, wd1, bd1, wd2, bd2, wd3, bd3) = raw

    w1_p = jnp.zeros((IN_PAD, HID), jnp.float32).at[:IN_DIM, :].set(w1)
    wms_p = (jnp.zeros((HID, HEAD_PAD), jnp.float32)
             .at[:, :Z_DIM].set(wm)
             .at[:, Z_PAD:Z_PAD + Z_DIM].set(ws))
    bms_p = (jnp.zeros((1, HEAD_PAD), jnp.float32)
             .at[:, :Z_DIM].set(bm)
             .at[:, Z_PAD:Z_PAD + Z_DIM].set(bs))
    wd1_p = jnp.zeros((Z_PAD, HID), jnp.float32).at[:Z_DIM, :].set(wd1)
    wd3_p = jnp.zeros((HID, IN_PAD), jnp.float32).at[:, :IN_DIM].set(wd3)
    bd3_p = jnp.zeros((1, IN_PAD), jnp.float32).at[:, :IN_DIM].set(bd3)

    q1, s1 = _quantize_cols(w1_p)
    q2, s2 = _quantize_cols(w2)
    qms, sms = _quantize_cols(wms_p)
    qd1, sd1 = _quantize_cols(wd1_p)
    qd2, sd2 = _quantize_cols(wd2)
    qd3, sd3 = _quantize_cols(wd3_p)

    return (q1, s1, b1, q2, s2, b2, qms, sms, bms_p,
            qd1, sd1, bd1, qd2, sd2, bd2, qd3, sd3, bd3_p)


@jax.jit
def vae_forward(x, eps, packed):
    B = x.shape[0]
    tb = _batch_tile(B)
    bp = _round_up(B, tb)

    # Zero-pad batch + feature dims to lane/sublane-dense shapes.
    x_p = jnp.zeros((bp, IN_PAD), jnp.float32).at[:B, :IN_DIM].set(x)
    eps_p = jnp.zeros((bp, Z_PAD), jnp.float32).at[:B, :Z_DIM].set(eps)

    def full(shape):
        # Weights/scales/biases: same block every grid step -> only fetched once;
        # single-buffered so the (dead) second pipeline buffer isn't allocated.
        return pl.BlockSpec(shape, lambda i: (0, 0), pipeline_mode=pl.Buffered(1))

    def batch(ncols):         # batch-tiled arrays (default double-buffering)
        return pl.BlockSpec((tb, ncols), lambda i: (i, 0))

    in_specs = [
        batch(IN_PAD),                                             # x
        batch(Z_PAD),                                              # eps
        full((IN_PAD, HID)), full((1, HID)), full((1, HID)),       # q1, s1, b1
        full((HID, HID)), full((1, HID)), full((1, HID)),          # q2, s2, b2
        full((HID, HEAD_PAD)), full((1, HEAD_PAD)), full((1, HEAD_PAD)),  # head
        full((Z_PAD, HID)), full((1, HID)), full((1, HID)),        # qd1, sd1, bd1
        full((HID, HID)), full((1, HID)), full((1, HID)),          # qd2, sd2, bd2
        full((HID, IN_PAD)), full((1, IN_PAD)), full((1, IN_PAD)),  # qd3, sd3, bd3
    ]
    out_specs = [batch(IN_PAD), batch(Z_PAD), batch(Z_PAD)]
    out_shapes = (
        jax.ShapeDtypeStruct((bp, IN_PAD), jnp.float32),   # reconstruction (padded)
        jax.ShapeDtypeStruct((bp, Z_PAD), jnp.float32),    # mean (padded)
        jax.ShapeDtypeStruct((bp, Z_PAD), jnp.float32),    # logvar (padded)
    )

    recon_p, mean_p, logvar_p = pl.pallas_call(
        vae_kernel,
        out_shape=out_shapes,
        grid_spec=pltpu.PrefetchScalarGridSpec(
            num_scalar_prefetch=0,
            grid=(bp // tb,),
            in_specs=in_specs,
            out_specs=out_specs,
        ),
        compiler_params=pltpu.CompilerParams(
            dimension_semantics=("parallel",),   # shard batch tiles across TCs (v7x)
            vmem_limit_bytes=32 << 20,           # fits v7x's 64 MiB physical VMEM
        ),
    )(x_p, eps_p, *packed)

    # Strip padding outside the kernel.
    return (recon_p[:B, :IN_DIM], mean_p[:B, :Z_DIM], logvar_p[:B, :Z_DIM])


def vae_reference(x, eps, packed):
    """Pure-JAX reference with the same int8-weight / bf16-activation rounding."""
    (q1, s1, b1, q2, s2, b2, qms, sms, bms,
     qd1, sd1, bd1, qd2, sd2, bd2, qd3, sd3, bd3) = packed
    f32 = jnp.float32
    bf16 = jnp.bfloat16
    B = x.shape[0]

    x_p = jnp.zeros((B, IN_PAD), f32).at[:, :IN_DIM].set(x)
    eps_p = jnp.zeros((B, Z_PAD), f32).at[:, :Z_DIM].set(eps)

    def qdot(a, q, s, b):
        return jnp.dot(a.astype(bf16).astype(f32), q.astype(f32),
                       precision=jax.lax.Precision.HIGHEST) * s + b

    sp = jax.nn.softplus
    h = sp(qdot(x_p, q1, s1, b1))
    h = sp(qdot(h, q2, s2, b2))
    head = qdot(h, qms, sms, bms)
    mean = head[:, :Z_PAD]
    logvar = head[:, Z_PAD:]
    z = mean + eps_p * jnp.exp(0.5 * logvar)
    d = sp(qdot(z, qd1, sd1, bd1))
    d = sp(qdot(d, qd2, sd2, bd2))
    logits = qdot(d, qd3, sd3, bd3)
    recon = 0.5 * jnp.tanh(0.5 * logits) + 0.5
    return recon[:, :IN_DIM], mean[:, :Z_DIM], logvar[:, :Z_DIM]


if __name__ == "__main__":
    key = jax.random.PRNGKey(0)
    k_params, k_x, k_eps = jax.random.split(key, 3)

    B = 8
    raw_params = init_vae_params(k_params)
    packed_params = pack_params(raw_params)
    x = jax.random.uniform(k_x, (B, IN_DIM), jnp.float32)     # MNIST-like input in [0,1)
    # TODO(synk): torch.randn(...) inside forward() is host RNG; eps is passed in instead.
    eps = jax.random.normal(k_eps, (B, Z_DIM), jnp.float32)   # ~ torch.randn(B, Z_DIM)

    recon, mean, logvar = vae_forward(x, eps, packed_params)
    jax.block_until_ready((recon, mean, logvar))

    assert recon.shape == (B, IN_DIM)
    assert mean.shape == (B, Z_DIM)
    assert logvar.shape == (B, Z_DIM)
    assert bool(jnp.all(jnp.isfinite(recon)))
    assert bool(jnp.all(jnp.isfinite(mean)))
    assert bool(jnp.all(jnp.isfinite(logvar)))

    # Correctness vs. a pure-JAX reference using the same int8/bf16 rounding.
    recon_r, mean_r, logvar_r = vae_reference(x, eps, packed_params)
    assert bool(jnp.allclose(recon, recon_r, atol=2e-2, rtol=2e-2)), \
        float(jnp.max(jnp.abs(recon - recon_r)))
    assert bool(jnp.allclose(mean, mean_r, atol=2e-2, rtol=2e-2)), \
        float(jnp.max(jnp.abs(mean - mean_r)))
    assert bool(jnp.allclose(logvar, logvar_r, atol=2e-2, rtol=2e-2)), \
        float(jnp.max(jnp.abs(logvar - logvar_r)))

    print("KERNEL_OK")
</pallas_src>

<mosaic_0001>
module attributes {stable_mosaic.version = 11 : i64} {
  func.func @vae_kernel(%arg0: i32, %arg1: memref<8x896xf32, #tpu.memory_space<vmem>>, %arg2: memref<8x128xf32, #tpu.memory_space<vmem>>, %arg3: memref<896x512xi8, #tpu.memory_space<vmem>>, %arg4: memref<1x512xf32, #tpu.memory_space<vmem>>, %arg5: memref<1x512xf32, #tpu.memory_space<vmem>>, %arg6: memref<512x512xi8, #tpu.memory_space<vmem>>, %arg7: memref<1x512xf32, #tpu.memory_space<vmem>>, %arg8: memref<1x512xf32, #tpu.memory_space<vmem>>, %arg9: memref<512x256xi8, #tpu.memory_space<vmem>>, %arg10: memref<1x256xf32, #tpu.memory_space<vmem>>, %arg11: memref<1x256xf32, #tpu.memory_space<vmem>>, %arg12: memref<128x512xi8, #tpu.memory_space<vmem>>, %arg13: memref<1x512xf32, #tpu.memory_space<vmem>>, %arg14: memref<1x512xf32, #tpu.memory_space<vmem>>, %arg15: memref<512x512xi8, #tpu.memory_space<vmem>>, %arg16: memref<1x512xf32, #tpu.memory_space<vmem>>, %arg17: memref<1x512xf32, #tpu.memory_space<vmem>>, %arg18: memref<512x896xi8, #tpu.memory_space<vmem>>, %arg19: memref<1x896xf32, #tpu.memory_space<vmem>>, %arg20: memref<1x896xf32, #tpu.memory_space<vmem>>, %arg21: memref<8x896xf32, #tpu.memory_space<vmem>>, %arg22: memref<8x128xf32, #tpu.memory_space<vmem>>, %arg23: memref<8x128xf32, #tpu.memory_space<vmem>>) attributes {dimension_semantics = [#tpu.dimension_semantics<parallel>], iteration_bounds = array<i64: 1>, scalar_prefetch = 0 : i64, scratch_operands = 0 : i64, tpu.core_type = #tpu.core_type<tc>, window_params = [{transform_indices = @transform_0, window_bounds = array<i64: 8, 896>}, {transform_indices = @transform_1, window_bounds = array<i64: 8, 128>}, {pipeline_mode = #tpu.pipeline_mode<synchronous>, transform_indices = @transform_2, window_bounds = array<i64: 896, 512>}, {pipeline_mode = #tpu.pipeline_mode<synchronous>, transform_indices = @transform_3, window_bounds = array<i64: 1, 512>}, {pipeline_mode = #tpu.pipeline_mode<synchronous>, transform_indices = @transform_4, window_bounds = array<i64: 1, 512>}, {pipeline_mode = #tpu.pipeline_mode<synchronous>, transform_indices = @transform_5, window_bounds = array<i64: 512, 512>}, {pipeline_mode = #tpu.pipeline_mode<synchronous>, transform_indices = @transform_6, window_bounds = array<i64: 1, 512>}, {pipeline_mode = #tpu.pipeline_mode<synchronous>, transform_indices = @transform_7, window_bounds = array<i64: 1, 512>}, {pipeline_mode = #tpu.pipeline_mode<synchronous>, transform_indices = @transform_8, window_bounds = array<i64: 512, 256>}, {pipeline_mode = #tpu.pipeline_mode<synchronous>, transform_indices = @transform_9, window_bounds = array<i64: 1, 256>}, {pipeline_mode = #tpu.pipeline_mode<synchronous>, transform_indices = @transform_10, window_bounds = array<i64: 1, 256>}, {pipeline_mode = #tpu.pipeline_mode<synchronous>, transform_indices = @transform_11, window_bounds = array<i64: 128, 512>}, {pipeline_mode = #tpu.pipeline_mode<synchronous>, transform_indices = @transform_12, window_bounds = array<i64: 1, 512>}, {pipeline_mode = #tpu.pipeline_mode<synchronous>, transform_indices = @transform_13, window_bounds = array<i64: 1, 512>}, {pipeline_mode = #tpu.pipeline_mode<synchronous>, transform_indices = @transform_14, window_bounds = array<i64: 512, 512>}, {pipeline_mode = #tpu.pipeline_mode<synchronous>, transform_indices = @transform_15, window_bounds = array<i64: 1, 512>}, {pipeline_mode = #tpu.pipeline_mode<synchronous>, transform_indices = @transform_16, window_bounds = array<i64: 1, 512>}, {pipeline_mode = #tpu.pipeline_mode<synchronous>, transform_indices = @transform_17, window_bounds = array<i64: 512, 896>}, {pipeline_mode = #tpu.pipeline_mode<synchronous>, transform_indices = @transform_18, window_bounds = array<i64: 1, 896>}, {pipeline_mode = #tpu.pipeline_mode<synchronous>, transform_indices = @transform_19, window_bounds = array<i64: 1, 896>}, {transform_indices = @transform_20, window_bounds = array<i64: 8, 896>}, {transform_indices = @transform_21, window_bounds = array<i64: 8, 128>}, {transform_indices = @transform_22, window_bounds = array<i64: 8, 128>}]} {
    %c0 = arith.constant 0 : index
    %c0_0 = arith.constant 0 : index
    %0 = vector.load %arg1[%c0, %c0_0] : memref<8x896xf32, #tpu.memory_space<vmem>>, vector<8x896xf32>
    %c0_1 = arith.constant 0 : index
    %c0_2 = arith.constant 0 : index
    %1 = vector.load %arg3[%c0_1, %c0_2] : memref<896x512xi8, #tpu.memory_space<vmem>>, vector<896x512xi8>
    %2 = arith.sitofp %1 : vector<896x512xi8> to vector<896x512xf32>
    %3 = arith.truncf %2 : vector<896x512xf32> to vector<896x512xbf16>
    %4 = arith.truncf %0 : vector<8x896xf32> to vector<8x896xbf16>
    %cst = arith.constant dense<0.000000e+00> : vector<8x512xf32>
    %5 = tpu.matmul %4, %3, %cst {dimension_numbers = #tpu.dot_dimension_numbers<[1], [0], [0], [1], [0, 0, 1, 1], [], []>} : vector<8x896xbf16>, vector<896x512xbf16>, vector<8x512xf32> -> vector<8x512xf32>
    %c0_3 = arith.constant 0 : index
    %c0_4 = arith.constant 0 : index
    %6 = vector.load %arg4[%c0_3, %c0_4] : memref<1x512xf32, #tpu.memory_space<vmem>>, vector<1x512xf32>
    %7 = vector.broadcast %6 : vector<1x512xf32> to vector<8x512xf32>
    %8 = arith.mulf %5, %7 : vector<8x512xf32>
    %c0_5 = arith.constant 0 : index
    %c0_6 = arith.constant 0 : index
    %9 = vector.load %arg5[%c0_5, %c0_6] : memref<1x512xf32, #tpu.memory_space<vmem>>, vector<1x512xf32>
    %10 = vector.broadcast %9 : vector<1x512xf32> to vector<8x512xf32>
    %11 = arith.addf %8, %10 : vector<8x512xf32>
    %cst_7 = arith.constant 0.000000e+00 : f32
    %12 = vector.broadcast %cst_7 : f32 to vector<8x512xf32>
    %13 = arith.maximumf %11, %12 : vector<8x512xf32>
    %14 = math.absf %11 : vector<8x512xf32>
    %cst_8 = arith.constant 0.000000e+00 : f32
    %15 = vector.broadcast %cst_8 : f32 to vector<8x512xf32>
    %16 = arith.subf %15, %14 : vector<8x512xf32>
    %17 = math.exp %16 : vector<8x512xf32>
    %cst_9 = arith.constant 1.000000e+00 : f32
    %18 = vector.broadcast %cst_9 : f32 to vector<8x512xf32>
    %19 = arith.addf %18, %17 : vector<8x512xf32>
    %20 = math.log %19 : vector<8x512xf32>
    %21 = arith.addf %13, %20 : vector<8x512xf32>
    %c0_10 = arith.constant 0 : index
    %c0_11 = arith.constant 0 : index
    %22 = vector.load %arg6[%c0_10, %c0_11] : memref<512x512xi8, #tpu.memory_space<vmem>>, vector<512x512xi8>
    %23 = arith.sitofp %22 : vector<512x512xi8> to vector<512x512xf32>
    %24 = arith.truncf %23 : vector<512x512xf32> to vector<512x512xbf16>
    %25 = arith.truncf %21 : vector<8x512xf32> to vector<8x512xbf16>
    %cst_12 = arith.constant dense<0.000000e+00> : vector<8x512xf32>
    %26 = tpu.matmul %25, %24, %cst_12 {dimension_numbers = #tpu.dot_dimension_numbers<[1], [0], [0], [1], [0, 0, 1, 1], [], []>} : vector<8x512xbf16>, vector<512x512xbf16>, vector<8x512xf32> -> vector<8x512xf32>
    %c0_13 = arith.constant 0 : index
    %c0_14 = arith.constant 0 : index
    %27 = vector.load %arg7[%c0_13, %c0_14] : memref<1x512xf32, #tpu.memory_space<vmem>>, vector<1x512xf32>
    %28 = vector.broadcast %27 : vector<1x512xf32> to vector<8x512xf32>
    %29 = arith.mulf %26, %28 : vector<8x512xf32>
    %c0_15 = arith.constant 0 : index
    %c0_16 = arith.constant 0 : index
    %30 = vector.load %arg8[%c0_15, %c0_16] : memref<1x512xf32, #tpu.memory_space<vmem>>, vector<1x512xf32>
    %31 = vector.broadcast %30 : vector<1x512xf32> to vector<8x512xf32>
    %32 = arith.addf %29, %31 : vector<8x512xf32>
    %cst_17 = arith.constant 0.000000e+00 : f32
    %33 = vector.broadcast %cst_17 : f32 to vector<8x512xf32>
    %34 = arith.maximumf %32, %33 : vector<8x512xf32>
    %35 = math.absf %32 : vector<8x512xf32>
    %cst_18 = arith.constant 0.000000e+00 : f32
    %36 = vector.broadcast %cst_18 : f32 to vector<8x512xf32>
    %37 = arith.subf %36, %35 : vector<8x512xf32>
    %38 = math.exp %37 : vector<8x512xf32>
    %cst_19 = arith.constant 1.000000e+00 : f32
    %39 = vector.broadcast %cst_19 : f32 to vector<8x512xf32>
    %40 = arith.addf %39, %38 : vector<8x512xf32>
    %41 = math.log %40 : vector<8x512xf32>
    %42 = arith.addf %34, %41 : vector<8x512xf32>
    %c0_20 = arith.constant 0 : index
    %c0_21 = arith.constant 0 : index
    %43 = vector.load %arg9[%c0_20, %c0_21] : memref<512x256xi8, #tpu.memory_space<vmem>>, vector<512x256xi8>
    %44 = arith.sitofp %43 : vector<512x256xi8> to vector<512x256xf32>
    %45 = arith.truncf %44 : vector<512x256xf32> to vector<512x256xbf16>
    %46 = arith.truncf %42 : vector<8x512xf32> to vector<8x512xbf16>
    %cst_22 = arith.constant dense<0.000000e+00> : vector<8x256xf32>
    %47 = tpu.matmul %46, %45, %cst_22 {dimension_numbers = #tpu.dot_dimension_numbers<[1], [0], [0], [1], [0, 0, 1, 1], [], []>} : vector<8x512xbf16>, vector<512x256xbf16>, vector<8x256xf32> -> vector<8x256xf32>
    %c0_23 = arith.constant 0 : index
    %c0_24 = arith.constant 0 : index
    %48 = vector.load %arg10[%c0_23, %c0_24] : memref<1x256xf32, #tpu.memory_space<vmem>>, vector<1x256xf32>
    %49 = vector.broadcast %48 : vector<1x256xf32> to vector<8x256xf32>
    %50 = arith.mulf %47, %49 : vector<8x256xf32>
    %c0_25 = arith.constant 0 : index
    %c0_26 = arith.constant 0 : index
    %51 = vector.load %arg11[%c0_25, %c0_26] : memref<1x256xf32, #tpu.memory_space<vmem>>, vector<1x256xf32>
    %52 = vector.broadcast %51 : vector<1x256xf32> to vector<8x256xf32>
    %53 = arith.addf %50, %52 : vector<8x256xf32>
    %54 = vector.extract_strided_slice %53 {offsets = [0, 0], sizes = [8, 128], strides = [1, 1]} : vector<8x256xf32> to vector<8x128xf32>
    %55 = vector.extract_strided_slice %53 {offsets = [0, 128], sizes = [8, 128], strides = [1, 1]} : vector<8x256xf32> to vector<8x128xf32>
    %c0_27 = arith.constant 0 : index
    %c0_28 = arith.constant 0 : index
    %56 = vector.load %arg2[%c0_27, %c0_28] : memref<8x128xf32, #tpu.memory_space<vmem>>, vector<8x128xf32>
    %cst_29 = arith.constant 5.000000e-01 : f32
    %57 = vector.broadcast %cst_29 : f32 to vector<8x128xf32>
    %58 = arith.mulf %57, %55 : vector<8x128xf32>
    %59 = math.exp %58 : vector<8x128xf32>
    %60 = arith.mulf %56, %59 : vector<8x128xf32>
    %61 = arith.addf %54, %60 : vector<8x128xf32>
    %c0_30 = arith.constant 0 : index
    %c0_31 = arith.constant 0 : index
    %62 = vector.load %arg12[%c0_30, %c0_31] : memref<128x512xi8, #tpu.memory_space<vmem>>, vector<128x512xi8>
    %63 = arith.sitofp %62 : vector<128x512xi8> to vector<128x512xf32>
    %64 = arith.truncf %63 : vector<128x512xf32> to vector<128x512xbf16>
    %65 = arith.truncf %61 : vector<8x128xf32> to vector<8x128xbf16>
    %cst_32 = arith.constant dense<0.000000e+00> : vector<8x512xf32>
    %66 = tpu.matmul %65, %64, %cst_32 {dimension_numbers = #tpu.dot_dimension_numbers<[1], [0], [0], [1], [0, 0, 1, 1], [], []>} : vector<8x128xbf16>, vector<128x512xbf16>, vector<8x512xf32> -> vector<8x512xf32>
    %c0_33 = arith.constant 0 : index
    %c0_34 = arith.constant 0 : index
    %67 = vector.load %arg13[%c0_33, %c0_34] : memref<1x512xf32, #tpu.memory_space<vmem>>, vector<1x512xf32>
    %68 = vector.broadcast %67 : vector<1x512xf32> to vector<8x512xf32>
    %69 = arith.mulf %66, %68 : vector<8x512xf32>
    %c0_35 = arith.constant 0 : index
    %c0_36 = arith.constant 0 : index
    %70 = vector.load %arg14[%c0_35, %c0_36] : memref<1x512xf32, #tpu.memory_space<vmem>>, vector<1x512xf32>
    %71 = vector.broadcast %70 : vector<1x512xf32> to vector<8x512xf32>
    %72 = arith.addf %69, %71 : vector<8x512xf32>
    %cst_37 = arith.constant 0.000000e+00 : f32
    %73 = vector.broadcast %cst_37 : f32 to vector<8x512xf32>
    %74 = arith.maximumf %72, %73 : vector<8x512xf32>
    %75 = math.absf %72 : vector<8x512xf32>
    %cst_38 = arith.constant 0.000000e+00 : f32
    %76 = vector.broadcast %cst_38 : f32 to vector<8x512xf32>
    %77 = arith.subf %76, %75 : vector<8x512xf32>
    %78 = math.exp %77 : vector<8x512xf32>
    %cst_39 = arith.constant 1.000000e+00 : f32
    %79 = vector.broadcast %cst_39 : f32 to vector<8x512xf32>
    %80 = arith.addf %79, %78 : vector<8x512xf32>
    %81 = math.log %80 : vector<8x512xf32>
    %82 = arith.addf %74, %81 : vector<8x512xf32>
    %c0_40 = arith.constant 0 : index
    %c0_41 = arith.constant 0 : index
    %83 = vector.load %arg15[%c0_40, %c0_41] : memref<512x512xi8, #tpu.memory_space<vmem>>, vector<512x512xi8>
    %84 = arith.sitofp %83 : vector<512x512xi8> to vector<512x512xf32>
    %85 = arith.truncf %84 : vector<512x512xf32> to vector<512x512xbf16>
    %86 = arith.truncf %82 : vector<8x512xf32> to vector<8x512xbf16>
    %cst_42 = arith.constant dense<0.000000e+00> : vector<8x512xf32>
    %87 = tpu.matmul %86, %85, %cst_42 {dimension_numbers = #tpu.dot_dimension_numbers<[1], [0], [0], [1], [0, 0, 1, 1], [], []>} : vector<8x512xbf16>, vector<512x512xbf16>, vector<8x512xf32> -> vector<8x512xf32>
    %c0_43 = arith.constant 0 : index
    %c0_44 = arith.constant 0 : index
    %88 = vector.load %arg16[%c0_43, %c0_44] : memref<1x512xf32, #tpu.memory_space<vmem>>, vector<1x512xf32>
    %89 = vector.broadcast %88 : vector<1x512xf32> to vector<8x512xf32>
    %90 = arith.mulf %87, %89 : vector<8x512xf32>
    %c0_45 = arith.constant 0 : index
    %c0_46 = arith.constant 0 : index
    %91 = vector.load %arg17[%c0_45, %c0_46] : memref<1x512xf32, #tpu.memory_space<vmem>>, vector<1x512xf32>
    %92 = vector.broadcast %91 : vector<1x512xf32> to vector<8x512xf32>
    %93 = arith.addf %90, %92 : vector<8x512xf32>
    %cst_47 = arith.constant 0.000000e+00 : f32
    %94 = vector.broadcast %cst_47 : f32 to vector<8x512xf32>
    %95 = arith.maximumf %93, %94 : vector<8x512xf32>
    %96 = math.absf %93 : vector<8x512xf32>
    %cst_48 = arith.constant 0.000000e+00 : f32
    %97 = vector.broadcast %cst_48 : f32 to vector<8x512xf32>
    %98 = arith.subf %97, %96 : vector<8x512xf32>
    %99 = math.exp %98 : vector<8x512xf32>
    %cst_49 = arith.constant 1.000000e+00 : f32
    %100 = vector.broadcast %cst_49 : f32 to vector<8x512xf32>
    %101 = arith.addf %100, %99 : vector<8x512xf32>
    %102 = math.log %101 : vector<8x512xf32>
    %103 = arith.addf %95, %102 : vector<8x512xf32>
    %c0_50 = arith.constant 0 : index
    %c0_51 = arith.constant 0 : index
    %104 = vector.load %arg18[%c0_50, %c0_51] : memref<512x896xi8, #tpu.memory_space<vmem>>, vector<512x896xi8>
    %105 = arith.sitofp %104 : vector<512x896xi8> to vector<512x896xf32>
    %106 = arith.truncf %105 : vector<512x896xf32> to vector<512x896xbf16>
    %107 = arith.truncf %103 : vector<8x512xf32> to vector<8x512xbf16>
    %cst_52 = arith.constant dense<0.000000e+00> : vector<8x896xf32>
    %108 = tpu.matmul %107, %106, %cst_52 {dimension_numbers = #tpu.dot_dimension_numbers<[1], [0], [0], [1], [0, 0, 1, 1], [], []>} : vector<8x512xbf16>, vector<512x896xbf16>, vector<8x896xf32> -> vector<8x896xf32>
    %c0_53 = arith.constant 0 : index
    %c0_54 = arith.constant 0 : index
    %109 = vector.load %arg19[%c0_53, %c0_54] : memref<1x896xf32, #tpu.memory_space<vmem>>, vector<1x896xf32>
    %110 = vector.broadcast %109 : vector<1x896xf32> to vector<8x896xf32>
    %111 = arith.mulf %108, %110 : vector<8x896xf32>
    %c0_55 = arith.constant 0 : index
    %c0_56 = arith.constant 0 : index
    %112 = vector.load %arg20[%c0_55, %c0_56] : memref<1x896xf32, #tpu.memory_space<vmem>>, vector<1x896xf32>
    %113 = vector.broadcast %112 : vector<1x896xf32> to vector<8x896xf32>
    %114 = arith.addf %111, %113 : vector<8x896xf32>
    %cst_57 = arith.constant 5.000000e-01 : f32
    %115 = vector.broadcast %cst_57 : f32 to vector<8x896xf32>
    %116 = arith.mulf %115, %114 : vector<8x896xf32>
    %117 = math.tanh %116 : vector<8x896xf32>
    %cst_58 = arith.constant 5.000000e-01 : f32
    %118 = vector.broadcast %cst_58 : f32 to vector<8x896xf32>
    %119 = arith.mulf %118, %117 : vector<8x896xf32>
    %cst_59 = arith.constant 5.000000e-01 : f32
    %120 = vector.broadcast %cst_59 : f32 to vector<8x896xf32>
    %121 = arith.addf %119, %120 : vector<8x896xf32>
    %c0_60 = arith.constant 0 : index
    %c0_61 = arith.constant 0 : index
    %122 = vector.load %arg21[%c0_60, %c0_61] : memref<8x896xf32, #tpu.memory_space<vmem>>, vector<8x896xf32>
    tpu.vector_store %arg21[%c0_60, %c0_61], %121 {strides = array<i32>} : memref<8x896xf32, #tpu.memory_space<vmem>>, vector<8x896xf32>,
    %c0_62 = arith.constant 0 : index
    %c0_63 = arith.constant 0 : index
    %123 = vector.load %arg22[%c0_62, %c0_63] : memref<8x128xf32, #tpu.memory_space<vmem>>, vector<8x128xf32>
    tpu.vector_store %arg22[%c0_62, %c0_63], %54 {strides = array<i32>} : memref<8x128xf32, #tpu.memory_space<vmem>>, vector<8x128xf32>,
    %c0_64 = arith.constant 0 : index
    %c0_65 = arith.constant 0 : index
    %124 = vector.load %arg23[%c0_64, %c0_65] : memref<8x128xf32, #tpu.memory_space<vmem>>, vector<8x128xf32>
    tpu.vector_store %arg23[%c0_64, %c0_65], %55 {strides = array<i32>} : memref<8x128xf32, #tpu.memory_space<vmem>>, vector<8x128xf32>,
    return
  }
  func.func @transform_0(%arg0: i32) -> (i32, i32) {
    %c0_i32 = arith.constant 0 : i32
    %c0_i32_0 = arith.constant 0 : i32
    return %arg0, %c0_i32 : i32, i32
  }
  func.func @transform_1(%arg0: i32) -> (i32, i32) {
    %c0_i32 = arith.constant 0 : i32
    %c0_i32_0 = arith.constant 0 : i32
    return %arg0, %c0_i32 : i32, i32
  }
  func.func @transform_2(%arg0: i32) -> (i32, i32) {
    %c0_i32 = arith.constant 0 : i32
    %c0_i32_0 = arith.constant 0 : i32
    %c0_i32_1 = arith.constant 0 : i32
    return %c0_i32, %c0_i32_0 : i32, i32
  }
  func.func @transform_3(%arg0: i32) -> (i32, i32) {
    %c0_i32 = arith.constant 0 : i32
    %c0_i32_0 = arith.constant 0 : i32
    %c0_i32_1 = arith.constant 0 : i32
    return %c0_i32, %c0_i32_0 : i32, i32
  }
  func.func @transform_4(%arg0: i32) -> (i32, i32) {
    %c0_i32 = arith.constant 0 : i32
    %c0_i32_0 = arith.constant 0 : i32
    %c0_i32_1 = arith.constant 0 : i32
    return %c0_i32, %c0_i32_0 : i32, i32
  }
  func.func @transform_5(%arg0: i32) -> (i32, i32) {
    %c0_i32 = arith.constant 0 : i32
    %c0_i32_0 = arith.constant 0 : i32
    %c0_i32_1 = arith.constant 0 : i32
    return %c0_i32, %c0_i32_0 : i32, i32
  }
  func.func @transform_6(%arg0: i32) -> (i32, i32) {
    %c0_i32 = arith.constant 0 : i32
    %c0_i32_0 = arith.constant 0 : i32
    %c0_i32_1 = arith.constant 0 : i32
    return %c0_i32, %c0_i32_0 : i32, i32
  }
  func.func @transform_7(%arg0: i32) -> (i32, i32) {
    %c0_i32 = arith.constant 0 : i32
    %c0_i32_0 = arith.constant 0 : i32
    %c0_i32_1 = arith.constant 0 : i32
    return %c0_i32, %c0_i32_0 : i32, i32
  }
  func.func @transform_8(%arg0: i32) -> (i32, i32) {
    %c0_i32 = arith.constant 0 : i32
    %c0_i32_0 = arith.constant 0 : i32
    %c0_i32_1 = arith.constant 0 : i32
    return %c0_i32, %c0_i32_0 : i32, i32
  }
  func.func @transform_9(%arg0: i32) -> (i32, i32) {
    %c0_i32 = arith.constant 0 : i32
    %c0_i32_0 = arith.constant 0 : i32
    %c0_i32_1 = arith.constant 0 : i32
    return %c0_i32, %c0_i32_0 : i32, i32
  }
  func.func @transform_10(%arg0: i32) -> (i32, i32) {
    %c0_i32 = arith.constant 0 : i32
    %c0_i32_0 = arith.constant 0 : i32
    %c0_i32_1 = arith.constant 0 : i32
    return %c0_i32, %c0_i32_0 : i32, i32
  }
  func.func @transform_11(%arg0: i32) -> (i32, i32) {
    %c0_i32 = arith.constant 0 : i32
    %c0_i32_0 = arith.constant 0 : i32
    %c0_i32_1 = arith.constant 0 : i32
    return %c0_i32, %c0_i32_0 : i32, i32
  }
  func.func @transform_12(%arg0: i32) -> (i32, i32) {
    %c0_i32 = arith.constant 0 : i32
    %c0_i32_0 = arith.constant 0 : i32
    %c0_i32_1 = arith.constant 0 : i32
    return %c0_i32, %c0_i32_0 : i32, i32
  }
  func.func @transform_13(%arg0: i32) -> (i32, i32) {
    %c0_i32 = arith.constant 0 : i32
    %c0_i32_0 = arith.constant 0 : i32
    %c0_i32_1 = arith.constant 0 : i32
    return %c0_i32, %c0_i32_0 : i32, i32
  }
  func.func @transform_14(%arg0: i32) -> (i32, i32) {
    %c0_i32 = arith.constant 0 : i32
    %c0_i32_0 = arith.constant 0 : i32
    %c0_i32_1 = arith.constant 0 : i32
    return %c0_i32, %c0_i32_0 : i32, i32
  }
  func.func @transform_15(%arg0: i32) -> (i32, i32) {
    %c0_i32 = arith.constant 0 : i32
    %c0_i32_0 = arith.constant 0 : i32
    %c0_i32_1 = arith.constant 0 : i32
    return %c0_i32, %c0_i32_0 : i32, i32
  }
  func.func @transform_16(%arg0: i32) -> (i32, i32) {
    %c0_i32 = arith.constant 0 : i32
    %c0_i32_0 = arith.constant 0 : i32
    %c0_i32_1 = arith.constant 0 : i32
    return %c0_i32, %c0_i32_0 : i32, i32
  }
  func.func @transform_17(%arg0: i32) -> (i32, i32) {
    %c0_i32 = arith.constant 0 : i32
    %c0_i32_0 = arith.constant 0 : i32
    %c0_i32_1 = arith.constant 0 : i32
    return %c0_i32, %c0_i32_0 : i32, i32
  }
  func.func @transform_18(%arg0: i32) -> (i32, i32) {
    %c0_i32 = arith.constant 0 : i32
    %c0_i32_0 = arith.constant 0 : i32
    %c0_i32_1 = arith.constant 0 : i32
    return %c0_i32, %c0_i32_0 : i32, i32
  }
  func.func @transform_19(%arg0: i32) -> (i32, i32) {
    %c0_i32 = arith.constant 0 : i32
    %c0_i32_0 = arith.constant 0 : i32
    %c0_i32_1 = arith.constant 0 : i32
    return %c0_i32, %c0_i32_0 : i32, i32
  }
  func.func @transform_20(%arg0: i32) -> (i32, i32) {
    %c0_i32 = arith.constant 0 : i32
    %c0_i32_0 = arith.constant 0 : i32
    return %arg0, %c0_i32 : i32, i32
  }
  func.func @transform_21(%arg0: i32) -> (i32, i32) {
    %c0_i32 = arith.constant 0 : i32
    %c0_i32_0 = arith.constant 0 : i32
    return %arg0, %c0_i32 : i32, i32
  }
  func.func @transform_22(%arg0: i32) -> (i32, i32) {
    %c0_i32 = arith.constant 0 : i32
    %c0_i32_0 = arith.constant 0 : i32
    return %arg0, %c0_i32 : i32, i32
  }
}

</mosaic_0001>

<llo_original>
// kernel: vae_forward.1
$region0: #{vae_forward.1}
  #allocation0 [shape = 'u32[]', space=smem, size = 0x4, offset = 0x4, fixed_abs, tag = 'smem constant byte address 0x4 - core index']
  #allocation1 [shape = 'u32[144,128]{1,0:T(1,128)}', space=vmem, size = 0x12000, scoped, tag = 'internal scratch']
  %s0 = inlined_call_operand.vmem [shape: f32[8,896], index: 0, kind: input, shape index: {}]
  %s1 = inlined_call_operand.vmem [shape: f32[8,128], index: 1, kind: input, shape index: {}]
  %s2 = inlined_call_operand.hbm [shape: s8[896,512], index: 2, kind: input, shape index: {}]
  %s3 = inlined_call_operand.vmem [shape: f32[1,512], index: 3, kind: input, shape index: {}]
  %s4 = inlined_call_operand.vmem [shape: f32[1,512], index: 4, kind: input, shape index: {}]
  %s5 = inlined_call_operand.hbm [shape: s8[512,512], index: 5, kind: input, shape index: {}]
  %s6 = inlined_call_operand.vmem [shape: f32[1,512], index: 6, kind: input, shape index: {}]
  %s7 = inlined_call_operand.vmem [shape: f32[1,512], index: 7, kind: input, shape index: {}]
  %s8 = inlined_call_operand.vmem [shape: s8[512,256], index: 8, kind: input, shape index: {}]
  %s9 = inlined_call_operand.vmem [shape: f32[1,256], index: 9, kind: input, shape index: {}]
  %s10 = inlined_call_operand.hbm [shape: f32[1,256], index: 10, kind: input, shape index: {}]
  %s11 = inlined_call_operand.hbm [shape: s8[128,512], index: 11, kind: input, shape index: {}]
  %s12 = inlined_call_operand.vmem [shape: f32[1,512], index: 12, kind: input, shape index: {}]
  %s13 = inlined_call_operand.vmem [shape: f32[1,512], index: 13, kind: input, shape index: {}]
  %s14 = inlined_call_operand.hbm [shape: s8[512,512], index: 14, kind: input, shape index: {}]
  %s15 = inlined_call_operand.vmem [shape: f32[1,512], index: 15, kind: input, shape index: {}]
  %s16 = inlined_call_operand.vmem [shape: f32[1,512], index: 16, kind: input, shape index: {}]
  %s17 = inlined_call_operand.hbm [shape: s8[512,896], index: 17, kind: input, shape index: {}]
  %s18 = inlined_call_operand.vmem [shape: f32[1,896], index: 18, kind: input, shape index: {}]
  %s19 = inlined_call_operand.vmem [shape: f32[1,896], index: 19, kind: input, shape index: {}]
  %s20 = inlined_call_operand.hbm [shape: f32[8,896], index: 20, kind: output, shape index: {0}]
  %s21 = inlined_call_operand.hbm [shape: f32[8,128], index: 21, kind: output, shape index: {1}]
  %s22 = inlined_call_operand.hbm [shape: f32[8,128], index: 22, kind: output, shape index: {2}]
  %23 = xla_tuple %s20, %s21, %s22
  %s24 = sld [smem:[#allocation0]]
  $region130: #{vae_forward.1} parent=0
    _
  %s26 = ssub.s32 1, %s24
  %s27 = scalar_select 0, %s26, %s24
  $region1: #{vae_forward.1} parent=0
    #allocation2 [shape = 'u8[458752]{0}', space=vmem, size = 0x70000, scoped, tag = 'input window, operand 2, single buffered']
    #allocation3 [shape = 's32[1]{0}', space=sflag, size = 0x4, scoped, tag = 'scoped memory for vae_forward.1']
    #allocation4 [shape = 's32[1]{0}', space=sflag, size = 0x4, scoped, tag = 'scoped memory for vae_forward.1']
    #allocation5 [shape = 'u8[262144]{0}', space=vmem, size = 0x40000, scoped, tag = 'input window, operand 5, single buffered']
    #allocation6 [shape = 's32[1]{0}', space=sflag, size = 0x4, scoped, tag = 'scoped memory for vae_forward.1']
    #allocation7 [shape = 'u8[1024]{0}', space=vmem, size = 0x400, scoped, tag = 'input window, operand 10, single buffered']
    #allocation8 [shape = 'u8[65536]{0}', space=vmem, size = 0x10000, scoped, tag = 'input window, operand 11, single buffered']
    #allocation9 [shape = 's32[1]{0}', space=sflag, size = 0x4, scoped, tag = 'scoped memory for vae_forward.1']
    #allocation10 [shape = 'u8[262144]{0}', space=vmem, size = 0x40000, scoped, tag = 'input window, operand 14, single buffered']
    #allocation11 [shape = 'u8[458752]{0}', space=vmem, size = 0x70000, scoped, tag = 'input window, operand 17, single buffered']
    #allocation12 [shape = 's32[1]{0}', space=sflag, size = 0x4, scoped, tag = 'scoped memory for vae_forward.1']
    #allocation13 [shape = 'u8[28672]{0}', space=vmem, size = 0x7000, scoped, tag = 'output window, operand 0, single buffered']
    #allocation14 [shape = 'u8[4096]{0}', space=vmem, size = 0x1000, scoped, tag = 'output window, operand 1, single buffered']
    #allocation15 [shape = 's32[1]{0}', space=sflag, size = 0x4, scoped, tag = 'scoped memory for vae_forward.1']
    #allocation16 [shape = 'u8[4096]{0}', space=vmem, size = 0x1000, scoped, tag = 'output window, operand 2, single buffered']
    %28 = vsyncpa [#allocation3], 0
    %29 = vsyncpa [#allocation6], 0
    %30 = vsyncpa [#allocation9], 0
    %31 = vsyncpa [#allocation12], 0
    %32 = vsyncpa [#allocation4], 0
    %33 = vsyncpa [#allocation15], 0
    // Predicated region
    $region2: #{vae_forward.1} parent=1 // pred_check
      _
    $region3: #{vae_forward.1} parent=1 // pred_check_branch
      %35 = sbr.rel (0) target = $region5
    $region4: #{vae_forward.1} parent=1 // pred_region
      _
    $region5: #{vae_forward.1} parent=1 // pred_fallthru
      _
    // Predicated region
    $region6: #{vae_forward.1} parent=1 // pred_check
      _
    $region7: #{vae_forward.1} parent=1 // pred_check_branch
      %37 = sbr.rel (0) target = $region9
    $region8: #{vae_forward.1} parent=1 // pred_region
      _
    $region9: #{vae_forward.1} parent=1 // pred_fallthru
      _
    // Predicated region
    $region10: #{vae_forward.1} parent=1 // pred_check
      _
    $region11: #{vae_forward.1} parent=1 // pred_check_branch
      %39 = sbr.rel (0) target = $region13
    $region12: #{vae_forward.1} parent=1 // pred_region
      %s41 = ssub.s32 14336, 14336
      %42 = vsyncadd [#allocation3], %s41
      %s43 = sshll.u32 [#allocation2], 4
      %s44 = int_to_ptr.vmem [resolvable:$true] %s43
      %49 = dma.hbm_to_vmem [thread:$0]  %s2, 14336, %s44, [#allocation3], 512, 512, 32
    $region13: #{vae_forward.1} parent=1 // pred_fallthru
      _
    // Predicated region
    $region14: #{vae_forward.1} parent=1 // pred_check
      _
    $region15: #{vae_forward.1} parent=1 // pred_check_branch
      %51 = sbr.rel (0) target = $region17
    $region16: #{vae_forward.1} parent=1 // pred_region
      _
    $region17: #{vae_forward.1} parent=1 // pred_fallthru
      _
    // Predicated region
    $region18: #{vae_forward.1} parent=1 // pred_check
      _
    $region19: #{vae_forward.1} parent=1 // pred_check_branch
      %53 = sbr.rel (0) target = $region21
    $region20: #{vae_forward.1} parent=1 // pred_region
      _
    $region21: #{vae_forward.1} parent=1 // pred_fallthru
      _
    // Predicated region
    $region22: #{vae_forward.1} parent=1 // pred_check
      _
    $region23: #{vae_forward.1} parent=1 // pred_check_branch
      %55 = sbr.rel (0) target = $region25
    $region24: #{vae_forward.1} parent=1 // pred_region
      %s57 = ssub.s32 8192, 8192
      %58 = vsyncadd [#allocation6], %s57
      %s59 = sshll.u32 [#allocation5], 4
      %s60 = int_to_ptr.vmem [resolvable:$true] %s59
      %65 = dma.hbm_to_vmem [thread:$0]  %s5, 8192, %s60, [#allocation6], 512, 512, 32
    $region25: #{vae_forward.1} parent=1 // pred_fallthru
      _
    // Predicated region
    $region26: #{vae_forward.1} parent=1 // pred_check
      _
    $region27: #{vae_forward.1} parent=1 // pred_check_branch
      %67 = sbr.rel (0) target = $region29
    $region28: #{vae_forward.1} parent=1 // pred_region
      _
    $region29: #{vae_forward.1} parent=1 // pred_fallthru
      _
    // Predicated region
    $region30: #{vae_forward.1} parent=1 // pred_check
      _
    $region31: #{vae_forward.1} parent=1 // pred_check_branch
      %69 = sbr.rel (0) target = $region33
    $region32: #{vae_forward.1} parent=1 // pred_region
      _
    $region33: #{vae_forward.1} parent=1 // pred_fallthru
      _
    // Predicated region
    $region34: #{vae_forward.1} parent=1 // pred_check
      _
    $region35: #{vae_forward.1} parent=1 // pred_check_branch
      %71 = sbr.rel (0) target = $region37
    $region36: #{vae_forward.1} parent=1 // pred_region
      _
    $region37: #{vae_forward.1} parent=1 // pred_fallthru
      _
    // Predicated region
    $region38: #{vae_forward.1} parent=1 // pred_check
      _
    $region39: #{vae_forward.1} parent=1 // pred_check_branch
      %73 = sbr.rel (0) target = $region41
    $region40: #{vae_forward.1} parent=1 // pred_region
      _
    $region41: #{vae_forward.1} parent=1 // pred_fallthru
      _
    // Predicated region
    $region42: #{vae_forward.1} parent=1 // pred_check
      _
    $region43: #{vae_forward.1} parent=1 // pred_check_branch
      %75 = sbr.rel (0) target = $region45
    $region44: #{vae_forward.1} parent=1 // pred_region
      %s77 = ssub.s32 32, 32
      %78 = vsyncadd [#allocation6], %s77
      %s80 = sshll.u32 [#allocation7], 4
      %s81 = int_to_ptr.vmem [resolvable:$true] %s80
      %83 = dma.hbm_to_vmem [thread:$0]  %s10, 32, %s81, [#allocation6]
    $region45: #{vae_forward.1} parent=1 // pred_fallthru
      _
    // Predicated region
    $region46: #{vae_forward.1} parent=1 // pred_check
      _
    $region47: #{vae_forward.1} parent=1 // pred_check_branch
      %85 = sbr.rel (0) target = $region49
    $region48: #{vae_forward.1} parent=1 // pred_region
      %s87 = ssub.s32 2048, 2048
      %88 = vsyncadd [#allocation9], %s87
      %s89 = sshll.u32 [#allocation8], 4
      %s90 = int_to_ptr.vmem [resolvable:$true] %s89
      %95 = dma.hbm_to_vmem [thread:$0]  %s11, 2048, %s90, [#allocation9], 512, 512, 32
    $region49: #{vae_forward.1} parent=1 // pred_fallthru
      _
    // Predicated region
    $region50: #{vae_forward.1} parent=1 // pred_check
      _
    $region51: #{vae_forward.1} parent=1 // pred_check_branch
      %97 = sbr.rel (0) target = $region53
    $region52: #{vae_forward.1} parent=1 // pred_region
      _
    $region53: #{vae_forward.1} parent=1 // pred_fallthru
      _
    // Predicated region
    $region54: #{vae_forward.1} parent=1 // pred_check
      _
    $region55: #{vae_forward.1} parent=1 // pred_check_branch
      %99 = sbr.rel (0) target = $region57
    $region56: #{vae_forward.1} parent=1 // pred_region
      _
    $region57: #{vae_forward.1} parent=1 // pred_fallthru
      _
    // Predicated region
    $region58: #{vae_forward.1} parent=1 // pred_check
      _
    $region59: #{vae_forward.1} parent=1 // pred_check_branch
      %101 = sbr.rel (0) target = $region61
    $region60: #{vae_forward.1} parent=1 // pred_region
      %s103 = ssub.s32 8192, 8192
      %104 = vsyncadd [#allocation9], %s103
      %s105 = sshll.u32 [#allocation10], 4
      %s106 = int_to_ptr.vmem [resolvable:$true] %s105
      %111 = dma.hbm_to_vmem [thread:$0]  %s14, 8192, %s106, [#allocation9], 512, 512, 32
    $region61: #{vae_forward.1} parent=1 // pred_fallthru
      _
    // Predicated region
    $region62: #{vae_forward.1} parent=1 // pred_check
      _
    $region63: #{vae_forward.1} parent=1 // pred_check_branch
      %113 = sbr.rel (0) target = $region65
    $region64: #{vae_forward.1} parent=1 // pred_region
      _
    $region65: #{vae_forward.1} parent=1 // pred_fallthru
      _
    // Predicated region
    $region66: #{vae_forward.1} parent=1 // pred_check
      _
    $region67: #{vae_forward.1} parent=1 // pred_check_branch
      %115 = sbr.rel (0) target = $region69
    $region68: #{vae_forward.1} parent=1 // pred_region
      _
    $region69: #{vae_forward.1} parent=1 // pred_fallthru
      _
    // Predicated region
    $region70: #{vae_forward.1} parent=1 // pred_check
      _
    $region71: #{vae_forward.1} parent=1 // pred_check_branch
      %117 = sbr.rel (0) target = $region73
    $region72: #{vae_forward.1} parent=1 // pred_region
      %s119 = ssub.s32 14336, 14336
      %120 = vsyncadd [#allocation12], %s119
      %s121 = sshll.u32 [#allocation11], 4
      %s122 = int_to_ptr.vmem [resolvable:$true] %s121
      %127 = dma.hbm_to_vmem [thread:$0]  %s17, 14336, %s122, [#allocation12], 896, 896, 56
    $region73: #{vae_forward.1} parent=1 // pred_fallthru
      _
    // Predicated region
    $region74: #{vae_forward.1} parent=1 // pred_check
      _
    $region75: #{vae_forward.1} parent=1 // pred_check_branch
      %129 = sbr.rel (0) target = $region77
    $region76: #{vae_forward.1} parent=1 // pred_region
      _
    $region77: #{vae_forward.1} parent=1 // pred_fallthru
      _
    // Predicated region
    $region78: #{vae_forward.1} parent=1 // pred_check
      _
    $region79: #{vae_forward.1} parent=1 // pred_check_branch
      %131 = sbr.rel (0) target = $region81
    $region80: #{vae_forward.1} parent=1 // pred_region
      _
    $region81: #{vae_forward.1} parent=1 // pred_fallthru
      _
    // Predicated region
    $region82: #{vae_forward.1} parent=1 // pred_check
      _
    $region83: #{vae_forward.1} parent=1 // pred_check_branch
      %133 = sbr.rel (0) target = $region85
    $region84: #{vae_forward.1} parent=1 // pred_region
      %134 = dma.done [#allocation3], 14336
    $region85: #{vae_forward.1} parent=1 // pred_fallthru
      _
    // Predicated region
    $region86: #{vae_forward.1} parent=1 // pred_check
      _
    $region87: #{vae_forward.1} parent=1 // pred_check_branch
      %136 = sbr.rel (0) target = $region89
    $region88: #{vae_forward.1} parent=1 // pred_region
      %137 = dma.done [#allocation6], 8192
    $region89: #{vae_forward.1} parent=1 // pred_fallthru
      _
    // Predicated region
    $region90: #{vae_forward.1} parent=1 // pred_check
      _
    $region91: #{vae_forward.1} parent=1 // pred_check_branch
      %139 = sbr.rel (0) target = $region93
    $region92: #{vae_forward.1} parent=1 // pred_region
      %140 = dma.done [#allocation6], 32
    $region93: #{vae_forward.1} parent=1 // pred_fallthru
      _
    // Predicated region
    $region94: #{vae_forward.1} parent=1 // pred_check
      _
    $region95: #{vae_forward.1} parent=1 // pred_check_branch
      %142 = sbr.rel (0) target = $region97
    $region96: #{vae_forward.1} parent=1 // pred_region
      %143 = dma.done [#allocation9], 2048
    $region97: #{vae_forward.1} parent=1 // pred_fallthru
      _
    // Predicated region
    $region98: #{vae_forward.1} parent=1 // pred_check
      _
    $region99: #{vae_forward.1} parent=1 // pred_check_branch
      %145 = sbr.rel (0) target = $region101
    $region100: #{vae_forward.1} parent=1 // pred_region
      %146 = dma.done [#allocation9], 8192
    $region101: #{vae_forward.1} parent=1 // pred_fallthru
      _
    // Predicated region
    $region102: #{vae_forward.1} parent=1 // pred_check
      _
    $region103: #{vae_forward.1} parent=1 // pred_check_branch
      %148 = sbr.rel (0) target = $region105
    $region104: #{vae_forward.1} parent=1 // pred_region
      %149 = dma.done [#allocation12], 14336
    $region105: #{vae_forward.1} parent=1 // pred_fallthru
      _
    %v151 = vld [vmem:[%s0] sm:$0xff]
    %v152 = vld [vmem:[%s0 + $0x8] sm:$0xff]
    %v153 = vld [vmem:[%s0 + $0x10] sm:$0xff]
    %v154 = vld [vmem:[%s0 + $0x18] sm:$0xff]
    %v155 = vld [vmem:[%s0 + $0x20] sm:$0xff]
    %v156 = vld [vmem:[%s0 + $0x28] sm:$0xff]
    %v157 = vld [vmem:[%s0 + $0x30] sm:$0xff]
    %v158 = vld [vmem:[#allocation2] sm:$0xff]
    %v159 = vld [vmem:[#allocation2 + $0x8] sm:$0xff]
    %v160 = vld [vmem:[#allocation2 + $0x10] sm:$0xff]
    %v161 = vld [vmem:[#allocation2 + $0x18] sm:$0xff]
    %v162 = vld [vmem:[#allocation2 + $0x20] sm:$0xff]
    %v163 = vld [vmem:[#allocation2 + $0x28] sm:$0xff]
    %v164 = vld [vmem:[#allocation2 + $0x30] sm:$0xff]
    %v165 = vld [vmem:[#allocation2 + $0x38] sm:$0xff]
    %v166 = vld [vmem:[#allocation2 + $0x40] sm:$0xff]
    %v167 = vld [vmem:[#allocation2 + $0x48] sm:$0xff]
    %v168 = vld [vmem:[#allocation2 + $0x50] sm:$0xff]
    %v169 = vld [vmem:[#allocation2 + $0x58] sm:$0xff]
    %v170 = vld [vmem:[#allocation2 + $0x60] sm:$0xff]
    %v171 = vld [vmem:[#allocation2 + $0x68] sm:$0xff]
    %v172 = vld [vmem:[#allocation2 + $0x70] sm:$0xff]
    %v173 = vld [vmem:[#allocation2 + $0x78] sm:$0xff]
    %v174 = vld [vmem:[#allocation2 + $0x80] sm:$0xff]
    %v175 = vld [vmem:[#allocation2 + $0x88] sm:$0xff]
    %v176 = vld [vmem:[#allocation2 + $0x90] sm:$0xff]
    %v177 = vld [vmem:[#allocation2 + $0x98] sm:$0xff]
    %v178 = vld [vmem:[#allocation2 + $0xa0] sm:$0xff]
    %v179 = vld [vmem:[#allocation2 + $0xa8] sm:$0xff]
    %v180 = vld [vmem:[#allocation2 + $0xb0] sm:$0xff]
    %v181 = vld [vmem:[#allocation2 + $0xb8] sm:$0xff]
    %v182 = vld [vmem:[#allocation2 + $0xc0] sm:$0xff]
    %v183 = vld [vmem:[#allocation2 + $0xc8] sm:$0xff]
    %v184 = vld [vmem:[#allocation2 + $0xd0] sm:$0xff]
    %v185 = vld [vmem:[#allocation2 + $0xd8] sm:$0xff]
    %v186 = vld [vmem:[#allocation2 + $0xe0] sm:$0xff]
    %v187 = vld [vmem:[#allocation2 + $0xe8] sm:$0xff]
    %v188 = vld [vmem:[#allocation2 + $0xf0] sm:$0xff]
    %v189 = vld [vmem:[#allocation2 + $0xf8] sm:$0xff]
    %v190 = vld [vmem:[#allocation2 + $0x100] sm:$0xff]
    %v191 = vld [vmem:[#allocation2 + $0x108] sm:$0xff]
    %v192 = vld [vmem:[#allocation2 + $0x110] sm:$0xff]
    %v193 = vld [vmem:[#allocation2 + $0x118] sm:$0xff]
    %v194 = vld [vmem:[#allocation2 + $0x120] sm:$0xff]
    %v195 = vld [vmem:[#allocation2 + $0x128] sm:$0xff]
    %v196 = vld [vmem:[#allocation2 + $0x130] sm:$0xff]
    %v197 = vld [vmem:[#allocation2 + $0x138] sm:$0xff]
    %v198 = vld [vmem:[#allocation2 + $0x140] sm:$0xff]
    %v199 = vld [vmem:[#allocation2 + $0x148] sm:$0xff]
    %v200 = vld [vmem:[#allocation2 + $0x150] sm:$0xff]
    %v201 = vld [vmem:[#allocation2 + $0x158] sm:$0xff]
    %v202 = vld [vmem:[#allocation2 + $0x160] sm:$0xff]
    %v203 = vld [vmem:[#allocation2 + $0x168] sm:$0xff]
    %v204 = vld [vmem:[#allocation2 + $0x170] sm:$0xff]
    %v205 = vld [vmem:[#allocation2 + $0x178] sm:$0xff]
    %v206 = vld [vmem:[#allocation2 + $0x180] sm:$0xff]
    %v207 = vld [vmem:[#allocation2 + $0x188] sm:$0xff]
    %v208 = vld [vmem:[#allocation2 + $0x190] sm:$0xff]
    %v209 = vld [vmem:[#allocation2 + $0x198] sm:$0xff]
    %v210 = vld [vmem:[#allocation2 + $0x1a0] sm:$0xff]
    %v211 = vld [vmem:[#allocation2 + $0x1a8] sm:$0xff]
    %v212 = vld [vmem:[#allocation2 + $0x1b0] sm:$0xff]
    %v213 = vld [vmem:[#allocation2 + $0x1b8] sm:$0xff]
    %v214 = vld [vmem:[#allocation2 + $0x1c0] sm:$0xff]
    %v215 = vld [vmem:[#allocation2 + $0x1c8] sm:$0xff]
    %v216 = vld [vmem:[#allocation2 + $0x1d0] sm:$0xff]
    %v217 = vld [vmem:[#allocation2 + $0x1d8] sm:$0xff]
    %v218 = vld [vmem:[#allocation2 + $0x1e0] sm:$0xff]
    %v219 = vld [vmem:[#allocation2 + $0x1e8] sm:$0xff]
    %v220 = vld [vmem:[#allocation2 + $0x1f0] sm:$0xff]
    %v221 = vld [vmem:[#allocation2 + $0x1f8] sm:$0xff]
    %v222 = vld [vmem:[#allocation2 + $0x200] sm:$0xff]
    %v223 = vld [vmem:[#allocation2 + $0x208] sm:$0xff]
    %v224 = vld [vmem:[#allocation2 + $0x210] sm:$0xff]
    %v225 = vld [vmem:[#allocation2 + $0x218] sm:$0xff]
    %v226 = vld [vmem:[#allocation2 + $0x220] sm:$0xff]
    %v227 = vld [vmem:[#allocation2 + $0x228] sm:$0xff]
    %v228 = vld [vmem:[#allocation2 + $0x230] sm:$0xff]
    %v229 = vld [vmem:[#allocation2 + $0x238] sm:$0xff]
    %v230 = vld [vmem:[#allocation2 + $0x240] sm:$0xff]
    %v231 = vld [vmem:[#allocation2 + $0x248] sm:$0xff]
    %v232 = vld [vmem:[#allocation2 + $0x250] sm:$0xff]
    %v233 = vld [vmem:[#allocation2 + $0x258] sm:$0xff]
    %v234 = vld [vmem:[#allocation2 + $0x260] sm:$0xff]
    %v235 = vld [vmem:[#allocation2 + $0x268] sm:$0xff]
    %v236 = vld [vmem:[#allocation2 + $0x270] sm:$0xff]
    %v237 = vld [vmem:[#allocation2 + $0x278] sm:$0xff]
    %v238 = vld [vmem:[#allocation2 + $0x280] sm:$0xff]
    %v239 = vld [vmem:[#allocation2 + $0x288] sm:$0xff]
    %v240 = vld [vmem:[#allocation2 + $0x290] sm:$0xff]
    %v241 = vld [vmem:[#allocation2 + $0x298] sm:$0xff]
    %v242 = vld [vmem:[#allocation2 + $0x2a0] sm:$0xff]
    %v243 = vld [vmem:[#allocation2 + $0x2a8] sm:$0xff]
    %v244 = vld [vmem:[#allocation2 + $0x2b0] sm:$0xff]
    %v245 = vld [vmem:[#allocation2 + $0x2b8] sm:$0xff]
    %v246 = vld [vmem:[#allocation2 + $0x2c0] sm:$0xff]
    %v247 = vld [vmem:[#allocation2 + $0x2c8] sm:$0xff]
    %v248 = vld [vmem:[#allocation2 + $0x2d0] sm:$0xff]
    %v249 = vld [vmem:[#allocation2 + $0x2d8] sm:$0xff]
    %v250 = vld [vmem:[#allocation2 + $0x2e0] sm:$0xff]
    %v251 = vld [vmem:[#allocation2 + $0x2e8] sm:$0xff]
    %v252 = vld [vmem:[#allocation2 + $0x2f0] sm:$0xff]
    %v253 = vld [vmem:[#allocation2 + $0x2f8] sm:$0xff]
    %v254 = vld [vmem:[#allocation2 + $0x300] sm:$0xff]
    %v255 = vld [vmem:[#allocation2 + $0x308] sm:$0xff]
    %v256 = vld [vmem:[#allocation2 + $0x310] sm:$0xff]
    %v257 = vld [vmem:[#allocation2 + $0x318] sm:$0xff]
    %v258 = vld [vmem:[#allocation2 + $0x320] sm:$0xff]
    %v259 = vld [vmem:[#allocation2 + $0x328] sm:$0xff]
    %v260 = vld [vmem:[#allocation2 + $0x330] sm:$0xff]
    %v261 = vld [vmem:[#allocation2 + $0x338] sm:$0xff]
    %v262 = vld [vmem:[#allocation2 + $0x340] sm:$0xff]
    %v263 = vld [vmem:[#allocation2 + $0x348] sm:$0xff]
    %v264 = vld [vmem:[#allocation2 + $0x350] sm:$0xff]
    %v265 = vld [vmem:[#allocation2 + $0x358] sm:$0xff]
    %v266 = vld [vmem:[#allocation2 + $0x360] sm:$0xff]
    %v267 = vld [vmem:[#allocation2 + $0x368] sm:$0xff]
    %v268 = vld [vmem:[#allocation2 + $0x370] sm:$0xff]
    %v269 = vld [vmem:[#allocation2 + $0x378] sm:$0xff]
    %v270 = vunpack.c.l.s8.bf16 %v158
    %v271 = vunpack.c.l.s8.bf16 %v159
    %v272 = vunpack.c.l.s8.bf16 %v160
    %v273 = vunpack.c.l.s8.bf16 %v161
    %v274 = vunpack.c.h.s8.bf16 %v158
    %v275 = vunpack.c.h.s8.bf16 %v159
    %v276 = vunpack.c.h.s8.bf16 %v160
    %v277 = vunpack.c.h.s8.bf16 %v161
    %v278 = vunpack.c.l.s8.bf16 %v162
    %v279 = vunpack.c.l.s8.bf16 %v163
    %v280 = vunpack.c.l.s8.bf16 %v164
    %v281 = vunpack.c.l.s8.bf16 %v165
    %v282 = vunpack.c.h.s8.bf16 %v162
    %v283 = vunpack.c.h.s8.bf16 %v163
    %v284 = vunpack.c.h.s8.bf16 %v164
    %v285 = vunpack.c.h.s8.bf16 %v165
    %v286 = vunpack.c.l.s8.bf16 %v166
    %v287 = vunpack.c.l.s8.bf16 %v167
    %v288 = vunpack.c.l.s8.bf16 %v168
    %v289 = vunpack.c.l.s8.bf16 %v169
    %v290 = vunpack.c.h.s8.bf16 %v166
    %v291 = vunpack.c.h.s8.bf16 %v167
    %v292 = vunpack.c.h.s8.bf16 %v168
    %v293 = vunpack.c.h.s8.bf16 %v169
    %v294 = vunpack.c.l.s8.bf16 %v170
    %v295 = vunpack.c.l.s8.bf16 %v171
    %v296 = vunpack.c.l.s8.bf16 %v172
    %v297 = vunpack.c.l.s8.bf16 %v173
    %v298 = vunpack.c.h.s8.bf16 %v170
    %v299 = vunpack.c.h.s8.bf16 %v171
    %v300 = vunpack.c.h.s8.bf16 %v172
    %v301 = vunpack.c.h.s8.bf16 %v173
    %v302 = vunpack.c.l.s8.bf16 %v174
    %v303 = vunpack.c.l.s8.bf16 %v175
    %v304 = vunpack.c.l.s8.bf16 %v176
    %v305 = vunpack.c.l.s8.bf16 %v177
    %v306 = vunpack.c.h.s8.bf16 %v174
    %v307 = vunpack.c.h.s8.bf16 %v175
    %v308 = vunpack.c.h.s8.bf16 %v176
    %v309 = vunpack.c.h.s8.bf16 %v177
    %v310 = vunpack.c.l.s8.bf16 %v178
    %v311 = vunpack.c.l.s8.bf16 %v179
    %v312 = vunpack.c.l.s8.bf16 %v180
    %v313 = vunpack.c.l.s8.bf16 %v181
    %v314 = vunpack.c.h.s8.bf16 %v178
    %v315 = vunpack.c.h.s8.bf16 %v179
    %v316 = vunpack.c.h.s8.bf16 %v180
    %v317 = vunpack.c.h.s8.bf16 %v181
    %v318 = vunpack.c.l.s8.bf16 %v182
    %v319 = vunpack.c.l.s8.bf16 %v183
    %v320 = vunpack.c.l.s8.bf16 %v184
    %v321 = vunpack.c.l.s8.bf16 %v185
    %v322 = vunpack.c.h.s8.bf16 %v182
    %v323 = vunpack.c.h.s8.bf16 %v183
    %v324 = vunpack.c.h.s8.bf16 %v184
    %v325 = vunpack.c.h.s8.bf16 %v185
    %v326 = vunpack.c.l.s8.bf16 %v186
    %v327 = vunpack.c.l.s8.bf16 %v187
    %v328 = vunpack.c.l.s8.bf16 %v188
    %v329 = vunpack.c.l.s8.bf16 %v189
    %v330 = vunpack.c.h.s8.bf16 %v186
    %v331 = vunpack.c.h.s8.bf16 %v187
    %v332 = vunpack.c.h.s8.bf16 %v188
    %v333 = vunpack.c.h.s8.bf16 %v189
    %v334 = vunpack.c.l.s8.bf16 %v190
    %v335 = vunpack.c.l.s8.bf16 %v191
    %v336 = vunpack.c.l.s8.bf16 %v192
    %v337 = vunpack.c.l.s8.bf16 %v193
    %v338 = vunpack.c.h.s8.bf16 %v190
    %v339 = vunpack.c.h.s8.bf16 %v191
    %v340 = vunpack.c.h.s8.bf16 %v192
    %v341 = vunpack.c.h.s8.bf16 %v193
    %v342 = vunpack.c.l.s8.bf16 %v194
    %v343 = vunpack.c.l.s8.bf16 %v195
    %v344 = vunpack.c.l.s8.bf16 %v196
    %v345 = vunpack.c.l.s8.bf16 %v197
    %v346 = vunpack.c.h.s8.bf16 %v194
    %v347 = vunpack.c.h.s8.bf16 %v195
    %v348 = vunpack.c.h.s8.bf16 %v196
    %v349 = vunpack.c.h.s8.bf16 %v197
    %v350 = vunpack.c.l.s8.bf16 %v198
    %v351 = vunpack.c.l.s8.bf16 %v199
    %v352 = vunpack.c.l.s8.bf16 %v200
    %v353 = vunpack.c.l.s8.bf16 %v201
    %v354 = vunpack.c.h.s8.bf16 %v198
    %v355 = vunpack.c.h.s8.bf16 %v199
    %v356 = vunpack.c.h.s8.bf16 %v200
    %v357 = vunpack.c.h.s8.bf16 %v201
    %v358 = vunpack.c.l.s8.bf16 %v202
    %v359 = vunpack.c.l.s8.bf16 %v203
    %v360 = vunpack.c.l.s8.bf16 %v204
    %v361 = vunpack.c.l.s8.bf16 %v205
    %v362 = vunpack.c.h.s8.bf16 %v202
    %v363 = vunpack.c.h.s8.bf16 %v203
    %v364 = vunpack.c.h.s8.bf16 %v204
    %v365 = vunpack.c.h.s8.bf16 %v205
    %v366 = vunpack.c.l.s8.bf16 %v206
    %v367 = vunpack.c.l.s8.bf16 %v207
    %v368 = vunpack.c.l.s8.bf16 %v208
    %v369 = vunpack.c.l.s8.bf16 %v209
    %v370 = vunpack.c.h.s8.bf16 %v206
    %v371 = vunpack.c.h.s8.bf16 %v207
    %v372 = vunpack.c.h.s8.bf16 %v208
    %v373 = vunpack.c.h.s8.bf16 %v209
    %v374 = vunpack.c.l.s8.bf16 %v210
    %v375 = vunpack.c.l.s8.bf16 %v211
    %v376 = vunpack.c.l.s8.bf16 %v212
    %v377 = vunpack.c.l.s8.bf16 %v213
    %v378 = vunpack.c.h.s8.bf16 %v210
    %v379 = vunpack.c.h.s8.bf16 %v211
    %v380 = vunpack.c.h.s8.bf16 %v212
    %v381 = vunpack.c.h.s8.bf16 %v213
    %v382 = vunpack.c.l.s8.bf16 %v214
    %v383 = vunpack.c.l.s8.bf16 %v215
    %v384 = vunpack.c.l.s8.bf16 %v216
    %v385 = vunpack.c.l.s8.bf16 %v217
    %v386 = vunpack.c.h.s8.bf16 %v214
    %v387 = vunpack.c.h.s8.bf16 %v215
    %v388 = vunpack.c.h.s8.bf16 %v216
    %v389 = vunpack.c.h.s8.bf16 %v217
    %v390 = vunpack.c.l.s8.bf16 %v218
    %v391 = vunpack.c.l.s8.bf16 %v219
    %v392 = vunpack.c.l.s8.bf16 %v220
    %v393 = vunpack.c.l.s8.bf16 %v221
    %v394 = vunpack.c.h.s8.bf16 %v218
    %v395 = vunpack.c.h.s8.bf16 %v219
    %v396 = vunpack.c.h.s8.bf16 %v220
    %v397 = vunpack.c.h.s8.bf16 %v221
    %v398 = vunpack.c.l.s8.bf16 %v222
    %v399 = vunpack.c.l.s8.bf16 %v223
    %v400 = vunpack.c.l.s8.bf16 %v224
    %v401 = vunpack.c.l.s8.bf16 %v225
    %v402 = vunpack.c.h.s8.bf16 %v222
    %v403 = vunpack.c.h.s8.bf16 %v223
    %v404 = vunpack.c.h.s8.bf16 %v224
    %v405 = vunpack.c.h.s8.bf16 %v225
    %v406 = vunpack.c.l.s8.bf16 %v226
    %v407 = vunpack.c.l.s8.bf16 %v227
    %v408 = vunpack.c.l.s8.bf16 %v228
    %v409 = vunpack.c.l.s8.bf16 %v229
    %v410 = vunpack.c.h.s8.bf16 %v226
    %v411 = vunpack.c.h.s8.bf16 %v227
    %v412 = vunpack.c.h.s8.bf16 %v228
    %v413 = vunpack.c.h.s8.bf16 %v229
    %v414 = vunpack.c.l.s8.bf16 %v230
    %v415 = vunpack.c.l.s8.bf16 %v231
    %v416 = vunpack.c.l.s8.bf16 %v232
    %v417 = vunpack.c.l.s8.bf16 %v233
    %v418 = vunpack.c.h.s8.bf16 %v230
    %v419 = vunpack.c.h.s8.bf16 %v231
    %v420 = vunpack.c.h.s8.bf16 %v232
    %v421 = vunpack.c.h.s8.bf16 %v233
    %v422 = vunpack.c.l.s8.bf16 %v234
    %v423 = vunpack.c.l.s8.bf16 %v235
    %v424 = vunpack.c.l.s8.bf16 %v236
    %v425 = vunpack.c.l.s8.bf16 %v237
    %v426 = vunpack.c.h.s8.bf16 %v234
    %v427 = vunpack.c.h.s8.bf16 %v235
    %v428 = vunpack.c.h.s8.bf16 %v236
    %v429 = vunpack.c.h.s8.bf16 %v237
    %v430 = vunpack.c.l.s8.bf16 %v238
    %v431 = vunpack.c.l.s8.bf16 %v239
    %v432 = vunpack.c.l.s8.bf16 %v240
    %v433 = vunpack.c.l.s8.bf16 %v241
    %v434 = vunpack.c.h.s8.bf16 %v238
    %v435 = vunpack.c.h.s8.bf16 %v239
    %v436 = vunpack.c.h.s8.bf16 %v240
    %v437 = vunpack.c.h.s8.bf16 %v241
    %v438 = vunpack.c.l.s8.bf16 %v242
    %v439 = vunpack.c.l.s8.bf16 %v243
    %v440 = vunpack.c.l.s8.bf16 %v244
    %v441 = vunpack.c.l.s8.bf16 %v245
    %v442 = vunpack.c.h.s8.bf16 %v242
    %v443 = vunpack.c.h.s8.bf16 %v243
    %v444 = vunpack.c.h.s8.bf16 %v244
    %v445 = vunpack.c.h.s8.bf16 %v245
    %v446 = vunpack.c.l.s8.bf16 %v246
    %v447 = vunpack.c.l.s8.bf16 %v247
    %v448 = vunpack.c.l.s8.bf16 %v248
    %v449 = vunpack.c.l.s8.bf16 %v249
    %v450 = vunpack.c.h.s8.bf16 %v246
    %v451 = vunpack.c.h.s8.bf16 %v247
    %v452 = vunpack.c.h.s8.bf16 %v248
    %v453 = vunpack.c.h.s8.bf16 %v249
    %v454 = vunpack.c.l.s8.bf16 %v250
    %v455 = vunpack.c.l.s8.bf16 %v251
    %v456 = vunpack.c.l.s8.bf16 %v252
    %v457 = vunpack.c.l.s8.bf16 %v253
    %v458 = vunpack.c.h.s8.bf16 %v250
    %v459 = vunpack.c.h.s8.bf16 %v251
    %v460 = vunpack.c.h.s8.bf16 %v252
    %v461 = vunpack.c.h.s8.bf16 %v253
    %v462 = vunpack.c.l.s8.bf16 %v254
    %v463 = vunpack.c.l.s8.bf16 %v255
    %v464 = vunpack.c.l.s8.bf16 %v256
    %v465 = vunpack.c.l.s8.bf16 %v257
    %v466 = vunpack.c.h.s8.bf16 %v254
    %v467 = vunpack.c.h.s8.bf16 %v255
    %v468 = vunpack.c.h.s8.bf16 %v256
    %v469 = vunpack.c.h.s8.bf16 %v257
    %v470 = vunpack.c.l.s8.bf16 %v258
    %v471 = vunpack.c.l.s8.bf16 %v259
    %v472 = vunpack.c.l.s8.bf16 %v260
    %v473 = vunpack.c.l.s8.bf16 %v261
    %v474 = vunpack.c.h.s8.bf16 %v258
    %v475 = vunpack.c.h.s8.bf16 %v259
    %v476 = vunpack.c.h.s8.bf16 %v260
    %v477 = vunpack.c.h.s8.bf16 %v261
    %v478 = vunpack.c.l.s8.bf16 %v262
    %v479 = vunpack.c.l.s8.bf16 %v263
    %v480 = vunpack.c.l.s8.bf16 %v264
    %v481 = vunpack.c.l.s8.bf16 %v265
    %v482 = vunpack.c.h.s8.bf16 %v262
    %v483 = vunpack.c.h.s8.bf16 %v263
    %v484 = vunpack.c.h.s8.bf16 %v264
    %v485 = vunpack.c.h.s8.bf16 %v265
    %v486 = vunpack.c.l.s8.bf16 %v266
    %v487 = vunpack.c.l.s8.bf16 %v267
    %v488 = vunpack.c.l.s8.bf16 %v268
    %v489 = vunpack.c.l.s8.bf16 %v269
    %v490 = vunpack.c.h.s8.bf16 %v266
    %v491 = vunpack.c.h.s8.bf16 %v267
    %v492 = vunpack.c.h.s8.bf16 %v268
    %v493 = vunpack.c.h.s8.bf16 %v269
    %v494 = vpack.c.bf16 %v151, %v151
    %v495 = vpack.c.bf16 %v152, %v152
    %v496 = vpack.c.bf16 %v153, %v153
    %v497 = vpack.c.bf16 %v154, %v154
    %v498 = vpack.c.bf16 %v155, %v155
    %v499 = vpack.c.bf16 %v156, %v156
    %v500 = vpack.c.bf16 %v157, %v157
    %501 = vmatprep.subr.bf16.mxu0 %v271
    %502 = vmatpush1.bf16.msra.mxu0 %v270
    %503 = vmatprep.subr.bf16.mxu0 %v275
    %504 = vmatpush1.bf16.msra.mxu0 %v274
    %505 = vmatprep.subr.bf16.mxu0 %v279
    %506 = vmatpush1.bf16.msra.mxu0 %v278
    %507 = vmatprep.subr.bf16.mxu0 %v283
    %508 = vmatpush1.bf16.msra.mxu0 %v282
    %509 = vmatprep.subr.bf16.mxu0 %v287
    %510 = vmatpush1.bf16.msra.mxu0 %v286
    %511 = vmatprep.subr.bf16.mxu0 %v291
    %512 = vmatpush1.bf16.msra.mxu0 %v290
    %513 = vmatprep.subr.bf16.mxu0 %v295
    %514 = vmatpush1.bf16.msra.mxu0 %v294
    %515 = vmatprep.subr.bf16.mxu0 %v299
    %516 = vmatpush1.bf16.msra.mxu0 %v298
    %517 = vmatprep.subr.bf16.mxu0 %v303
    %518 = vmatpush1.bf16.msra.mxu0 %v302
    %519 = vmatprep.subr.bf16.mxu0 %v307
    %520 = vmatpush1.bf16.msra.mxu0 %v306
    %521 = vmatprep.subr.bf16.mxu0 %v311
    %522 = vmatpush1.bf16.msra.mxu0 %v310
    %523 = vmatprep.subr.bf16.mxu0 %v315
    %524 = vmatpush1.bf16.msra.mxu0 %v314
    %525 = vmatprep.subr.bf16.mxu0 %v319
    %526 = vmatpush1.bf16.msra.mxu0 %v318
    %527 = vmatprep.subr.bf16.mxu0 %v323
    %528 = vmatpush1.bf16.msra.mxu0 %v322
    %529 = vmatprep.subr.bf16.mxu0 %v327
    %530 = vmatpush1.bf16.msra.mxu0 %v326
    %531 = vmatprep.subr.bf16.mxu0 %v331
    %532 = vmatpush1.bf16.msra.mxu0 %v330
    %533 = vmatprep.mubr.bf16.mxu0 %v495
    %534 = vmatmul.mubr.bf16.gmra.mrb[0].mxu0 %v494
    %v535 = vpop.f32.mrb[0].mxu0
    %v536 = vadd.f32 0.0, %v535
    %v537 = vpop.f32.mrb[0].mxu0
    %v538 = vadd.f32 0.0, %v537
    %v539 = vpop.f32.mrb[0].mxu0
    %v540 = vpop.f32.mrb[0].mxu0
    %541 = vdwg.mxu0
    %542 = vmatprep.subr.bf16.mxu0 %v335
    %543 = vmatpush1.bf16.msra.mxu0 %v334
    %544 = vmatprep.subr.bf16.mxu0 %v339
    %545 = vmatpush1.bf16.msra.mxu0 %v338
    %546 = vmatprep.subr.bf16.mxu0 %v343
    %547 = vmatpush1.bf16.msra.mxu0 %v342
    %548 = vmatprep.subr.bf16.mxu0 %v347
    %549 = vmatpush1.bf16.msra.mxu0 %v346
    %550 = vmatprep.subr.bf16.mxu0 %v351
    %551 = vmatpush1.bf16.msra.mxu0 %v350
    %552 = vmatprep.subr.bf16.mxu0 %v355
    %553 = vmatpush1.bf16.msra.mxu0 %v354
    %554 = vmatprep.subr.bf16.mxu0 %v359
    %555 = vmatpush1.bf16.msra.mxu0 %v358
    %556 = vmatprep.subr.bf16.mxu0 %v363
    %557 = vmatpush1.bf16.msra.mxu0 %v362
    %558 = vmatprep.subr.bf16.mxu0 %v367
    %559 = vmatpush1.bf16.msra.mxu0 %v366
    %560 = vmatprep.subr.bf16.mxu0 %v371
    %561 = vmatpush1.bf16.msra.mxu0 %v370
    %562 = vmatprep.subr.bf16.mxu0 %v375
    %563 = vmatpush1.bf16.msra.mxu0 %v374
    %564 = vmatprep.subr.bf16.mxu0 %v379
    %565 = vmatpush1.bf16.msra.mxu0 %v378
    %566 = vmatprep.subr.bf16.mxu0 %v383
    %567 = vmatpush1.bf16.msra.mxu0 %v382
    %568 = vmatprep.subr.bf16.mxu0 %v387
    %569 = vmatpush1.bf16.msra.mxu0 %v386
    %570 = vmatprep.subr.bf16.mxu0 %v391
    %571 = vmatpush1.bf16.msra.mxu0 %v390
    %572 = vmatprep.subr.bf16.mxu0 %v395
    %573 = vmatpush1.bf16.msra.mxu0 %v394
    %574 = vmatprep.mubr.bf16.mxu0 %v497
    %575 = vmatmul.mubr.bf16.gmra.mrb[0].mxu0 %v496
    %v576 = vpop.f32.mrb[0].mxu0
    %v577 = vadd.f32 %v536, %v576
    %v578 = vpop.f32.mrb[0].mxu0
    %v579 = vadd.f32 %v538, %v578
    %v580 = vpop.f32.mrb[0].mxu0
    %v581 = vpop.f32.mrb[0].mxu0
    %582 = vdwg.mxu0
    %583 = vmatprep.subr.bf16.mxu0 %v399
    %584 = vmatpush1.bf16.msra.mxu0 %v398
    %585 = vmatprep.subr.bf16.mxu0 %v403
    %586 = vmatpush1.bf16.msra.mxu0 %v402
    %587 = vmatprep.subr.bf16.mxu0 %v407
    %588 = vmatpush1.bf16.msra.mxu0 %v406
    %589 = vmatprep.subr.bf16.mxu0 %v411
    %590 = vmatpush1.bf16.msra.mxu0 %v410
    %591 = vmatprep.subr.bf16.mxu0 %v415
    %592 = vmatpush1.bf16.msra.mxu0 %v414
    %593 = vmatprep.subr.bf16.mxu0 %v419
    %594 = vmatpush1.bf16.msra.mxu0 %v418
    %595 = vmatprep.subr.bf16.mxu0 %v423
    %596 = vmatpush1.bf16.msra.mxu0 %v422
    %597 = vmatprep.subr.bf16.mxu0 %v427
    %598 = vmatpush1.bf16.msra.mxu0 %v426
    %599 = vmatprep.subr.bf16.mxu0 %v431
    %600 = vmatpush1.bf16.msra.mxu0 %v430
    %601 = vmatprep.subr.bf16.mxu0 %v435
    %602 = vmatpush1.bf16.msra.mxu0 %v434
    %603 = vmatprep.subr.bf16.mxu0 %v439
    %604 = vmatpush1.bf16.msra.mxu0 %v438
    %605 = vmatprep.subr.bf16.mxu0 %v443
    %606 = vmatpush1.bf16.msra.mxu0 %v442
    %607 = vmatprep.subr.bf16.mxu0 %v447
    %608 = vmatpush1.bf16.msra.mxu0 %v446
    %609 = vmatprep.subr.bf16.mxu0 %v451
    %610 = vmatpush1.bf16.msra.mxu0 %v450
    %611 = vmatprep.subr.bf16.mxu0 %v455
    %612 = vmatpush1.bf16.msra.mxu0 %v454
    %613 = vmatprep.subr.bf16.mxu0 %v459
    %614 = vmatpush1.bf16.msra.mxu0 %v458
    %615 = vmatprep.mubr.bf16.mxu0 %v499
    %616 = vmatmul.mubr.bf16.gmra.mrb[0].mxu0 %v498
    %v617 = vpop.f32.mrb[0].mxu0
    %v618 = vadd.f32 %v577, %v617
    %v619 = vpop.f32.mrb[0].mxu0
    %v620 = vadd.f32 %v579, %v619
    %v621 = vpop.f32.mrb[0].mxu0
    %v622 = vpop.f32.mrb[0].mxu0
    %623 = vdwg.mxu0
    %624 = vmatprep.subr.bf16.mxu0 %v463
    %625 = vmatpush1.bf16.msra.mxu0 %v462
    %626 = vmatprep.subr.bf16.mxu0 %v467
    %627 = vmatpush1.bf16.msra.mxu0 %v466
    %628 = vmatprep.subr.bf16.mxu0 %v471
    %629 = vmatpush1.bf16.msra.mxu0 %v470
    %630 = vmatprep.subr.bf16.mxu0 %v475
    %631 = vmatpush1.bf16.msra.mxu0 %v474
    %632 = vmatprep.subr.bf16.mxu0 %v479
    %633 = vmatpush1.bf16.msra.mxu0 %v478
    %634 = vmatprep.subr.bf16.mxu0 %v483
    %635 = vmatpush1.bf16.msra.mxu0 %v482
    %636 = vmatprep.subr.bf16.mxu0 %v487
    %637 = vmatpush1.bf16.msra.mxu0 %v486
    %638 = vmatprep.subr.bf16.mxu0 %v491
    %639 = vmatpush1.bf16.msra.mxu0 %v490
    %640 = vmatprep.subr.bf16.mxu0 0
    %641 = vmatpush1.bf16.msra.mxu0 0
    %642 = vmatprep.subr.bf16.mxu0 0
    %643 = vmatpush1.bf16.msra.mxu0 0
    %644 = vmatprep.subr.bf16.mxu0 0
    %645 = vmatpush1.bf16.msra.mxu0 0
    %646 = vmatprep.subr.bf16.mxu0 0
    %647 = vmatpush1.bf16.msra.mxu0 0
    %648 = vmatprep.subr.bf16.mxu0 0
    %649 = vmatpush1.bf16.msra.mxu0 0
    %650 = vmatprep.subr.bf16.mxu0 0
    %651 = vmatpush1.bf16.msra.mxu0 0
    %652 = vmatprep.subr.bf16.mxu0 0
    %653 = vmatpush1.bf16.msra.mxu0 0
    %654 = vmatprep.subr.bf16.mxu0 0
    %655 = vmatpush1.bf16.msra.mxu0 0
    %656 = vmatprep.mubr.bf16.mxu0 0
    %657 = vmatmul.mubr.bf16.gmra.mrb[0].mxu0 %v500
    %v658 = vpop.f32.mrb[0].mxu0
    %v659 = vadd.f32 %v618, %v658
    %v660 = vpop.f32.mrb[0].mxu0
    %v661 = vadd.f32 %v620, %v660
    %v662 = vpop.f32.mrb[0].mxu0
    %v663 = vpop.f32.mrb[0].mxu0
    %664 = vdwg.mxu0
    %665 = vmatprep.subr.bf16.mxu0 %v273
    %666 = vmatpush1.bf16.msra.mxu0 %v272
    %667 = vmatprep.subr.bf16.mxu0 %v277
    %668 = vmatpush1.bf16.msra.mxu0 %v276
    %669 = vmatprep.subr.bf16.mxu0 %v281
    %670 = vmatpush1.bf16.msra.mxu0 %v280
    %671 = vmatprep.subr.bf16.mxu0 %v285
    %672 = vmatpush1.bf16.msra.mxu0 %v284
    %673 = vmatprep.subr.bf16.mxu0 %v289
    %674 = vmatpush1.bf16.msra.mxu0 %v288
    %675 = vmatprep.subr.bf16.mxu0 %v293
    %676 = vmatpush1.bf16.msra.mxu0 %v292
    %677 = vmatprep.subr.bf16.mxu0 %v297
    %678 = vmatpush1.bf16.msra.mxu0 %v296
    %679 = vmatprep.subr.bf16.mxu0 %v301
    %680 = vmatpush1.bf16.msra.mxu0 %v300
    %681 = vmatprep.subr.bf16.mxu0 %v305
    %682 = vmatpush1.bf16.msra.mxu0 %v304
    %683 = vmatprep.subr.bf16.mxu0 %v309
    %684 = vmatpush1.bf16.msra.mxu0 %v308
    %685 = vmatprep.subr.bf16.mxu0 %v313
    %686 = vmatpush1.bf16.msra.mxu0 %v312
    %687 = vmatprep.subr.bf16.mxu0 %v317
    %688 = vmatpush1.bf16.msra.mxu0 %v316
    %689 = vmatprep.subr.bf16.mxu0 %v321
    %690 = vmatpush1.bf16.msra.mxu0 %v320
    %691 = vmatprep.subr.bf16.mxu0 %v325
    %692 = vmatpush1.bf16.msra.mxu0 %v324
    %693 = vmatprep.subr.bf16.mxu0 %v329
    %694 = vmatpush1.bf16.msra.mxu0 %v328
    %695 = vmatprep.subr.bf16.mxu0 %v333
    %696 = vmatpush1.bf16.msra.mxu0 %v332
    %697 = vmatprep.mubr.bf16.mxu0 %v495
    %698 = vmatmul.mubr.bf16.gmra.mrb[0].mxu0 %v494
    %v699 = vpop.f32.mrb[0].mxu0
    %v700 = vadd.f32 0.0, %v699
    %v701 = vpop.f32.mrb[0].mxu0
    %v702 = vadd.f32 0.0, %v701
    %v703 = vpop.f32.mrb[0].mxu0
    %v704 = vpop.f32.mrb[0].mxu0
    %705 = vdwg.mxu0
    %706 = vmatprep.subr.bf16.mxu0 %v337
    %707 = vmatpush1.bf16.msra.mxu0 %v336
    %708 = vmatprep.subr.bf16.mxu0 %v341
    %709 = vmatpush1.bf16.msra.mxu0 %v340
    %710 = vmatprep.subr.bf16.mxu0 %v345
    %711 = vmatpush1.bf16.msra.mxu0 %v344
    %712 = vmatprep.subr.bf16.mxu0 %v349
    %713 = vmatpush1.bf16.msra.mxu0 %v348
    %714 = vmatprep.subr.bf16.mxu0 %v353
    %715 = vmatpush1.bf16.msra.mxu0 %v352
    %716 = vmatprep.subr.bf16.mxu0 %v357
    %717 = vmatpush1.bf16.msra.mxu0 %v356
    %718 = vmatprep.subr.bf16.mxu0 %v361
    %719 = vmatpush1.bf16.msra.mxu0 %v360
    %720 = vmatprep.subr.bf16.mxu0 %v365
    %721 = vmatpush1.bf16.msra.mxu0 %v364
    %722 = vmatprep.subr.bf16.mxu0 %v369
    %723 = vmatpush1.bf16.msra.mxu0 %v368
    %724 = vmatprep.subr.bf16.mxu0 %v373
    %725 = vmatpush1.bf16.msra.mxu0 %v372
    %726 = vmatprep.subr.bf16.mxu0 %v377
    %727 = vmatpush1.bf16.msra.mxu0 %v376
    %728 = vmatprep.subr.bf16.mxu0 %v381
    %729 = vmatpush1.bf16.msra.mxu0 %v380
    %730 = vmatprep.subr.bf16.mxu0 %v385
    %731 = vmatpush1.bf16.msra.mxu0 %v384
    %732 = vmatprep.subr.bf16.mxu0 %v389
    %733 = vmatpush1.bf16.msra.mxu0 %v388
    %734 = vmatprep.subr.bf16.mxu0 %v393
    %735 = vmatpush1.bf16.msra.mxu0 %v392
    %736 = vmatprep.subr.bf16.mxu0 %v397
    %737 = vmatpush1.bf16.msra.mxu0 %v396
    %738 = vmatprep.mubr.bf16.mxu0 %v497
    %739 = vmatmul.mubr.bf16.gmra.mrb[0].mxu0 %v496
    %v740 = vpop.f32.mrb[0].mxu0
    %v741 = vadd.f32 %v700, %v740
    %v742 = vpop.f32.mrb[0].mxu0
    %v743 = vadd.f32 %v702, %v742
    %v744 = vpop.f32.mrb[0].mxu0
    %v745 = vpop.f32.mrb[0].mxu0
    %746 = vdwg.mxu0
    %747 = vmatprep.subr.bf16.mxu0 %v401
    %748 = vmatpush1.bf16.msra.mxu0 %v400
    %749 = vmatprep.subr.bf16.mxu0 %v405
    %750 = vmatpush1.bf16.msra.mxu0 %v404
    %751 = vmatprep.subr.bf16.mxu0 %v409
    %752 = vmatpush1.bf16.msra.mxu0 %v408
    %753 = vmatprep.subr.bf16.mxu0 %v413
    %754 = vmatpush1.bf16.msra.mxu0 %v412
    %755 = vmatprep.subr.bf16.mxu0 %v417
    %756 = vmatpush1.bf16.msra.mxu0 %v416
    %757 = vmatprep.subr.bf16.mxu0 %v421
    %758 = vmatpush1.bf16.msra.mxu0 %v420
    %759 = vmatprep.subr.bf16.mxu0 %v425
    %760 = vmatpush1.bf16.msra.mxu0 %v424
    %761 = vmatprep.subr.bf16.mxu0 %v429
    %762 = vmatpush1.bf16.msra.mxu0 %v428
    %763 = vmatprep.subr.bf16.mxu0 %v433
    %764 = vmatpush1.bf16.msra.mxu0 %v432
    %765 = vmatprep.subr.bf16.mxu0 %v437
    %766 = vmatpush1.bf16.msra.mxu0 %v436
    %767 = vmatprep.subr.bf16.mxu0 %v441
    %768 = vmatpush1.bf16.msra.mxu0 %v440
    %769 = vmatprep.subr.bf16.mxu0 %v445
    %770 = vmatpush1.bf16.msra.mxu0 %v444
    %771 = vmatprep.subr.bf16.mxu0 %v449
    %772 = vmatpush1.bf16.msra.mxu0 %v448
    %773 = vmatprep.subr.bf16.mxu0 %v453
    %774 = vmatpush1.bf16.msra.mxu0 %v452
    %775 = vmatprep.subr.bf16.mxu0 %v457
    %776 = vmatpush1.bf16.msra.mxu0 %v456
    %777 = vmatprep.subr.bf16.mxu0 %v461
    %778 = vmatpush1.bf16.msra.mxu0 %v460
    %779 = vmatprep.mubr.bf16.mxu0 %v499
    %780 = vmatmul.mubr.bf16.gmra.mrb[0].mxu0 %v498
    %v781 = vpop.f32.mrb[0].mxu0
    %v782 = vadd.f32 %v741, %v781
    %v783 = vpop.f32.mrb[0].mxu0
    %v784 = vadd.f32 %v743, %v783
    %v785 = vpop.f32.mrb[0].mxu0
    %v786 = vpop.f32.mrb[0].mxu0
    %787 = vdwg.mxu0
    %788 = vmatprep.subr.bf16.mxu0 %v465
    %789 = vmatpush1.bf16.msra.mxu0 %v464
    %790 = vmatprep.subr.bf16.mxu0 %v469
    %791 = vmatpush1.bf16.msra.mxu0 %v468
    %792 = vmatprep.subr.bf16.mxu0 %v473
    %793 = vmatpush1.bf16.msra.mxu0 %v472
    %794 = vmatprep.subr.bf16.mxu0 %v477
    %795 = vmatpush1.bf16.msra.mxu0 %v476
    %796 = vmatprep.subr.bf16.mxu0 %v481
    %797 = vmatpush1.bf16.msra.mxu0 %v480
    %798 = vmatprep.subr.bf16.mxu0 %v485
    %799 = vmatpush1.bf16.msra.mxu0 %v484
    %800 = vmatprep.subr.bf16.mxu0 %v489
    %801 = vmatpush1.bf16.msra.mxu0 %v488
    %802 = vmatprep.subr.bf16.mxu0 %v493
    %803 = vmatpush1.bf16.msra.mxu0 %v492
    %804 = vmatprep.subr.bf16.mxu0 0
    %805 = vmatpush1.bf16.msra.mxu0 0
    %806 = vmatprep.subr.bf16.mxu0 0
    %807 = vmatpush1.bf16.msra.mxu0 0
    %808 = vmatprep.subr.bf16.mxu0 0
    %809 = vmatpush1.bf16.msra.mxu0 0
    %810 = vmatprep.subr.bf16.mxu0 0
    %811 = vmatpush1.bf16.msra.mxu0 0
    %812 = vmatprep.subr.bf16.mxu0 0
    %813 = vmatpush1.bf16.msra.mxu0 0
    %814 = vmatprep.subr.bf16.mxu0 0
    %815 = vmatpush1.bf16.msra.mxu0 0
    %816 = vmatprep.subr.bf16.mxu0 0
    %817 = vmatpush1.bf16.msra.mxu0 0
    %818 = vmatprep.subr.bf16.mxu0 0
    %819 = vmatpush1.bf16.msra.mxu0 0
    %820 = vmatprep.mubr.bf16.mxu0 0
    %821 = vmatmul.mubr.bf16.gmra.mrb[0].mxu0 %v500
    %v822 = vpop.f32.mrb[0].mxu0
    %v823 = vadd.f32 %v782, %v822
    %v824 = vpop.f32.mrb[0].mxu0
    %v825 = vadd.f32 %v784, %v824
    %v826 = vpop.f32.mrb[0].mxu0
    %v827 = vpop.f32.mrb[0].mxu0
    %828 = vdwg.mxu0
    %v829 = vld [vmem:[%s3] sm:$0xf]
    %v831 = vlaneseq
    %v832 = vshrl.u32 %v831, 7
    %v833 = vsub.s32 0, %v832
    %v834 = vrot.slane %v829, %v833
    %v835 = vlaneseq
    %v836 = vshrl.u32 %v835, 7
    %v837 = vsub.s32 1, %v836
    %v838 = vrot.slane %v829, %v837
    %v839 = vlaneseq
    %v840 = vshrl.u32 %v839, 7
    %v841 = vsub.s32 2, %v840
    %v842 = vrot.slane %v829, %v841
    %v843 = vlaneseq
    %v844 = vshrl.u32 %v843, 7
    %v845 = vsub.s32 3, %v844
    %v846 = vrot.slane %v829, %v845
    %v851 = vmul.f32 %v659, %v834
    %v852 = vmul.f32 %v661, %v838
    %v853 = vmul.f32 %v823, %v842
    %v854 = vmul.f32 %v825, %v846
    %v855 = vld [vmem:[%s4] sm:$0xf]
    %v857 = vlaneseq
    %v858 = vshrl.u32 %v857, 7
    %v859 = vsub.s32 0, %v858
    %v860 = vrot.slane %v855, %v859
    %v861 = vlaneseq
    %v862 = vshrl.u32 %v861, 7
    %v863 = vsub.s32 1, %v862
    %v864 = vrot.slane %v855, %v863
    %v865 = vlaneseq
    %v866 = vshrl.u32 %v865, 7
    %v867 = vsub.s32 2, %v866
    %v868 = vrot.slane %v855, %v867
    %v869 = vlaneseq
    %v870 = vshrl.u32 %v869, 7
    %v871 = vsub.s32 3, %v870
    %v872 = vrot.slane %v855, %v871
    %v877 = vadd.f32 %v851, %v860
    %v878 = vadd.f32 %v852, %v864
    %v879 = vadd.f32 %v853, %v868
    %v880 = vadd.f32 %v854, %v872
    %v881 = vmax.f32 %v877, 0.0
    %v882 = vmax.f32 %v878, 0.0
    %v883 = vmax.f32 %v879, 0.0
    %v884 = vmax.f32 %v880, 0.0
    %v885 = vand.u32 2147483647, %v877
    %v886 = vand.u32 2147483647, %v878
    %v887 = vand.u32 2147483647, %v879
    %v888 = vand.u32 2147483647, %v880
    %v889 = vsub.f32 0.0, %v885
    %v890 = vsub.f32 0.0, %v886
    %v891 = vsub.f32 0.0, %v887
    %v892 = vsub.f32 0.0, %v888
    %v893 = vmul.f32 %v889, 1.442695
    %v894 = vpow.pop %v893
    %v895 = vmul.f32 %v890, 1.442695
    %v896 = vpow.pop %v895
    %v897 = vmul.f32 %v891, 1.442695
    %v898 = vpow.pop %v897
    %v899 = vmul.f32 %v892, 1.442695
    %v900 = vpow.pop %v899
    %v901 = vadd.f32 %v894, 1.0
    %v902 = vadd.f32 %v896, 1.0
    %v903 = vadd.f32 %v898, 1.0
    %v904 = vadd.f32 %v900, 1.0
    %v905 = vlog2.pop %v901
    %v906 = vmul.f32 %v905, 0.6931472
    %v907 = vlog2.pop %v902
    %v908 = vmul.f32 %v907, 0.6931472
    %v909 = vlog2.pop %v903
    %v910 = vmul.f32 %v909, 0.6931472
    %v911 = vlog2.pop %v904
    %v912 = vmul.f32 %v911, 0.6931472
    %v913 = vadd.f32 %v881, %v906
    %v914 = vadd.f32 %v882, %v908
    %v915 = vadd.f32 %v883, %v910
    %v916 = vadd.f32 %v884, %v912
    %v917 = vld [vmem:[#allocation5] sm:$0xff]
    %v918 = vld [vmem:[#allocation5 + $0x8] sm:$0xff]
    %v919 = vld [vmem:[#allocation5 + $0x10] sm:$0xff]
    %v920 = vld [vmem:[#allocation5 + $0x18] sm:$0xff]
    %v921 = vld [vmem:[#allocation5 + $0x20] sm:$0xff]
    %v922 = vld [vmem:[#allocation5 + $0x28] sm:$0xff]
    %v923 = vld [vmem:[#allocation5 + $0x30] sm:$0xff]
    %v924 = vld [vmem:[#allocation5 + $0x38] sm:$0xff]
    %v925 = vld [vmem:[#allocation5 + $0x40] sm:$0xff]
    %v926 = vld [vmem:[#allocation5 + $0x48] sm:$0xff]
    %v927 = vld [vmem:[#allocation5 + $0x50] sm:$0xff]
    %v928 = vld [vmem:[#allocation5 + $0x58] sm:$0xff]
    %v929 = vld [vmem:[#allocation5 + $0x60] sm:$0xff]
    %v930 = vld [vmem:[#allocation5 + $0x68] sm:$0xff]
    %v931 = vld [vmem:[#allocation5 + $0x70] sm:$0xff]
    %v932 = vld [vmem:[#allocation5 + $0x78] sm:$0xff]
    %v933 = vld [vmem:[#allocation5 + $0x80] sm:$0xff]
    %v934 = vld [vmem:[#allocation5 + $0x88] sm:$0xff]
    %v935 = vld [vmem:[#allocation5 + $0x90] sm:$0xff]
    %v936 = vld [vmem:[#allocation5 + $0x98] sm:$0xff]
    %v937 = vld [vmem:[#allocation5 + $0xa0] sm:$0xff]
    %v938 = vld [vmem:[#allocation5 + $0xa8] sm:$0xff]
    %v939 = vld [vmem:[#allocation5 + $0xb0] sm:$0xff]
    %v940 = vld [vmem:[#allocation5 + $0xb8] sm:$0xff]
    %v941 = vld [vmem:[#allocation5 + $0xc0] sm:$0xff]
    %v942 = vld [vmem:[#allocation5 + $0xc8] sm:$0xff]
    %v943 = vld [vmem:[#allocation5 + $0xd0] sm:$0xff]
    %v944 = vld [vmem:[#allocation5 + $0xd8] sm:$0xff]
    %v945 = vld [vmem:[#allocation5 + $0xe0] sm:$0xff]
    %v946 = vld [vmem:[#allocation5 + $0xe8] sm:$0xff]
    %v947 = vld [vmem:[#allocation5 + $0xf0] sm:$0xff]
    %v948 = vld [vmem:[#allocation5 + $0xf8] sm:$0xff]
    %v949 = vld [vmem:[#allocation5 + $0x100] sm:$0xff]
    %v950 = vld [vmem:[#allocation5 + $0x108] sm:$0xff]
    %v951 = vld [vmem:[#allocation5 + $0x110] sm:$0xff]
    %v952 = vld [vmem:[#allocation5 + $0x118] sm:$0xff]
    %v953 = vld [vmem:[#allocation5 + $0x120] sm:$0xff]
    %v954 = vld [vmem:[#allocation5 + $0x128] sm:$0xff]
    %v955 = vld [vmem:[#allocation5 + $0x130] sm:$0xff]
    %v956 = vld [vmem:[#allocation5 + $0x138] sm:$0xff]
    %v957 = vld [vmem:[#allocation5 + $0x140] sm:$0xff]
    %v958 = vld [vmem:[#allocation5 + $0x148] sm:$0xff]
    %v959 = vld [vmem:[#allocation5 + $0x150] sm:$0xff]
    %v960 = vld [vmem:[#allocation5 + $0x158] sm:$0xff]
    %v961 = vld [vmem:[#allocation5 + $0x160] sm:$0xff]
    %v962 = vld [vmem:[#allocation5 + $0x168] sm:$0xff]
    %v963 = vld [vmem:[#allocation5 + $0x170] sm:$0xff]
    %v964 = vld [vmem:[#allocation5 + $0x178] sm:$0xff]
    %v965 = vld [vmem:[#allocation5 + $0x180] sm:$0xff]
    %v966 = vld [vmem:[#allocation5 + $0x188] sm:$0xff]
    %v967 = vld [vmem:[#allocation5 + $0x190] sm:$0xff]
    %v968 = vld [vmem:[#allocation5 + $0x198] sm:$0xff]
    %v969 = vld [vmem:[#allocation5 + $0x1a0] sm:$0xff]
    %v970 = vld [vmem:[#allocation5 + $0x1a8] sm:$0xff]
    %v971 = vld [vmem:[#allocation5 + $0x1b0] sm:$0xff]
    %v972 = vld [vmem:[#allocation5 + $0x1b8] sm:$0xff]
    %v973 = vld [vmem:[#allocation5 + $0x1c0] sm:$0xff]
    %v974 = vld [vmem:[#allocation5 + $0x1c8] sm:$0xff]
    %v975 = vld [vmem:[#allocation5 + $0x1d0] sm:$0xff]
    %v976 = vld [vmem:[#allocation5 + $0x1d8] sm:$0xff]
    %v977 = vld [vmem:[#allocation5 + $0x1e0] sm:$0xff]
    %v978 = vld [vmem:[#allocation5 + $0x1e8] sm:$0xff]
    %v979 = vld [vmem:[#allocation5 + $0x1f0] sm:$0xff]
    %v980 = vld [vmem:[#allocation5 + $0x1f8] sm:$0xff]
    %v981 = vunpack.c.l.s8.bf16 %v917
    %v982 = vunpack.c.l.s8.bf16 %v918
    %v983 = vunpack.c.l.s8.bf16 %v919
    %v984 = vunpack.c.l.s8.bf16 %v920
    %v985 = vunpack.c.h.s8.bf16 %v917
    %v986 = vunpack.c.h.s8.bf16 %v918
    %v987 = vunpack.c.h.s8.bf16 %v919
    %v988 = vunpack.c.h.s8.bf16 %v920
    %v989 = vunpack.c.l.s8.bf16 %v921
    %v990 = vunpack.c.l.s8.bf16 %v922
    %v991 = vunpack.c.l.s8.bf16 %v923
    %v992 = vunpack.c.l.s8.bf16 %v924
    %v993 = vunpack.c.h.s8.bf16 %v921
    %v994 = vunpack.c.h.s8.bf16 %v922
    %v995 = vunpack.c.h.s8.bf16 %v923
    %v996 = vunpack.c.h.s8.bf16 %v924
    %v997 = vunpack.c.l.s8.bf16 %v925
    %v998 = vunpack.c.l.s8.bf16 %v926
    %v999 = vunpack.c.l.s8.bf16 %v927
    %v1000 = vunpack.c.l.s8.bf16 %v928
    %v1001 = vunpack.c.h.s8.bf16 %v925
    %v1002 = vunpack.c.h.s8.bf16 %v926
    %v1003 = vunpack.c.h.s8.bf16 %v927
    %v1004 = vunpack.c.h.s8.bf16 %v928
    %v1005 = vunpack.c.l.s8.bf16 %v929
    %v1006 = vunpack.c.l.s8.bf16 %v930
    %v1007 = vunpack.c.l.s8.bf16 %v931
    %v1008 = vunpack.c.l.s8.bf16 %v932
    %v1009 = vunpack.c.h.s8.bf16 %v929
    %v1010 = vunpack.c.h.s8.bf16 %v930
    %v1011 = vunpack.c.h.s8.bf16 %v931
    %v1012 = vunpack.c.h.s8.bf16 %v932
    %v1013 = vunpack.c.l.s8.bf16 %v933
    %v1014 = vunpack.c.l.s8.bf16 %v934
    %v1015 = vunpack.c.l.s8.bf16 %v935
    %v1016 = vunpack.c.l.s8.bf16 %v936
    %v1017 = vunpack.c.h.s8.bf16 %v933
    %v1018 = vunpack.c.h.s8.bf16 %v934
    %v1019 = vunpack.c.h.s8.bf16 %v935
    %v1020 = vunpack.c.h.s8.bf16 %v936
    %v1021 = vunpack.c.l.s8.bf16 %v937
    %v1022 = vunpack.c.l.s8.bf16 %v938
    %v1023 = vunpack.c.l.s8.bf16 %v939
    %v1024 = vunpack.c.l.s8.bf16 %v940
    %v1025 = vunpack.c.h.s8.bf16 %v937
    %v1026 = vunpack.c.h.s8.bf16 %v938
    %v1027 = vunpack.c.h.s8.bf16 %v939
    %v1028 = vunpack.c.h.s8.bf16 %v940
    %v1029 = vunpack.c.l.s8.bf16 %v941
    %v1030 = vunpack.c.l.s8.bf16 %v942
    %v1031 = vunpack.c.l.s8.bf16 %v943
    %v1032 = vunpack.c.l.s8.bf16 %v944
    %v1033 = vunpack.c.h.s8.bf16 %v941
    %v1034 = vunpack.c.h.s8.bf16 %v942
    %v1035 = vunpack.c.h.s8.bf16 %v943
    %v1036 = vunpack.c.h.s8.bf16 %v944
    %v1037 = vunpack.c.l.s8.bf16 %v945
    %v1038 = vunpack.c.l.s8.bf16 %v946
    %v1039 = vunpack.c.l.s8.bf16 %v947
    %v1040 = vunpack.c.l.s8.bf16 %v948
    %v1041 = vunpack.c.h.s8.bf16 %v945
    %v1042 = vunpack.c.h.s8.bf16 %v946
    %v1043 = vunpack.c.h.s8.bf16 %v947
    %v1044 = vunpack.c.h.s8.bf16 %v948
    %v1045 = vunpack.c.l.s8.bf16 %v949
    %v1046 = vunpack.c.l.s8.bf16 %v950
    %v1047 = vunpack.c.l.s8.bf16 %v951
    %v1048 = vunpack.c.l.s8.bf16 %v952
    %v1049 = vunpack.c.h.s8.bf16 %v949
    %v1050 = vunpack.c.h.s8.bf16 %v950
    %v1051 = vunpack.c.h.s8.bf16 %v951
    %v1052 = vunpack.c.h.s8.bf16 %v952
    %v1053 = vunpack.c.l.s8.bf16 %v953
    %v1054 = vunpack.c.l.s8.bf16 %v954
    %v1055 = vunpack.c.l.s8.bf16 %v955
    %v1056 = vunpack.c.l.s8.bf16 %v956
    %v1057 = vunpack.c.h.s8.bf16 %v953
    %v1058 = vunpack.c.h.s8.bf16 %v954
    %v1059 = vunpack.c.h.s8.bf16 %v955
    %v1060 = vunpack.c.h.s8.bf16 %v956
    %v1061 = vunpack.c.l.s8.bf16 %v957
    %v1062 = vunpack.c.l.s8.bf16 %v958
    %v1063 = vunpack.c.l.s8.bf16 %v959
    %v1064 = vunpack.c.l.s8.bf16 %v960
    %v1065 = vunpack.c.h.s8.bf16 %v957
    %v1066 = vunpack.c.h.s8.bf16 %v958
    %v1067 = vunpack.c.h.s8.bf16 %v959
    %v1068 = vunpack.c.h.s8.bf16 %v960
    %v1069 = vunpack.c.l.s8.bf16 %v961
    %v1070 = vunpack.c.l.s8.bf16 %v962
    %v1071 = vunpack.c.l.s8.bf16 %v963
    %v1072 = vunpack.c.l.s8.bf16 %v964
    %v1073 = vunpack.c.h.s8.bf16 %v961
    %v1074 = vunpack.c.h.s8.bf16 %v962
    %v1075 = vunpack.c.h.s8.bf16 %v963
    %v1076 = vunpack.c.h.s8.bf16 %v964
    %v1077 = vunpack.c.l.s8.bf16 %v965
    %v1078 = vunpack.c.l.s8.bf16 %v966
    %v1079 = vunpack.c.l.s8.bf16 %v967
    %v1080 = vunpack.c.l.s8.bf16 %v968
    %v1081 = vunpack.c.h.s8.bf16 %v965
    %v1082 = vunpack.c.h.s8.bf16 %v966
    %v1083 = vunpack.c.h.s8.bf16 %v967
    %v1084 = vunpack.c.h.s8.bf16 %v968
    %v1085 = vunpack.c.l.s8.bf16 %v969
    %v1086 = vunpack.c.l.s8.bf16 %v970
    %v1087 = vunpack.c.l.s8.bf16 %v971
    %v1088 = vunpack.c.l.s8.bf16 %v972
    %v1089 = vunpack.c.h.s8.bf16 %v969
    %v1090 = vunpack.c.h.s8.bf16 %v970
    %v1091 = vunpack.c.h.s8.bf16 %v971
    %v1092 = vunpack.c.h.s8.bf16 %v972
    %v1093 = vunpack.c.l.s8.bf16 %v973
    %v1094 = vunpack.c.l.s8.bf16 %v974
    %v1095 = vunpack.c.l.s8.bf16 %v975
    %v1096 = vunpack.c.l.s8.bf16 %v976
    %v1097 = vunpack.c.h.s8.bf16 %v973
    %v1098 = vunpack.c.h.s8.bf16 %v974
    %v1099 = vunpack.c.h.s8.bf16 %v975
    %v1100 = vunpack.c.h.s8.bf16 %v976
    %v1101 = vunpack.c.l.s8.bf16 %v977
    %v1102 = vunpack.c.l.s8.bf16 %v978
    %v1103 = vunpack.c.l.s8.bf16 %v979
    %v1104 = vunpack.c.l.s8.bf16 %v980
    %v1105 = vunpack.c.h.s8.bf16 %v977
    %v1106 = vunpack.c.h.s8.bf16 %v978
    %v1107 = vunpack.c.h.s8.bf16 %v979
    %v1108 = vunpack.c.h.s8.bf16 %v980
    %v1109 = vpack.c.bf16 %v913, %v913
    %v1110 = vpack.c.bf16 %v914, %v914
    %v1111 = vpack.c.bf16 %v915, %v915
    %v1112 = vpack.c.bf16 %v916, %v916
    %1113 = vmatprep.subr.bf16.mxu0 %v982
    %1114 = vmatpush1.bf16.msra.mxu0 %v981
    %1115 = vmatprep.subr.bf16.mxu0 %v986
    %1116 = vmatpush1.bf16.msra.mxu0 %v985
    %1117 = vmatprep.subr.bf16.mxu0 %v990
    %1118 = vmatpush1.bf16.msra.mxu0 %v989
    %1119 = vmatprep.subr.bf16.mxu0 %v994
    %1120 = vmatpush1.bf16.msra.mxu0 %v993
    %1121 = vmatprep.subr.bf16.mxu0 %v998
    %1122 = vmatpush1.bf16.msra.mxu0 %v997
    %1123 = vmatprep.subr.bf16.mxu0 %v1002
    %1124 = vmatpush1.bf16.msra.mxu0 %v1001
    %1125 = vmatprep.subr.bf16.mxu0 %v1006
    %1126 = vmatpush1.bf16.msra.mxu0 %v1005
    %1127 = vmatprep.subr.bf16.mxu0 %v1010
    %1128 = vmatpush1.bf16.msra.mxu0 %v1009
    %1129 = vmatprep.subr.bf16.mxu0 %v1014
    %1130 = vmatpush1.bf16.msra.mxu0 %v1013
    %1131 = vmatprep.subr.bf16.mxu0 %v1018
    %1132 = vmatpush1.bf16.msra.mxu0 %v1017
    %1133 = vmatprep.subr.bf16.mxu0 %v1022
    %1134 = vmatpush1.bf16.msra.mxu0 %v1021
    %1135 = vmatprep.subr.bf16.mxu0 %v1026
    %1136 = vmatpush1.bf16.msra.mxu0 %v1025
    %1137 = vmatprep.subr.bf16.mxu0 %v1030
    %1138 = vmatpush1.bf16.msra.mxu0 %v1029
    %1139 = vmatprep.subr.bf16.mxu0 %v1034
    %1140 = vmatpush1.bf16.msra.mxu0 %v1033
    %1141 = vmatprep.subr.bf16.mxu0 %v1038
    %1142 = vmatpush1.bf16.msra.mxu0 %v1037
    %1143 = vmatprep.subr.bf16.mxu0 %v1042
    %1144 = vmatpush1.bf16.msra.mxu0 %v1041
    %1145 = vmatprep.mubr.bf16.mxu0 %v1110
    %1146 = vmatmul.mubr.bf16.gmra.mrb[0].mxu0 %v1109
    %v1147 = vpop.f32.mrb[0].mxu0
    %v1148 = vadd.f32 0.0, %v1147
    %v1149 = vpop.f32.mrb[0].mxu0
    %v1150 = vadd.f32 0.0, %v1149
    %v1151 = vpop.f32.mrb[0].mxu0
    %v1152 = vpop.f32.mrb[0].mxu0
    %1153 = vdwg.mxu0
    %1154 = vmatprep.subr.bf16.mxu0 %v1046
    %1155 = vmatpush1.bf16.msra.mxu0 %v1045
    %1156 = vmatprep.subr.bf16.mxu0 %v1050
    %1157 = vmatpush1.bf16.msra.mxu0 %v1049
    %1158 = vmatprep.subr.bf16.mxu0 %v1054
    %1159 = vmatpush1.bf16.msra.mxu0 %v1053
    %1160 = vmatprep.subr.bf16.mxu0 %v1058
    %1161 = vmatpush1.bf16.msra.mxu0 %v1057
    %1162 = vmatprep.subr.bf16.mxu0 %v1062
    %1163 = vmatpush1.bf16.msra.mxu0 %v1061
    %1164 = vmatprep.subr.bf16.mxu0 %v1066
    %1165 = vmatpush1.bf16.msra.mxu0 %v1065
    %1166 = vmatprep.subr.bf16.mxu0 %v1070
    %1167 = vmatpush1.bf16.msra.mxu0 %v1069
    %1168 = vmatprep.subr.bf16.mxu0 %v1074
    %1169 = vmatpush1.bf16.msra.mxu0 %v1073
    %1170 = vmatprep.subr.bf16.mxu0 %v1078
    %1171 = vmatpush1.bf16.msra.mxu0 %v1077
    %1172 = vmatprep.subr.bf16.mxu0 %v1082
    %1173 = vmatpush1.bf16.msra.mxu0 %v1081
    %1174 = vmatprep.subr.bf16.mxu0 %v1086
    %1175 = vmatpush1.bf16.msra.mxu0 %v1085
    %1176 = vmatprep.subr.bf16.mxu0 %v1090
    %1177 = vmatpush1.bf16.msra.mxu0 %v1089
    %1178 = vmatprep.subr.bf16.mxu0 %v1094
    %1179 = vmatpush1.bf16.msra.mxu0 %v1093
    %1180 = vmatprep.subr.bf16.mxu0 %v1098
    %1181 = vmatpush1.bf16.msra.mxu0 %v1097
    %1182 = vmatprep.subr.bf16.mxu0 %v1102
    %1183 = vmatpush1.bf16.msra.mxu0 %v1101
    %1184 = vmatprep.subr.bf16.mxu0 %v1106
    %1185 = vmatpush1.bf16.msra.mxu0 %v1105
    %1186 = vmatprep.mubr.bf16.mxu0 %v1112
    %1187 = vmatmul.mubr.bf16.gmra.mrb[0].mxu0 %v1111
    %v1188 = vpop.f32.mrb[0].mxu0
    %v1189 = vadd.f32 %v1148, %v1188
    %v1190 = vpop.f32.mrb[0].mxu0
    %v1191 = vadd.f32 %v1150, %v1190
    %v1192 = vpop.f32.mrb[0].mxu0
    %v1193 = vpop.f32.mrb[0].mxu0
    %1194 = vdwg.mxu0
    %1195 = vmatprep.subr.bf16.mxu0 %v984
    %1196 = vmatpush1.bf16.msra.mxu0 %v983
    %1197 = vmatprep.subr.bf16.mxu0 %v988
    %1198 = vmatpush1.bf16.msra.mxu0 %v987
    %1199 = vmatprep.subr.bf16.mxu0 %v992
    %1200 = vmatpush1.bf16.msra.mxu0 %v991
    %1201 = vmatprep.subr.bf16.mxu0 %v996
    %1202 = vmatpush1.bf16.msra.mxu0 %v995
    %1203 = vmatprep.subr.bf16.mxu0 %v1000
    %1204 = vmatpush1.bf16.msra.mxu0 %v999
    %1205 = vmatprep.subr.bf16.mxu0 %v1004
    %1206 = vmatpush1.bf16.msra.mxu0 %v1003
    %1207 = vmatprep.subr.bf16.mxu0 %v1008
    %1208 = vmatpush1.bf16.msra.mxu0 %v1007
    %1209 = vmatprep.subr.bf16.mxu0 %v1012
    %1210 = vmatpush1.bf16.msra.mxu0 %v1011
    %1211 = vmatprep.subr.bf16.mxu0 %v1016
    %1212 = vmatpush1.bf16.msra.mxu0 %v1015
    %1213 = vmatprep.subr.bf16.mxu0 %v1020
    %1214 = vmatpush1.bf16.msra.mxu0 %v1019
    %1215 = vmatprep.subr.bf16.mxu0 %v1024
    %1216 = vmatpush1.bf16.msra.mxu0 %v1023
    %1217 = vmatprep.subr.bf16.mxu0 %v1028
    %1218 = vmatpush1.bf16.msra.mxu0 %v1027
    %1219 = vmatprep.subr.bf16.mxu0 %v1032
    %1220 = vmatpush1.bf16.msra.mxu0 %v1031
    %1221 = vmatprep.subr.bf16.mxu0 %v1036
    %1222 = vmatpush1.bf16.msra.mxu0 %v1035
    %1223 = vmatprep.subr.bf16.mxu0 %v1040
    %1224 = vmatpush1.bf16.msra.mxu0 %v1039
    %1225 = vmatprep.subr.bf16.mxu0 %v1044
    %1226 = vmatpush1.bf16.msra.mxu0 %v1043
    %1227 = vmatprep.mubr.bf16.mxu0 %v1110
    %1228 = vmatmul.mubr.bf16.gmra.mrb[0].mxu0 %v1109
    %v1229 = vpop.f32.mrb[0].mxu0
    %v1230 = vadd.f32 0.0, %v1229
    %v1231 = vpop.f32.mrb[0].mxu0
    %v1232 = vadd.f32 0.0, %v1231
    %v1233 = vpop.f32.mrb[0].mxu0
    %v1234 = vpop.f32.mrb[0].mxu0
    %1235 = vdwg.mxu0
    %1236 = vmatprep.subr.bf16.mxu0 %v1048
    %1237 = vmatpush1.bf16.msra.mxu0 %v1047
    %1238 = vmatprep.subr.bf16.mxu0 %v1052
    %1239 = vmatpush1.bf16.msra.mxu0 %v1051
    %1240 = vmatprep.subr.bf16.mxu0 %v1056
    %1241 = vmatpush1.bf16.msra.mxu0 %v1055
    %1242 = vmatprep.subr.bf16.mxu0 %v1060
    %1243 = vmatpush1.bf16.msra.mxu0 %v1059
    %1244 = vmatprep.subr.bf16.mxu0 %v1064
    %1245 = vmatpush1.bf16.msra.mxu0 %v1063
    %1246 = vmatprep.subr.bf16.mxu0 %v1068
    %1247 = vmatpush1.bf16.msra.mxu0 %v1067
    %1248 = vmatprep.subr.bf16.mxu0 %v1072
    %1249 = vmatpush1.bf16.msra.mxu0 %v1071
    %1250 = vmatprep.subr.bf16.mxu0 %v1076
    %1251 = vmatpush1.bf16.msra.mxu0 %v1075
    %1252 = vmatprep.subr.bf16.mxu0 %v1080
    %1253 = vmatpush1.bf16.msra.mxu0 %v1079
    %1254 = vmatprep.subr.bf16.mxu0 %v1084
    %1255 = vmatpush1.bf16.msra.mxu0 %v1083
    %1256 = vmatprep.subr.bf16.mxu0 %v1088
    %1257 = vmatpush1.bf16.msra.mxu0 %v1087
    %1258 = vmatprep.subr.bf16.mxu0 %v1092
    %1259 = vmatpush1.bf16.msra.mxu0 %v1091
    %1260 = vmatprep.subr.bf16.mxu0 %v1096
    %1261 = vmatpush1.bf16.msra.mxu0 %v1095
    %1262 = vmatprep.subr.bf16.mxu0 %v1100
    %1263 = vmatpush1.bf16.msra.mxu0 %v1099
    %1264 = vmatprep.subr.bf16.mxu0 %v1104
    %1265 = vmatpush1.bf16.msra.mxu0 %v1103
    %1266 = vmatprep.subr.bf16.mxu0 %v1108
    %1267 = vmatpush1.bf16.msra.mxu0 %v1107
    %1268 = vmatprep.mubr.bf16.mxu0 %v1112
    %1269 = vmatmul.mubr.bf16.gmra.mrb[0].mxu0 %v1111
    %v1270 = vpop.f32.mrb[0].mxu0
    %v1271 = vadd.f32 %v1230, %v1270
    %v1272 = vpop.f32.mrb[0].mxu0
    %v1273 = vadd.f32 %v1232, %v1272
    %v1274 = vpop.f32.mrb[0].mxu0
    %v1275 = vpop.f32.mrb[0].mxu0
    %1276 = vdwg.mxu0
    %v1277 = vld [vmem:[%s6] sm:$0xf]
    %v1279 = vlaneseq
    %v1280 = vshrl.u32 %v1279, 7
    %v1281 = vsub.s32 0, %v1280
    %v1282 = vrot.slane %v1277, %v1281
    %v1283 = vlaneseq
    %v1284 = vshrl.u32 %v1283, 7
    %v1285 = vsub.s32 1, %v1284
    %v1286 = vrot.slane %v1277, %v1285
    %v1287 = vlaneseq
    %v1288 = vshrl.u32 %v1287, 7
    %v1289 = vsub.s32 2, %v1288
    %v1290 = vrot.slane %v1277, %v1289
    %v1291 = vlaneseq
    %v1292 = vshrl.u32 %v1291, 7
    %v1293 = vsub.s32 3, %v1292
    %v1294 = vrot.slane %v1277, %v1293
    %v1299 = vmul.f32 %v1189, %v1282
    %v1300 = vmul.f32 %v1191, %v1286
    %v1301 = vmul.f32 %v1271, %v1290
    %v1302 = vmul.f32 %v1273, %v1294
    %v1303 = vld [vmem:[%s7] sm:$0xf]
    %v1305 = vlaneseq
    %v1306 = vshrl.u32 %v1305, 7
    %v1307 = vsub.s32 0, %v1306
    %v1308 = vrot.slane %v1303, %v1307
    %v1309 = vlaneseq
    %v1310 = vshrl.u32 %v1309, 7
    %v1311 = vsub.s32 1, %v1310
    %v1312 = vrot.slane %v1303, %v1311
    %v1313 = vlaneseq
    %v1314 = vshrl.u32 %v1313, 7
    %v1315 = vsub.s32 2, %v1314
    %v1316 = vrot.slane %v1303, %v1315
    %v1317 = vlaneseq
    %v1318 = vshrl.u32 %v1317, 7
    %v1319 = vsub.s32 3, %v1318
    %v1320 = vrot.slane %v1303, %v1319
    %v1325 = vadd.f32 %v1299, %v1308
    %v1326 = vadd.f32 %v1300, %v1312
    %v1327 = vadd.f32 %v1301, %v1316
    %v1328 = vadd.f32 %v1302, %v1320
    %v1329 = vmax.f32 %v1325, 0.0
    %v1330 = vmax.f32 %v1326, 0.0
    %v1331 = vmax.f32 %v1327, 0.0
    %v1332 = vmax.f32 %v1328, 0.0
    %v1333 = vand.u32 2147483647, %v1325
    %v1334 = vand.u32 2147483647, %v1326
    %v1335 = vand.u32 2147483647, %v1327
    %v1336 = vand.u32 2147483647, %v1328
    %v1337 = vsub.f32 0.0, %v1333
    %v1338 = vsub.f32 0.0, %v1334
    %v1339 = vsub.f32 0.0, %v1335
    %v1340 = vsub.f32 0.0, %v1336
    %v1341 = vmul.f32 %v1337, 1.442695
    %v1342 = vpow.pop %v1341
    %v1343 = vmul.f32 %v1338, 1.442695
    %v1344 = vpow.pop %v1343
    %v1345 = vmul.f32 %v1339, 1.442695
    %v1346 = vpow.pop %v1345
    %v1347 = vmul.f32 %v1340, 1.442695
    %v1348 = vpow.pop %v1347
    %v1349 = vadd.f32 %v1342, 1.0
    %v1350 = vadd.f32 %v1344, 1.0
    %v1351 = vadd.f32 %v1346, 1.0
    %v1352 = vadd.f32 %v1348, 1.0
    %v1353 = vlog2.pop %v1349
    %v1354 = vmul.f32 %v1353, 0.6931472
    %v1355 = vlog2.pop %v1350
    %v1356 = vmul.f32 %v1355, 0.6931472
    %v1357 = vlog2.pop %v1351
    %v1358 = vmul.f32 %v1357, 0.6931472
    %v1359 = vlog2.pop %v1352
    %v1360 = vmul.f32 %v1359, 0.6931472
    %v1361 = vadd.f32 %v1329, %v1354
    %v1362 = vadd.f32 %v1330, %v1356
    %v1363 = vadd.f32 %v1331, %v1358
    %v1364 = vadd.f32 %v1332, %v1360
    %v1365 = vld [vmem:[%s8] sm:$0xff]
    %v1366 = vld [vmem:[%s8 + $0x8] sm:$0xff]
    %v1367 = vld [vmem:[%s8 + $0x10] sm:$0xff]
    %v1368 = vld [vmem:[%s8 + $0x18] sm:$0xff]
    %v1369 = vld [vmem:[%s8 + $0x20] sm:$0xff]
    %v1370 = vld [vmem:[%s8 + $0x28] sm:$0xff]
    %v1371 = vld [vmem:[%s8 + $0x30] sm:$0xff]
    %v1372 = vld [vmem:[%s8 + $0x38] sm:$0xff]
    %v1373 = vld [vmem:[%s8 + $0x40] sm:$0xff]
    %v1374 = vld [vmem:[%s8 + $0x48] sm:$0xff]
    %v1375 = vld [vmem:[%s8 + $0x50] sm:$0xff]
    %v1376 = vld [vmem:[%s8 + $0x58] sm:$0xff]
    %v1377 = vld [vmem:[%s8 + $0x60] sm:$0xff]
    %v1378 = vld [vmem:[%s8 + $0x68] sm:$0xff]
    %v1379 = vld [vmem:[%s8 + $0x70] sm:$0xff]
    %v1380 = vld [vmem:[%s8 + $0x78] sm:$0xff]
    %v1381 = vld [vmem:[%s8 + $0x80] sm:$0xff]
    %v1382 = vld [vmem:[%s8 + $0x88] sm:$0xff]
    %v1383 = vld [vmem:[%s8 + $0x90] sm:$0xff]
    %v1384 = vld [vmem:[%s8 + $0x98] sm:$0xff]
    %v1385 = vld [vmem:[%s8 + $0xa0] sm:$0xff]
    %v1386 = vld [vmem:[%s8 + $0xa8] sm:$0xff]
    %v1387 = vld [vmem:[%s8 + $0xb0] sm:$0xff]
    %v1388 = vld [vmem:[%s8 + $0xb8] sm:$0xff]
    %v1389 = vld [vmem:[%s8 + $0xc0] sm:$0xff]
    %v1390 = vld [vmem:[%s8 + $0xc8] sm:$0xff]
    %v1391 = vld [vmem:[%s8 + $0xd0] sm:$0xff]
    %v1392 = vld [vmem:[%s8 + $0xd8] sm:$0xff]
    %v1393 = vld [vmem:[%s8 + $0xe0] sm:$0xff]
    %v1394 = vld [vmem:[%s8 + $0xe8] sm:$0xff]
    %v1395 = vld [vmem:[%s8 + $0xf0] sm:$0xff]
    %v1396 = vld [vmem:[%s8 + $0xf8] sm:$0xff]
    %v1397 = vunpack.c.l.s8.bf16 %v1365
    %v1398 = vunpack.c.l.s8.bf16 %v1366
    %v1399 = vunpack.c.h.s8.bf16 %v1365
    %v1400 = vunpack.c.h.s8.bf16 %v1366
    %v1401 = vunpack.c.l.s8.bf16 %v1367
    %v1402 = vunpack.c.l.s8.bf16 %v1368
    %v1403 = vunpack.c.h.s8.bf16 %v1367
    %v1404 = vunpack.c.h.s8.bf16 %v1368
    %v1405 = vunpack.c.l.s8.bf16 %v1369
    %v1406 = vunpack.c.l.s8.bf16 %v1370
    %v1407 = vunpack.c.h.s8.bf16 %v1369
    %v1408 = vunpack.c.h.s8.bf16 %v1370
    %v1409 = vunpack.c.l.s8.bf16 %v1371
    %v1410 = vunpack.c.l.s8.bf16 %v1372
    %v1411 = vunpack.c.h.s8.bf16 %v1371
    %v1412 = vunpack.c.h.s8.bf16 %v1372
    %v1413 = vunpack.c.l.s8.bf16 %v1373
    %v1414 = vunpack.c.l.s8.bf16 %v1374
    %v1415 = vunpack.c.h.s8.bf16 %v1373
    %v1416 = vunpack.c.h.s8.bf16 %v1374
    %v1417 = vunpack.c.l.s8.bf16 %v1375
    %v1418 = vunpack.c.l.s8.bf16 %v1376
    %v1419 = vunpack.c.h.s8.bf16 %v1375
    %v1420 = vunpack.c.h.s8.bf16 %v1376
    %v1421 = vunpack.c.l.s8.bf16 %v1377
    %v1422 = vunpack.c.l.s8.bf16 %v1378
    %v1423 = vunpack.c.h.s8.bf16 %v1377
    %v1424 = vunpack.c.h.s8.bf16 %v1378
    %v1425 = vunpack.c.l.s8.bf16 %v1379
    %v1426 = vunpack.c.l.s8.bf16 %v1380
    %v1427 = vunpack.c.h.s8.bf16 %v1379
    %v1428 = vunpack.c.h.s8.bf16 %v1380
    %v1429 = vunpack.c.l.s8.bf16 %v1381
    %v1430 = vunpack.c.l.s8.bf16 %v1382
    %v1431 = vunpack.c.h.s8.bf16 %v1381
    %v1432 = vunpack.c.h.s8.bf16 %v1382
    %v1433 = vunpack.c.l.s8.bf16 %v1383
    %v1434 = vunpack.c.l.s8.bf16 %v1384
    %v1435 = vunpack.c.h.s8.bf16 %v1383
    %v1436 = vunpack.c.h.s8.bf16 %v1384
    %v1437 = vunpack.c.l.s8.bf16 %v1385
    %v1438 = vunpack.c.l.s8.bf16 %v1386
    %v1439 = vunpack.c.h.s8.bf16 %v1385
    %v1440 = vunpack.c.h.s8.bf16 %v1386
    %v1441 = vunpack.c.l.s8.bf16 %v1387
    %v1442 = vunpack.c.l.s8.bf16 %v1388
    %v1443 = vunpack.c.h.s8.bf16 %v1387
    %v1444 = vunpack.c.h.s8.bf16 %v1388
    %v1445 = vunpack.c.l.s8.bf16 %v1389
    %v1446 = vunpack.c.l.s8.bf16 %v1390
    %v1447 = vunpack.c.h.s8.bf16 %v1389
    %v1448 = vunpack.c.h.s8.bf16 %v1390
    %v1449 = vunpack.c.l.s8.bf16 %v1391
    %v1450 = vunpack.c.l.s8.bf16 %v1392
    %v1451 = vunpack.c.h.s8.bf16 %v1391
    %v1452 = vunpack.c.h.s8.bf16 %v1392
    %v1453 = vunpack.c.l.s8.bf16 %v1393
    %v1454 = vunpack.c.l.s8.bf16 %v1394
    %v1455 = vunpack.c.h.s8.bf16 %v1393
    %v1456 = vunpack.c.h.s8.bf16 %v1394
    %v1457 = vunpack.c.l.s8.bf16 %v1395
    %v1458 = vunpack.c.l.s8.bf16 %v1396
    %v1459 = vunpack.c.h.s8.bf16 %v1395
    %v1460 = vunpack.c.h.s8.bf16 %v1396
    %v1461 = vpack.c.bf16 %v1361, %v1361
    %v1462 = vpack.c.bf16 %v1362, %v1362
    %v1463 = vpack.c.bf16 %v1363, %v1363
    %v1464 = vpack.c.bf16 %v1364, %v1364
    %1465 = vmatprep.subr.bf16.mxu0 %v1398
    %1466 = vmatpush1.bf16.msra.mxu0 %v1397
    %1467 = vmatprep.subr.bf16.mxu0 %v1400
    %1468 = vmatpush1.bf16.msra.mxu0 %v1399
    %1469 = vmatprep.subr.bf16.mxu0 %v1402
    %1470 = vmatpush1.bf16.msra.mxu0 %v1401
    %1471 = vmatprep.subr.bf16.mxu0 %v1404
    %1472 = vmatpush1.bf16.msra.mxu0 %v1403
    %1473 = vmatprep.subr.bf16.mxu0 %v1406
    %1474 = vmatpush1.bf16.msra.mxu0 %v1405
    %1475 = vmatprep.subr.bf16.mxu0 %v1408
    %1476 = vmatpush1.bf16.msra.mxu0 %v1407
    %1477 = vmatprep.subr.bf16.mxu0 %v1410
    %1478 = vmatpush1.bf16.msra.mxu0 %v1409
    %1479 = vmatprep.subr.bf16.mxu0 %v1412
    %1480 = vmatpush1.bf16.msra.mxu0 %v1411
    %1481 = vmatprep.subr.bf16.mxu0 %v1414
    %1482 = vmatpush1.bf16.msra.mxu0 %v1413
    %1483 = vmatprep.subr.bf16.mxu0 %v1416
    %1484 = vmatpush1.bf16.msra.mxu0 %v1415
    %1485 = vmatprep.subr.bf16.mxu0 %v1418
    %1486 = vmatpush1.bf16.msra.mxu0 %v1417
    %1487 = vmatprep.subr.bf16.mxu0 %v1420
    %1488 = vmatpush1.bf16.msra.mxu0 %v1419
    %1489 = vmatprep.subr.bf16.mxu0 %v1422
    %1490 = vmatpush1.bf16.msra.mxu0 %v1421
    %1491 = vmatprep.subr.bf16.mxu0 %v1424
    %1492 = vmatpush1.bf16.msra.mxu0 %v1423
    %1493 = vmatprep.subr.bf16.mxu0 %v1426
    %1494 = vmatpush1.bf16.msra.mxu0 %v1425
    %1495 = vmatprep.subr.bf16.mxu0 %v1428
    %1496 = vmatpush1.bf16.msra.mxu0 %v1427
    %1497 = vmatprep.mubr.bf16.mxu0 %v1462
    %1498 = vmatmul.mubr.bf16.gmra.mrb[0].mxu0 %v1461
    %v1499 = vpop.f32.mrb[0].mxu0
    %v1500 = vadd.f32 0.0, %v1499
    %v1501 = vpop.f32.mrb[0].mxu0
    %v1502 = vadd.f32 0.0, %v1501
    %v1503 = vpop.f32.mrb[0].mxu0
    %v1504 = vpop.f32.mrb[0].mxu0
    %1505 = vdwg.mxu0
    %1506 = vmatprep.subr.bf16.mxu0 %v1430
    %1507 = vmatpush1.bf16.msra.mxu0 %v1429
    %1508 = vmatprep.subr.bf16.mxu0 %v1432
    %1509 = vmatpush1.bf16.msra.mxu0 %v1431
    %1510 = vmatprep.subr.bf16.mxu0 %v1434
    %1511 = vmatpush1.bf16.msra.mxu0 %v1433
    %1512 = vmatprep.subr.bf16.mxu0 %v1436
    %1513 = vmatpush1.bf16.msra.mxu0 %v1435
    %1514 = vmatprep.subr.bf16.mxu0 %v1438
    %1515 = vmatpush1.bf16.msra.mxu0 %v1437
    %1516 = vmatprep.subr.bf16.mxu0 %v1440
    %1517 = vmatpush1.bf16.msra.mxu0 %v1439
    %1518 = vmatprep.subr.bf16.mxu0 %v1442
    %1519 = vmatpush1.bf16.msra.mxu0 %v1441
    %1520 = vmatprep.subr.bf16.mxu0 %v1444
    %1521 = vmatpush1.bf16.msra.mxu0 %v1443
    %1522 = vmatprep.subr.bf16.mxu0 %v1446
    %1523 = vmatpush1.bf16.msra.mxu0 %v1445
    %1524 = vmatprep.subr.bf16.mxu0 %v1448
    %1525 = vmatpush1.bf16.msra.mxu0 %v1447
    %1526 = vmatprep.subr.bf16.mxu0 %v1450
    %1527 = vmatpush1.bf16.msra.mxu0 %v1449
    %1528 = vmatprep.subr.bf16.mxu0 %v1452
    %1529 = vmatpush1.bf16.msra.mxu0 %v1451
    %1530 = vmatprep.subr.bf16.mxu0 %v1454
    %1531 = vmatpush1.bf16.msra.mxu0 %v1453
    %1532 = vmatprep.subr.bf16.mxu0 %v1456
    %1533 = vmatpush1.bf16.msra.mxu0 %v1455
    %1534 = vmatprep.subr.bf16.mxu0 %v1458
    %1535 = vmatpush1.bf16.msra.mxu0 %v1457
    %1536 = vmatprep.subr.bf16.mxu0 %v1460
    %1537 = vmatpush1.bf16.msra.mxu0 %v1459
    %1538 = vmatprep.mubr.bf16.mxu0 %v1464
    %1539 = vmatmul.mubr.bf16.gmra.mrb[0].mxu0 %v1463
    %v1540 = vpop.f32.mrb[0].mxu0
    %v1541 = vadd.f32 %v1500, %v1540
    %v1542 = vpop.f32.mrb[0].mxu0
    %v1543 = vadd.f32 %v1502, %v1542
    %v1544 = vpop.f32.mrb[0].mxu0
    %v1545 = vpop.f32.mrb[0].mxu0
    %1546 = vdwg.mxu0
    %v1547 = vld [vmem:[%s9] sm:$0x3]
    %v1549 = vlaneseq
    %v1550 = vshrl.u32 %v1549, 7
    %v1551 = vsub.s32 0, %v1550
    %v1552 = vrot.slane %v1547, %v1551
    %v1553 = vlaneseq
    %v1554 = vshrl.u32 %v1553, 7
    %v1555 = vsub.s32 1, %v1554
    %v1556 = vrot.slane %v1547, %v1555
    %v1559 = vmul.f32 %v1541, %v1552
    %v1560 = vmul.f32 %v1543, %v1556
    %v1561 = vld [vmem:[#allocation7] sm:$0x3]
    %v1563 = vlaneseq
    %v1564 = vshrl.u32 %v1563, 7
    %v1565 = vsub.s32 0, %v1564
    %v1566 = vrot.slane %v1561, %v1565
    %v1567 = vlaneseq
    %v1568 = vshrl.u32 %v1567, 7
    %v1569 = vsub.s32 1, %v1568
    %v1570 = vrot.slane %v1561, %v1569
    %v1573 = vadd.f32 %v1559, %v1566
    %v1574 = vadd.f32 %v1560, %v1570
    %v1575 = vld [vmem:[%s1] sm:$0xff]
    %v1576 = vmul.f32 %v1574, 0.5
    %v1577 = vmul.f32 %v1576, 1.442695
    %v1578 = vpow.pop %v1577
    %v1579 = vmul.f32 %v1575, %v1578
    %v1580 = vadd.f32 %v1573, %v1579
    %v1581 = vld [vmem:[#allocation8] sm:$0xff]
    %v1582 = vld [vmem:[#allocation8 + $0x8] sm:$0xff]
    %v1583 = vld [vmem:[#allocation8 + $0x10] sm:$0xff]
    %v1584 = vld [vmem:[#allocation8 + $0x18] sm:$0xff]
    %v1585 = vld [vmem:[#allocation8 + $0x20] sm:$0xff]
    %v1586 = vld [vmem:[#allocation8 + $0x28] sm:$0xff]
    %v1587 = vld [vmem:[#allocation8 + $0x30] sm:$0xff]
    %v1588 = vld [vmem:[#allocation8 + $0x38] sm:$0xff]
    %v1589 = vld [vmem:[#allocation8 + $0x40] sm:$0xff]
    %v1590 = vld [vmem:[#allocation8 + $0x48] sm:$0xff]
    %v1591 = vld [vmem:[#allocation8 + $0x50] sm:$0xff]
    %v1592 = vld [vmem:[#allocation8 + $0x58] sm:$0xff]
    %v1593 = vld [vmem:[#allocation8 + $0x60] sm:$0xff]
    %v1594 = vld [vmem:[#allocation8 + $0x68] sm:$0xff]
    %v1595 = vld [vmem:[#allocation8 + $0x70] sm:$0xff]
    %v1596 = vld [vmem:[#allocation8 + $0x78] sm:$0xff]
    %v1597 = vunpack.c.l.s8.bf16 %v1581
    %v1598 = vunpack.c.l.s8.bf16 %v1582
    %v1599 = vunpack.c.l.s8.bf16 %v1583
    %v1600 = vunpack.c.l.s8.bf16 %v1584
    %v1601 = vunpack.c.h.s8.bf16 %v1581
    %v1602 = vunpack.c.h.s8.bf16 %v1582
    %v1603 = vunpack.c.h.s8.bf16 %v1583
    %v1604 = vunpack.c.h.s8.bf16 %v1584
    %v1605 = vunpack.c.l.s8.bf16 %v1585
    %v1606 = vunpack.c.l.s8.bf16 %v1586
    %v1607 = vunpack.c.l.s8.bf16 %v1587
    %v1608 = vunpack.c.l.s8.bf16 %v1588
    %v1609 = vunpack.c.h.s8.bf16 %v1585
    %v1610 = vunpack.c.h.s8.bf16 %v1586
    %v1611 = vunpack.c.h.s8.bf16 %v1587
    %v1612 = vunpack.c.h.s8.bf16 %v1588
    %v1613 = vunpack.c.l.s8.bf16 %v1589
    %v1614 = vunpack.c.l.s8.bf16 %v1590
    %v1615 = vunpack.c.l.s8.bf16 %v1591
    %v1616 = vunpack.c.l.s8.bf16 %v1592
    %v1617 = vunpack.c.h.s8.bf16 %v1589
    %v1618 = vunpack.c.h.s8.bf16 %v1590
    %v1619 = vunpack.c.h.s8.bf16 %v1591
    %v1620 = vunpack.c.h.s8.bf16 %v1592
    %v1621 = vunpack.c.l.s8.bf16 %v1593
    %v1622 = vunpack.c.l.s8.bf16 %v1594
    %v1623 = vunpack.c.l.s8.bf16 %v1595
    %v1624 = vunpack.c.l.s8.bf16 %v1596
    %v1625 = vunpack.c.h.s8.bf16 %v1593
    %v1626 = vunpack.c.h.s8.bf16 %v1594
    %v1627 = vunpack.c.h.s8.bf16 %v1595
    %v1628 = vunpack.c.h.s8.bf16 %v1596
    %v1629 = vpack.c.bf16 %v1580, %v1580
    %1630 = vmatprep.subr.bf16.mxu0 %v1598
    %1631 = vmatpush1.bf16.msra.mxu0 %v1597
    %1632 = vmatprep.subr.bf16.mxu0 %v1602
    %1633 = vmatpush1.bf16.msra.mxu0 %v1601
    %1634 = vmatprep.subr.bf16.mxu0 %v1606
    %1635 = vmatpush1.bf16.msra.mxu0 %v1605
    %1636 = vmatprep.subr.bf16.mxu0 %v1610
    %1637 = vmatpush1.bf16.msra.mxu0 %v1609
    %1638 = vmatprep.subr.bf16.mxu0 %v1614
    %1639 = vmatpush1.bf16.msra.mxu0 %v1613
    %1640 = vmatprep.subr.bf16.mxu0 %v1618
    %1641 = vmatpush1.bf16.msra.mxu0 %v1617
    %1642 = vmatprep.subr.bf16.mxu0 %v1622
    %1643 = vmatpush1.bf16.msra.mxu0 %v1621
    %1644 = vmatprep.subr.bf16.mxu0 %v1626
    %1645 = vmatpush1.bf16.msra.mxu0 %v1625
    %1646 = vmatprep.subr.bf16.mxu0 0
    %1647 = vmatpush1.bf16.msra.mxu0 0
    %1648 = vmatprep.subr.bf16.mxu0 0
    %1649 = vmatpush1.bf16.msra.mxu0 0
    %1650 = vmatprep.subr.bf16.mxu0 0
    %1651 = vmatpush1.bf16.msra.mxu0 0
    %1652 = vmatprep.subr.bf16.mxu0 0
    %1653 = vmatpush1.bf16.msra.mxu0 0
    %1654 = vmatprep.subr.bf16.mxu0 0
    %1655 = vmatpush1.bf16.msra.mxu0 0
    %1656 = vmatprep.subr.bf16.mxu0 0
    %1657 = vmatpush1.bf16.msra.mxu0 0
    %1658 = vmatprep.subr.bf16.mxu0 0
    %1659 = vmatpush1.bf16.msra.mxu0 0
    %1660 = vmatprep.subr.bf16.mxu0 0
    %1661 = vmatpush1.bf16.msra.mxu0 0
    %1662 = vmatprep.mubr.bf16.mxu0 0
    %1663 = vmatmul.mubr.bf16.gmra.mrb[0].mxu0 %v1629
    %v1664 = vpop.f32.mrb[0].mxu0
    %v1665 = vadd.f32 0.0, %v1664
    %v1666 = vpop.f32.mrb[0].mxu0
    %v1667 = vadd.f32 0.0, %v1666
    %v1668 = vpop.f32.mrb[0].mxu0
    %v1669 = vpop.f32.mrb[0].mxu0
    %1670 = vdwg.mxu0
    %1671 = vmatprep.subr.bf16.mxu0 %v1600
    %1672 = vmatpush1.bf16.msra.mxu0 %v1599
    %1673 = vmatprep.subr.bf16.mxu0 %v1604
    %1674 = vmatpush1.bf16.msra.mxu0 %v1603
    %1675 = vmatprep.subr.bf16.mxu0 %v1608
    %1676 = vmatpush1.bf16.msra.mxu0 %v1607
    %1677 = vmatprep.subr.bf16.mxu0 %v1612
    %1678 = vmatpush1.bf16.msra.mxu0 %v1611
    %1679 = vmatprep.subr.bf16.mxu0 %v1616
    %1680 = vmatpush1.bf16.msra.mxu0 %v1615
    %1681 = vmatprep.subr.bf16.mxu0 %v1620
    %1682 = vmatpush1.bf16.msra.mxu0 %v1619
    %1683 = vmatprep.subr.bf16.mxu0 %v1624
    %1684 = vmatpush1.bf16.msra.mxu0 %v1623
    %1685 = vmatprep.subr.bf16.mxu0 %v1628
    %1686 = vmatpush1.bf16.msra.mxu0 %v1627
    %1687 = vmatprep.subr.bf16.mxu0 0
    %1688 = vmatpush1.bf16.msra.mxu0 0
    %1689 = vmatprep.subr.bf16.mxu0 0
    %1690 = vmatpush1.bf16.msra.mxu0 0
    %1691 = vmatprep.subr.bf16.mxu0 0
    %1692 = vmatpush1.bf16.msra.mxu0 0
    %1693 = vmatprep.subr.bf16.mxu0 0
    %1694 = vmatpush1.bf16.msra.mxu0 0
    %1695 = vmatprep.subr.bf16.mxu0 0
    %1696 = vmatpush1.bf16.msra.mxu0 0
    %1697 = vmatprep.subr.bf16.mxu0 0
    %1698 = vmatpush1.bf16.msra.mxu0 0
    %1699 = vmatprep.subr.bf16.mxu0 0
    %1700 = vmatpush1.bf16.msra.mxu0 0
    %1701 = vmatprep.subr.bf16.mxu0 0
    %1702 = vmatpush1.bf16.msra.mxu0 0
    %1703 = vmatprep.mubr.bf16.mxu0 0
    %1704 = vmatmul.mubr.bf16.gmra.mrb[0].mxu0 %v1629
    %v1705 = vpop.f32.mrb[0].mxu0
    %v1706 = vadd.f32 0.0, %v1705
    %v1707 = vpop.f32.mrb[0].mxu0
    %v1708 = vadd.f32 0.0, %v1707
    %v1709 = vpop.f32.mrb[0].mxu0
    %v1710 = vpop.f32.mrb[0].mxu0
    %1711 = vdwg.mxu0
    %v1712 = vld [vmem:[%s12] sm:$0xf]
    %v1714 = vlaneseq
    %v1715 = vshrl.u32 %v1714, 7
    %v1716 = vsub.s32 0, %v1715
    %v1717 = vrot.slane %v1712, %v1716
    %v1718 = vlaneseq
    %v1719 = vshrl.u32 %v1718, 7
    %v1720 = vsub.s32 1, %v1719
    %v1721 = vrot.slane %v1712, %v1720
    %v1722 = vlaneseq
    %v1723 = vshrl.u32 %v1722, 7
    %v1724 = vsub.s32 2, %v1723
    %v1725 = vrot.slane %v1712, %v1724
    %v1726 = vlaneseq
    %v1727 = vshrl.u32 %v1726, 7
    %v1728 = vsub.s32 3, %v1727
    %v1729 = vrot.slane %v1712, %v1728
    %v1734 = vmul.f32 %v1665, %v1717
    %v1735 = vmul.f32 %v1667, %v1721
    %v1736 = vmul.f32 %v1706, %v1725
    %v1737 = vmul.f32 %v1708, %v1729
    %v1738 = vld [vmem:[%s13] sm:$0xf]
    %v1740 = vlaneseq
    %v1741 = vshrl.u32 %v1740, 7
    %v1742 = vsub.s32 0, %v1741
    %v1743 = vrot.slane %v1738, %v1742
    %v1744 = vlaneseq
    %v1745 = vshrl.u32 %v1744, 7
    %v1746 = vsub.s32 1, %v1745
    %v1747 = vrot.slane %v1738, %v1746
    %v1748 = vlaneseq
    %v1749 = vshrl.u32 %v1748, 7
    %v1750 = vsub.s32 2, %v1749
    %v1751 = vrot.slane %v1738, %v1750
    %v1752 = vlaneseq
    %v1753 = vshrl.u32 %v1752, 7
    %v1754 = vsub.s32 3, %v1753
    %v1755 = vrot.slane %v1738, %v1754
    %v1760 = vadd.f32 %v1734, %v1743
    %v1761 = vadd.f32 %v1735, %v1747
    %v1762 = vadd.f32 %v1736, %v1751
    %v1763 = vadd.f32 %v1737, %v1755
    %v1764 = vmax.f32 %v1760, 0.0
    %v1765 = vmax.f32 %v1761, 0.0
    %v1766 = vmax.f32 %v1762, 0.0
    %v1767 = vmax.f32 %v1763, 0.0
    %v1768 = vand.u32 2147483647, %v1760
    %v1769 = vand.u32 2147483647, %v1761
    %v1770 = vand.u32 2147483647, %v1762
    %v1771 = vand.u32 2147483647, %v1763
    %v1772 = vsub.f32 0.0, %v1768
    %v1773 = vsub.f32 0.0, %v1769
    %v1774 = vsub.f32 0.0, %v1770
    %v1775 = vsub.f32 0.0, %v1771
    %v1776 = vmul.f32 %v1772, 1.442695
    %v1777 = vpow.pop %v1776
    %v1778 = vmul.f32 %v1773, 1.442695
    %v1779 = vpow.pop %v1778
    %v1780 = vmul.f32 %v1774, 1.442695
    %v1781 = vpow.pop %v1780
    %v1782 = vmul.f32 %v1775, 1.442695
    %v1783 = vpow.pop %v1782
    %v1784 = vadd.f32 %v1777, 1.0
    %v1785 = vadd.f32 %v1779, 1.0
    %v1786 = vadd.f32 %v1781, 1.0
    %v1787 = vadd.f32 %v1783, 1.0
    %v1788 = vlog2.pop %v1784
    %v1789 = vmul.f32 %v1788, 0.6931472
    %v1790 = vlog2.pop %v1785
    %v1791 = vmul.f32 %v1790, 0.6931472
    %v1792 = vlog2.pop %v1786
    %v1793 = vmul.f32 %v1792, 0.6931472
    %v1794 = vlog2.pop %v1787
    %v1795 = vmul.f32 %v1794, 0.6931472
    %v1796 = vadd.f32 %v1764, %v1789
    %v1797 = vadd.f32 %v1765, %v1791
    %v1798 = vadd.f32 %v1766, %v1793
    %v1799 = vadd.f32 %v1767, %v1795
    %v1800 = vld [vmem:[#allocation10] sm:$0xff]
    %v1801 = vld [vmem:[#allocation10 + $0x8] sm:$0xff]
    %v1802 = vld [vmem:[#allocation10 + $0x10] sm:$0xff]
    %v1803 = vld [vmem:[#allocation10 + $0x18] sm:$0xff]
    %v1804 = vld [vmem:[#allocation10 + $0x20] sm:$0xff]
    %v1805 = vld [vmem:[#allocation10 + $0x28] sm:$0xff]
    %v1806 = vld [vmem:[#allocation10 + $0x30] sm:$0xff]
    %v1807 = vld [vmem:[#allocation10 + $0x38] sm:$0xff]
    %v1808 = vld [vmem:[#allocation10 + $0x40] sm:$0xff]
    %v1809 = vld [vmem:[#allocation10 + $0x48] sm:$0xff]
    %v1810 = vld [vmem:[#allocation10 + $0x50] sm:$0xff]
    %v1811 = vld [vmem:[#allocation10 + $0x58] sm:$0xff]
    %v1812 = vld [vmem:[#allocation10 + $0x60] sm:$0xff]
    %v1813 = vld [vmem:[#allocation10 + $0x68] sm:$0xff]
    %v1814 = vld [vmem:[#allocation10 + $0x70] sm:$0xff]
    %v1815 = vld [vmem:[#allocation10 + $0x78] sm:$0xff]
    %v1816 = vld [vmem:[#allocation10 + $0x80] sm:$0xff]
    %v1817 = vld [vmem:[#allocation10 + $0x88] sm:$0xff]
    %v1818 = vld [vmem:[#allocation10 + $0x90] sm:$0xff]
    %v1819 = vld [vmem:[#allocation10 + $0x98] sm:$0xff]
    %v1820 = vld [vmem:[#allocation10 + $0xa0] sm:$0xff]
    %v1821 = vld [vmem:[#allocation10 + $0xa8] sm:$0xff]
    %v1822 = vld [vmem:[#allocation10 + $0xb0] sm:$0xff]
    %v1823 = vld [vmem:[#allocation10 + $0xb8] sm:$0xff]
    %v1824 = vld [vmem:[#allocation10 + $0xc0] sm:$0xff]
    %v1825 = vld [vmem:[#allocation10 + $0xc8] sm:$0xff]
    %v1826 = vld [vmem:[#allocation10 + $0xd0] sm:$0xff]
    %v1827 = vld [vmem:[#allocation10 + $0xd8] sm:$0xff]
    %v1828 = vld [vmem:[#allocation10 + $0xe0] sm:$0xff]
    %v1829 = vld [vmem:[#allocation10 + $0xe8] sm:$0xff]
    %v1830 = vld [vmem:[#allocation10 + $0xf0] sm:$0xff]
    %v1831 = vld [vmem:[#allocation10 + $0xf8] sm:$0xff]
    %v1832 = vld [vmem:[#allocation10 + $0x100] sm:$0xff]
    %v1833 = vld [vmem:[#allocation10 + $0x108] sm:$0xff]
    %v1834 = vld [vmem:[#allocation10 + $0x110] sm:$0xff]
    %v1835 = vld [vmem:[#allocation10 + $0x118] sm:$0xff]
    %v1836 = vld [vmem:[#allocation10 + $0x120] sm:$0xff]
    %v1837 = vld [vmem:[#allocation10 + $0x128] sm:$0xff]
    %v1838 = vld [vmem:[#allocation10 + $0x130] sm:$0xff]
    %v1839 = vld [vmem:[#allocation10 + $0x138] sm:$0xff]
    %v1840 = vld [vmem:[#allocation10 + $0x140] sm:$0xff]
    %v1841 = vld [vmem:[#allocation10 + $0x148] sm:$0xff]
    %v1842 = vld [vmem:[#allocation10 + $0x150] sm:$0xff]
    %v1843 = vld [vmem:[#allocation10 + $0x158] sm:$0xff]
    %v1844 = vld [vmem:[#allocation10 + $0x160] sm:$0xff]
    %v1845 = vld [vmem:[#allocation10 + $0x168] sm:$0xff]
    %v1846 = vld [vmem:[#allocation10 + $0x170] sm:$0xff]
    %v1847 = vld [vmem:[#allocation10 + $0x178] sm:$0xff]
    %v1848 = vld [vmem:[#allocation10 + $0x180] sm:$0xff]
    %v1849 = vld [vmem:[#allocation10 + $0x188] sm:$0xff]
    %v1850 = vld [vmem:[#allocation10 + $0x190] sm:$0xff]
    %v1851 = vld [vmem:[#allocation10 + $0x198] sm:$0xff]
    %v1852 = vld [vmem:[#allocation10 + $0x1a0] sm:$0xff]
    %v1853 = vld [vmem:[#allocation10 + $0x1a8] sm:$0xff]
    %v1854 = vld [vmem:[#allocation10 + $0x1b0] sm:$0xff]
    %v1855 = vld [vmem:[#allocation10 + $0x1b8] sm:$0xff]
    %v1856 = vld [vmem:[#allocation10 + $0x1c0] sm:$0xff]
    %v1857 = vld [vmem:[#allocation10 + $0x1c8] sm:$0xff]
    %v1858 = vld [vmem:[#allocation10 + $0x1d0] sm:$0xff]
    %v1859 = vld [vmem:[#allocation10 + $0x1d8] sm:$0xff]
    %v1860 = vld [vmem:[#allocation10 + $0x1e0] sm:$0xff]
    %v1861 = vld [vmem:[#allocation10 + $0x1e8] sm:$0xff]
    %v1862 = vld [vmem:[#allocation10 + $0x1f0] sm:$0xff]
    %v1863 = vld [vmem:[#allocation10 + $0x1f8] sm:$0xff]
    %v1864 = vunpack.c.l.s8.bf16 %v1800
    %v1865 = vunpack.c.l.s8.bf16 %v1801
    %v1866 = vunpack.c.l.s8.bf16 %v1802
    %v1867 = vunpack.c.l.s8.bf16 %v1803
    %v1868 = vunpack.c.h.s8.bf16 %v1800
    %v1869 = vunpack.c.h.s8.bf16 %v1801
    %v1870 = vunpack.c.h.s8.bf16 %v1802
    %v1871 = vunpack.c.h.s8.bf16 %v1803
    %v1872 = vunpack.c.l.s8.bf16 %v1804
    %v1873 = vunpack.c.l.s8.bf16 %v1805
    %v1874 = vunpack.c.l.s8.bf16 %v1806
    %v1875 = vunpack.c.l.s8.bf16 %v1807
    %v1876 = vunpack.c.h.s8.bf16 %v1804
    %v1877 = vunpack.c.h.s8.bf16 %v1805
    %v1878 = vunpack.c.h.s8.bf16 %v1806
    %v1879 = vunpack.c.h.s8.bf16 %v1807
    %v1880 = vunpack.c.l.s8.bf16 %v1808
    %v1881 = vunpack.c.l.s8.bf16 %v1809
    %v1882 = vunpack.c.l.s8.bf16 %v1810
    %v1883 = vunpack.c.l.s8.bf16 %v1811
    %v1884 = vunpack.c.h.s8.bf16 %v1808
    %v1885 = vunpack.c.h.s8.bf16 %v1809
    %v1886 = vunpack.c.h.s8.bf16 %v1810
    %v1887 = vunpack.c.h.s8.bf16 %v1811
    %v1888 = vunpack.c.l.s8.bf16 %v1812
    %v1889 = vunpack.c.l.s8.bf16 %v1813
    %v1890 = vunpack.c.l.s8.bf16 %v1814
    %v1891 = vunpack.c.l.s8.bf16 %v1815
    %v1892 = vunpack.c.h.s8.bf16 %v1812
    %v1893 = vunpack.c.h.s8.bf16 %v1813
    %v1894 = vunpack.c.h.s8.bf16 %v1814
    %v1895 = vunpack.c.h.s8.bf16 %v1815
    %v1896 = vunpack.c.l.s8.bf16 %v1816
    %v1897 = vunpack.c.l.s8.bf16 %v1817
    %v1898 = vunpack.c.l.s8.bf16 %v1818
    %v1899 = vunpack.c.l.s8.bf16 %v1819
    %v1900 = vunpack.c.h.s8.bf16 %v1816
    %v1901 = vunpack.c.h.s8.bf16 %v1817
    %v1902 = vunpack.c.h.s8.bf16 %v1818
    %v1903 = vunpack.c.h.s8.bf16 %v1819
    %v1904 = vunpack.c.l.s8.bf16 %v1820
    %v1905 = vunpack.c.l.s8.bf16 %v1821
    %v1906 = vunpack.c.l.s8.bf16 %v1822
    %v1907 = vunpack.c.l.s8.bf16 %v1823
    %v1908 = vunpack.c.h.s8.bf16 %v1820
    %v1909 = vunpack.c.h.s8.bf16 %v1821
    %v1910 = vunpack.c.h.s8.bf16 %v1822
    %v1911 = vunpack.c.h.s8.bf16 %v1823
    %v1912 = vunpack.c.l.s8.bf16 %v1824
    %v1913 = vunpack.c.l.s8.bf16 %v1825
    %v1914 = vunpack.c.l.s8.bf16 %v1826
    %v1915 = vunpack.c.l.s8.bf16 %v1827
    %v1916 = vunpack.c.h.s8.bf16 %v1824
    %v1917 = vunpack.c.h.s8.bf16 %v1825
    %v1918 = vunpack.c.h.s8.bf16 %v1826
    %v1919 = vunpack.c.h.s8.bf16 %v1827
    %v1920 = vunpack.c.l.s8.bf16 %v1828
    %v1921 = vunpack.c.l.s8.bf16 %v1829
    %v1922 = vunpack.c.l.s8.bf16 %v1830
    %v1923 = vunpack.c.l.s8.bf16 %v1831
    %v1924 = vunpack.c.h.s8.bf16 %v1828
    %v1925 = vunpack.c.h.s8.bf16 %v1829
    %v1926 = vunpack.c.h.s8.bf16 %v1830
    %v1927 = vunpack.c.h.s8.bf16 %v1831
    %v1928 = vunpack.c.l.s8.bf16 %v1832
    %v1929 = vunpack.c.l.s8.bf16 %v1833
    %v1930 = vunpack.c.l.s8.bf16 %v1834
    %v1931 = vunpack.c.l.s8.bf16 %v1835
    %v1932 = vunpack.c.h.s8.bf16 %v1832
    %v1933 = vunpack.c.h.s8.bf16 %v1833
    %v1934 = vunpack.c.h.s8.bf16 %v1834
    %v1935 = vunpack.c.h.s8.bf16 %v1835
    %v1936 = vunpack.c.l.s8.bf16 %v1836
    %v1937 = vunpack.c.l.s8.bf16 %v1837
    %v1938 = vunpack.c.l.s8.bf16 %v1838
    %v1939 = vunpack.c.l.s8.bf16 %v1839
    %v1940 = vunpack.c.h.s8.bf16 %v1836
    %v1941 = vunpack.c.h.s8.bf16 %v1837
    %v1942 = vunpack.c.h.s8.bf16 %v1838
    %v1943 = vunpack.c.h.s8.bf16 %v1839
    %v1944 = vunpack.c.l.s8.bf16 %v1840
    %v1945 = vunpack.c.l.s8.bf16 %v1841
    %v1946 = vunpack.c.l.s8.bf16 %v1842
    %v1947 = vunpack.c.l.s8.bf16 %v1843
    %v1948 = vunpack.c.h.s8.bf16 %v1840
    %v1949 = vunpack.c.h.s8.bf16 %v1841
    %v1950 = vunpack.c.h.s8.bf16 %v1842
    %v1951 = vunpack.c.h.s8.bf16 %v1843
    %v1952 = vunpack.c.l.s8.bf16 %v1844
    %v1953 = vunpack.c.l.s8.bf16 %v1845
    %v1954 = vunpack.c.l.s8.bf16 %v1846
    %v1955 = vunpack.c.l.s8.bf16 %v1847
    %v1956 = vunpack.c.h.s8.bf16 %v1844
    %v1957 = vunpack.c.h.s8.bf16 %v1845
    %v1958 = vunpack.c.h.s8.bf16 %v1846
    %v1959 = vunpack.c.h.s8.bf16 %v1847
    %v1960 = vunpack.c.l.s8.bf16 %v1848
    %v1961 = vunpack.c.l.s8.bf16 %v1849
    %v1962 = vunpack.c.l.s8.bf16 %v1850
    %v1963 = vunpack.c.l.s8.bf16 %v1851
    %v1964 = vunpack.c.h.s8.bf16 %v1848
    %v1965 = vunpack.c.h.s8.bf16 %v1849
    %v1966 = vunpack.c.h.s8.bf16 %v1850
    %v1967 = vunpack.c.h.s8.bf16 %v1851
    %v1968 = vunpack.c.l.s8.bf16 %v1852
    %v1969 = vunpack.c.l.s8.bf16 %v1853
    %v1970 = vunpack.c.l.s8.bf16 %v1854
    %v1971 = vunpack.c.l.s8.bf16 %v1855
    %v1972 = vunpack.c.h.s8.bf16 %v1852
    %v1973 = vunpack.c.h.s8.bf16 %v1853
    %v1974 = vunpack.c.h.s8.bf16 %v1854
    %v1975 = vunpack.c.h.s8.bf16 %v1855
    %v1976 = vunpack.c.l.s8.bf16 %v1856
    %v1977 = vunpack.c.l.s8.bf16 %v1857
    %v1978 = vunpack.c.l.s8.bf16 %v1858
    %v1979 = vunpack.c.l.s8.bf16 %v1859
    %v1980 = vunpack.c.h.s8.bf16 %v1856
    %v1981 = vunpack.c.h.s8.bf16 %v1857
    %v1982 = vunpack.c.h.s8.bf16 %v1858
    %v1983 = vunpack.c.h.s8.bf16 %v1859
    %v1984 = vunpack.c.l.s8.bf16 %v1860
    %v1985 = vunpack.c.l.s8.bf16 %v1861
    %v1986 = vunpack.c.l.s8.bf16 %v1862
    %v1987 = vunpack.c.l.s8.bf16 %v1863
    %v1988 = vunpack.c.h.s8.bf16 %v1860
    %v1989 = vunpack.c.h.s8.bf16 %v1861
    %v1990 = vunpack.c.h.s8.bf16 %v1862
    %v1991 = vunpack.c.h.s8.bf16 %v1863
    %v1992 = vpack.c.bf16 %v1796, %v1796
    %v1993 = vpack.c.bf16 %v1797, %v1797
    %v1994 = vpack.c.bf16 %v1798, %v1798
    %v1995 = vpack.c.bf16 %v1799, %v1799
    %1996 = vmatprep.subr.bf16.mxu0 %v1865
    %1997 = vmatpush1.bf16.msra.mxu0 %v1864
    %1998 = vmatprep.subr.bf16.mxu0 %v1869
    %1999 = vmatpush1.bf16.msra.mxu0 %v1868
    %2000 = vmatprep.subr.bf16.mxu0 %v1873
    %2001 = vmatpush1.bf16.msra.mxu0 %v1872
    %2002 = vmatprep.subr.bf16.mxu0 %v1877
    %2003 = vmatpush1.bf16.msra.mxu0 %v1876
    %2004 = vmatprep.subr.bf16.mxu0 %v1881
    %2005 = vmatpush1.bf16.msra.mxu0 %v1880
    %2006 = vmatprep.subr.bf16.mxu0 %v1885
    %2007 = vmatpush1.bf16.msra.mxu0 %v1884
    %2008 = vmatprep.subr.bf16.mxu0 %v1889
    %2009 = vmatpush1.bf16.msra.mxu0 %v1888
    %2010 = vmatprep.subr.bf16.mxu0 %v1893
    %2011 = vmatpush1.bf16.msra.mxu0 %v1892
    %2012 = vmatprep.subr.bf16.mxu0 %v1897
    %2013 = vmatpush1.bf16.msra.mxu0 %v1896
    %2014 = vmatprep.subr.bf16.mxu0 %v1901
    %2015 = vmatpush1.bf16.msra.mxu0 %v1900
    %2016 = vmatprep.subr.bf16.mxu0 %v1905
    %2017 = vmatpush1.bf16.msra.mxu0 %v1904
    %2018 = vmatprep.subr.bf16.mxu0 %v1909
    %2019 = vmatpush1.bf16.msra.mxu0 %v1908
    %2020 = vmatprep.subr.bf16.mxu0 %v1913
    %2021 = vmatpush1.bf16.msra.mxu0 %v1912
    %2022 = vmatprep.subr.bf16.mxu0 %v1917
    %2023 = vmatpush1.bf16.msra.mxu0 %v1916
    %2024 = vmatprep.subr.bf16.mxu0 %v1921
    %2025 = vmatpush1.bf16.msra.mxu0 %v1920
    %2026 = vmatprep.subr.bf16.mxu0 %v1925
    %2027 = vmatpush1.bf16.msra.mxu0 %v1924
    %2028 = vmatprep.mubr.bf16.mxu0 %v1993
    %2029 = vmatmul.mubr.bf16.gmra.mrb[0].mxu0 %v1992
    %v2030 = vpop.f32.mrb[0].mxu0
    %v2031 = vadd.f32 0.0, %v2030
    %v2032 = vpop.f32.mrb[0].mxu0
    %v2033 = vadd.f32 0.0, %v2032
    %v2034 = vpop.f32.mrb[0].mxu0
    %v2035 = vpop.f32.mrb[0].mxu0
    %2036 = vdwg.mxu0
    %2037 = vmatprep.subr.bf16.mxu0 %v1929
    %2038 = vmatpush1.bf16.msra.mxu0 %v1928
    %2039 = vmatprep.subr.bf16.mxu0 %v1933
    %2040 = vmatpush1.bf16.msra.mxu0 %v1932
    %2041 = vmatprep.subr.bf16.mxu0 %v1937
    %2042 = vmatpush1.bf16.msra.mxu0 %v1936
    %2043 = vmatprep.subr.bf16.mxu0 %v1941
    %2044 = vmatpush1.bf16.msra.mxu0 %v1940
    %2045 = vmatprep.subr.bf16.mxu0 %v1945
    %2046 = vmatpush1.bf16.msra.mxu0 %v1944
    %2047 = vmatprep.subr.bf16.mxu0 %v1949
    %2048 = vmatpush1.bf16.msra.mxu0 %v1948
    %2049 = vmatprep.subr.bf16.mxu0 %v1953
    %2050 = vmatpush1.bf16.msra.mxu0 %v1952
    %2051 = vmatprep.subr.bf16.mxu0 %v1957
    %2052 = vmatpush1.bf16.msra.mxu0 %v1956
    %2053 = vmatprep.subr.bf16.mxu0 %v1961
    %2054 = vmatpush1.bf16.msra.mxu0 %v1960
    %2055 = vmatprep.subr.bf16.mxu0 %v1965
    %2056 = vmatpush1.bf16.msra.mxu0 %v1964
    %2057 = vmatprep.subr.bf16.mxu0 %v1969
    %2058 = vmatpush1.bf16.msra.mxu0 %v1968
    %2059 = vmatprep.subr.bf16.mxu0 %v1973
    %2060 = vmatpush1.bf16.msra.mxu0 %v1972
    %2061 = vmatprep.subr.bf16.mxu0 %v1977
    %2062 = vmatpush1.bf16.msra.mxu0 %v1976
    %2063 = vmatprep.subr.bf16.mxu0 %v1981
    %2064 = vmatpush1.bf16.msra.mxu0 %v1980
    %2065 = vmatprep.subr.bf16.mxu0 %v1985
    %2066 = vmatpush1.bf16.msra.mxu0 %v1984
    %2067 = vmatprep.subr.bf16.mxu0 %v1989
    %2068 = vmatpush1.bf16.msra.mxu0 %v1988
    %2069 = vmatprep.mubr.bf16.mxu0 %v1995
    %2070 = vmatmul.mubr.bf16.gmra.mrb[0].mxu0 %v1994
    %v2071 = vpop.f32.mrb[0].mxu0
    %v2072 = vadd.f32 %v2031, %v2071
    %v2073 = vpop.f32.mrb[0].mxu0
    %v2074 = vadd.f32 %v2033, %v2073
    %v2075 = vpop.f32.mrb[0].mxu0
    %v2076 = vpop.f32.mrb[0].mxu0
    %2077 = vdwg.mxu0
    %2078 = vmatprep.subr.bf16.mxu0 %v1867
    %2079 = vmatpush1.bf16.msra.mxu0 %v1866
    %2080 = vmatprep.subr.bf16.mxu0 %v1871
    %2081 = vmatpush1.bf16.msra.mxu0 %v1870
    %2082 = vmatprep.subr.bf16.mxu0 %v1875
    %2083 = vmatpush1.bf16.msra.mxu0 %v1874
    %2084 = vmatprep.subr.bf16.mxu0 %v1879
    %2085 = vmatpush1.bf16.msra.mxu0 %v1878
    %2086 = vmatprep.subr.bf16.mxu0 %v1883
    %2087 = vmatpush1.bf16.msra.mxu0 %v1882
    %2088 = vmatprep.subr.bf16.mxu0 %v1887
    %2089 = vmatpush1.bf16.msra.mxu0 %v1886
    %2090 = vmatprep.subr.bf16.mxu0 %v1891
    %2091 = vmatpush1.bf16.msra.mxu0 %v1890
    %2092 = vmatprep.subr.bf16.mxu0 %v1895
    %2093 = vmatpush1.bf16.msra.mxu0 %v1894
    %2094 = vmatprep.subr.bf16.mxu0 %v1899
    %2095 = vmatpush1.bf16.msra.mxu0 %v1898
    %2096 = vmatprep.subr.bf16.mxu0 %v1903
    %2097 = vmatpush1.bf16.msra.mxu0 %v1902
    %2098 = vmatprep.subr.bf16.mxu0 %v1907
    %2099 = vmatpush1.bf16.msra.mxu0 %v1906
    %2100 = vmatprep.subr.bf16.mxu0 %v1911
    %2101 = vmatpush1.bf16.msra.mxu0 %v1910
    %2102 = vmatprep.subr.bf16.mxu0 %v1915
    %2103 = vmatpush1.bf16.msra.mxu0 %v1914
    %2104 = vmatprep.subr.bf16.mxu0 %v1919
    %2105 = vmatpush1.bf16.msra.mxu0 %v1918
    %2106 = vmatprep.subr.bf16.mxu0 %v1923
    %2107 = vmatpush1.bf16.msra.mxu0 %v1922
    %2108 = vmatprep.subr.bf16.mxu0 %v1927
    %2109 = vmatpush1.bf16.msra.mxu0 %v1926
    %2110 = vmatprep.mubr.bf16.mxu0 %v1993
    %2111 = vmatmul.mubr.bf16.gmra.mrb[0].mxu0 %v1992
    %v2112 = vpop.f32.mrb[0].mxu0
    %v2113 = vadd.f32 0.0, %v2112
    %v2114 = vpop.f32.mrb[0].mxu0
    %v2115 = vadd.f32 0.0, %v2114
    %v2116 = vpop.f32.mrb[0].mxu0
    %v2117 = vpop.f32.mrb[0].mxu0
    %2118 = vdwg.mxu0
    %2119 = vmatprep.subr.bf16.mxu0 %v1931
    %2120 = vmatpush1.bf16.msra.mxu0 %v1930
    %2121 = vmatprep.subr.bf16.mxu0 %v1935
    %2122 = vmatpush1.bf16.msra.mxu0 %v1934
    %2123 = vmatprep.subr.bf16.mxu0 %v1939
    %2124 = vmatpush1.bf16.msra.mxu0 %v1938
    %2125 = vmatprep.subr.bf16.mxu0 %v1943
    %2126 = vmatpush1.bf16.msra.mxu0 %v1942
    %2127 = vmatprep.subr.bf16.mxu0 %v1947
    %2128 = vmatpush1.bf16.msra.mxu0 %v1946
    %2129 = vmatprep.subr.bf16.mxu0 %v1951
    %2130 = vmatpush1.bf16.msra.mxu0 %v1950
    %2131 = vmatprep.subr.bf16.mxu0 %v1955
    %2132 = vmatpush1.bf16.msra.mxu0 %v1954
    %2133 = vmatprep.subr.bf16.mxu0 %v1959
    %2134 = vmatpush1.bf16.msra.mxu0 %v1958
    %2135 = vmatprep.subr.bf16.mxu0 %v1963
    %2136 = vmatpush1.bf16.msra.mxu0 %v1962
    %2137 = vmatprep.subr.bf16.mxu0 %v1967
    %2138 = vmatpush1.bf16.msra.mxu0 %v1966
    %2139 = vmatprep.subr.bf16.mxu0 %v1971
    %2140 = vmatpush1.bf16.msra.mxu0 %v1970
    %2141 = vmatprep.subr.bf16.mxu0 %v1975
    %2142 = vmatpush1.bf16.msra.mxu0 %v1974
    %2143 = vmatprep.subr.bf16.mxu0 %v1979
    %2144 = vmatpush1.bf16.msra.mxu0 %v1978
    %2145 = vmatprep.subr.bf16.mxu0 %v1983
    %2146 = vmatpush1.bf16.msra.mxu0 %v1982
    %2147 = vmatprep.subr.bf16.mxu0 %v1987
    %2148 = vmatpush1.bf16.msra.mxu0 %v1986
    %2149 = vmatprep.subr.bf16.mxu0 %v1991
    %2150 = vmatpush1.bf16.msra.mxu0 %v1990
    %2151 = vmatprep.mubr.bf16.mxu0 %v1995
    %2152 = vmatmul.mubr.bf16.gmra.mrb[0].mxu0 %v1994
    %v2153 = vpop.f32.mrb[0].mxu0
    %v2154 = vadd.f32 %v2113, %v2153
    %v2155 = vpop.f32.mrb[0].mxu0
    %v2156 = vadd.f32 %v2115, %v2155
    %v2157 = vpop.f32.mrb[0].mxu0
    %v2158 = vpop.f32.mrb[0].mxu0
    %2159 = vdwg.mxu0
    %v2160 = vld [vmem:[%s15] sm:$0xf]
    %v2162 = vlaneseq
    %v2163 = vshrl.u32 %v2162, 7
    %v2164 = vsub.s32 0, %v2163
    %v2165 = vrot.slane %v2160, %v2164
    %v2166 = vlaneseq
    %v2167 = vshrl.u32 %v2166, 7
    %v2168 = vsub.s32 1, %v2167
    %v2169 = vrot.slane %v2160, %v2168
    %v2170 = vlaneseq
    %v2171 = vshrl.u32 %v2170, 7
    %v2172 = vsub.s32 2, %v2171
    %v2173 = vrot.slane %v2160, %v2172
    %v2174 = vlaneseq
    %v2175 = vshrl.u32 %v2174, 7
    %v2176 = vsub.s32 3, %v2175
    %v2177 = vrot.slane %v2160, %v2176
    %v2182 = vmul.f32 %v2072, %v2165
    %v2183 = vmul.f32 %v2074, %v2169
    %v2184 = vmul.f32 %v2154, %v2173
    %v2185 = vmul.f32 %v2156, %v2177
    %v2186 = vld [vmem:[%s16] sm:$0xf]
    %v2188 = vlaneseq
    %v2189 = vshrl.u32 %v2188, 7
    %v2190 = vsub.s32 0, %v2189
    %v2191 = vrot.slane %v2186, %v2190
    %v2192 = vlaneseq
    %v2193 = vshrl.u32 %v2192, 7
    %v2194 = vsub.s32 1, %v2193
    %v2195 = vrot.slane %v2186, %v2194
    %v2196 = vlaneseq
    %v2197 = vshrl.u32 %v2196, 7
    %v2198 = vsub.s32 2, %v2197
    %v2199 = vrot.slane %v2186, %v2198
    %v2200 = vlaneseq
    %v2201 = vshrl.u32 %v2200, 7
    %v2202 = vsub.s32 3, %v2201
    %v2203 = vrot.slane %v2186, %v2202
    %v2208 = vadd.f32 %v2182, %v2191
    %v2209 = vadd.f32 %v2183, %v2195
    %v2210 = vadd.f32 %v2184, %v2199
    %v2211 = vadd.f32 %v2185, %v2203
    %v2212 = vmax.f32 %v2208, 0.0
    %v2213 = vmax.f32 %v2209, 0.0
    %v2214 = vmax.f32 %v2210, 0.0
    %v2215 = vmax.f32 %v2211, 0.0
    %v2216 = vand.u32 2147483647, %v2208
    %v2217 = vand.u32 2147483647, %v2209
    %v2218 = vand.u32 2147483647, %v2210
    %v2219 = vand.u32 2147483647, %v2211
    %v2220 = vsub.f32 0.0, %v2216
    %v2221 = vsub.f32 0.0, %v2217
    %v2222 = vsub.f32 0.0, %v2218
    %v2223 = vsub.f32 0.0, %v2219
    %v2224 = vmul.f32 %v2220, 1.442695
    %v2225 = vpow.pop %v2224
    %v2226 = vmul.f32 %v2221, 1.442695
    %v2227 = vpow.pop %v2226
    %v2228 = vmul.f32 %v2222, 1.442695
    %v2229 = vpow.pop %v2228
    %v2230 = vmul.f32 %v2223, 1.442695
    %v2231 = vpow.pop %v2230
    %v2232 = vadd.f32 %v2225, 1.0
    %v2233 = vadd.f32 %v2227, 1.0
    %v2234 = vadd.f32 %v2229, 1.0
    %v2235 = vadd.f32 %v2231, 1.0
    %v2236 = vlog2.pop %v2232
    %v2237 = vmul.f32 %v2236, 0.6931472
    %v2238 = vlog2.pop %v2233
    %v2239 = vmul.f32 %v2238, 0.6931472
    %v2240 = vlog2.pop %v2234
    %v2241 = vmul.f32 %v2240, 0.6931472
    %v2242 = vlog2.pop %v2235
    %v2243 = vmul.f32 %v2242, 0.6931472
    %v2244 = vadd.f32 %v2212, %v2237
    %v2245 = vadd.f32 %v2213, %v2239
    %v2246 = vadd.f32 %v2214, %v2241
    %v2247 = vadd.f32 %v2215, %v2243
    %v2248 = vld [vmem:[#allocation11] sm:$0xff]
    %v2249 = vld [vmem:[#allocation11 + $0x8] sm:$0xff]
    %v2250 = vld [vmem:[#allocation11 + $0x10] sm:$0xff]
    %v2251 = vld [vmem:[#allocation11 + $0x18] sm:$0xff]
    %v2252 = vld [vmem:[#allocation11 + $0x20] sm:$0xff]
    %v2253 = vld [vmem:[#allocation11 + $0x28] sm:$0xff]
    %v2254 = vld [vmem:[#allocation11 + $0x30] sm:$0xff]
    %v2255 = vld [vmem:[#allocation11 + $0x38] sm:$0xff]
    %v2256 = vld [vmem:[#allocation11 + $0x40] sm:$0xff]
    %v2257 = vld [vmem:[#allocation11 + $0x48] sm:$0xff]
    %v2258 = vld [vmem:[#allocation11 + $0x50] sm:$0xff]
    %v2259 = vld [vmem:[#allocation11 + $0x58] sm:$0xff]
    %v2260 = vld [vmem:[#allocation11 + $0x60] sm:$0xff]
    %v2261 = vld [vmem:[#allocation11 + $0x68] sm:$0xff]
    %v2262 = vld [vmem:[#allocation11 + $0x70] sm:$0xff]
    %v2263 = vld [vmem:[#allocation11 + $0x78] sm:$0xff]
    %v2264 = vld [vmem:[#allocation11 + $0x80] sm:$0xff]
    %v2265 = vld [vmem:[#allocation11 + $0x88] sm:$0xff]
    %v2266 = vld [vmem:[#allocation11 + $0x90] sm:$0xff]
    %v2267 = vld [vmem:[#allocation11 + $0x98] sm:$0xff]
    %v2268 = vld [vmem:[#allocation11 + $0xa0] sm:$0xff]
    %v2269 = vld [vmem:[#allocation11 + $0xa8] sm:$0xff]
    %v2270 = vld [vmem:[#allocation11 + $0xb0] sm:$0xff]
    %v2271 = vld [vmem:[#allocation11 + $0xb8] sm:$0xff]
    %v2272 = vld [vmem:[#allocation11 + $0xc0] sm:$0xff]
    %v2273 = vld [vmem:[#allocation11 + $0xc8] sm:$0xff]
    %v2274 = vld [vmem:[#allocation11 + $0xd0] sm:$0xff]
    %v2275 = vld [vmem:[#allocation11 + $0xd8] sm:$0xff]
    %v2276 = vld [vmem:[#allocation11 + $0xe0] sm:$0xff]
    %v2277 = vld [vmem:[#allocation11 + $0xe8] sm:$0xff]
    %v2278 = vld [vmem:[#allocation11 + $0xf0] sm:$0xff]
    %v2279 = vld [vmem:[#allocation11 + $0xf8] sm:$0xff]
    %v2280 = vld [vmem:[#allocation11 + $0x100] sm:$0xff]
    %v2281 = vld [vmem:[#allocation11 + $0x108] sm:$0xff]
    %v2282 = vld [vmem:[#allocation11 + $0x110] sm:$0xff]
    %v2283 = vld [vmem:[#allocation11 + $0x118] sm:$0xff]
    %v2284 = vld [vmem:[#allocation11 + $0x120] sm:$0xff]
    %v2285 = vld [vmem:[#allocation11 + $0x128] sm:$0xff]
    %v2286 = vld [vmem:[#allocation11 + $0x130] sm:$0xff]
    %v2287 = vld [vmem:[#allocation11 + $0x138] sm:$0xff]
    %v2288 = vld [vmem:[#allocation11 + $0x140] sm:$0xff]
    %v2289 = vld [vmem:[#allocation11 + $0x148] sm:$0xff]
    %v2290 = vld [vmem:[#allocation11 + $0x150] sm:$0xff]
    %v2291 = vld [vmem:[#allocation11 + $0x158] sm:$0xff]
    %v2292 = vld [vmem:[#allocation11 + $0x160] sm:$0xff]
    %v2293 = vld [vmem:[#allocation11 + $0x168] sm:$0xff]
    %v2294 = vld [vmem:[#allocation11 + $0x170] sm:$0xff]
    %v2295 = vld [vmem:[#allocation11 + $0x178] sm:$0xff]
    %v2296 = vld [vmem:[#allocation11 + $0x180] sm:$0xff]
    %v2297 = vld [vmem:[#allocation11 + $0x188] sm:$0xff]
    %v2298 = vld [vmem:[#allocation11 + $0x190] sm:$0xff]
    %v2299 = vld [vmem:[#allocation11 + $0x198] sm:$0xff]
    %v2300 = vld [vmem:[#allocation11 + $0x1a0] sm:$0xff]
    %v2301 = vld [vmem:[#allocation11 + $0x1a8] sm:$0xff]
    %v2302 = vld [vmem:[#allocation11 + $0x1b0] sm:$0xff]
    %v2303 = vld [vmem:[#allocation11 + $0x1b8] sm:$0xff]
    %v2304 = vld [vmem:[#allocation11 + $0x1c0] sm:$0xff]
    %v2305 = vld [vmem:[#allocation11 + $0x1c8] sm:$0xff]
    %v2306 = vld [vmem:[#allocation11 + $0x1d0] sm:$0xff]
    %v2307 = vld [vmem:[#allocation11 + $0x1d8] sm:$0xff]
    %v2308 = vld [vmem:[#allocation11 + $0x1e0] sm:$0xff]
    %v2309 = vld [vmem:[#allocation11 + $0x1e8] sm:$0xff]
    %v2310 = vld [vmem:[#allocation11 + $0x1f0] sm:$0xff]
    %v2311 = vld [vmem:[#allocation11 + $0x1f8] sm:$0xff]
    %v2312 = vld [vmem:[#allocation11 + $0x200] sm:$0xff]
    %v2313 = vld [vmem:[#allocation11 + $0x208] sm:$0xff]
    %v2314 = vld [vmem:[#allocation11 + $0x210] sm:$0xff]
    %v2315 = vld [vmem:[#allocation11 + $0x218] sm:$0xff]
    %v2316 = vld [vmem:[#allocation11 + $0x220] sm:$0xff]
    %v2317 = vld [vmem:[#allocation11 + $0x228] sm:$0xff]
    %v2318 = vld [vmem:[#allocation11 + $0x230] sm:$0xff]
    %v2319 = vld [vmem:[#allocation11 + $0x238] sm:$0xff]
    %v2320 = vld [vmem:[#allocation11 + $0x240] sm:$0xff]
    %v2321 = vld [vmem:[#allocation11 + $0x248] sm:$0xff]
    %v2322 = vld [vmem:[#allocation11 + $0x250] sm:$0xff]
    %v2323 = vld [vmem:[#allocation11 + $0x258] sm:$0xff]
    %v2324 = vld [vmem:[#allocation11 + $0x260] sm:$0xff]
    %v2325 = vld [vmem:[#allocation11 + $0x268] sm:$0xff]
    %v2326 = vld [vmem:[#allocation11 + $0x270] sm:$0xff]
    %v2327 = vld [vmem:[#allocation11 + $0x278] sm:$0xff]
    %v2328 = vld [vmem:[#allocation11 + $0x280] sm:$0xff]
    %v2329 = vld [vmem:[#allocation11 + $0x288] sm:$0xff]
    %v2330 = vld [vmem:[#allocation11 + $0x290] sm:$0xff]
    %v2331 = vld [vmem:[#allocation11 + $0x298] sm:$0xff]
    %v2332 = vld [vmem:[#allocation11 + $0x2a0] sm:$0xff]
    %v2333 = vld [vmem:[#allocation11 + $0x2a8] sm:$0xff]
    %v2334 = vld [vmem:[#allocation11 + $0x2b0] sm:$0xff]
    %v2335 = vld [vmem:[#allocation11 + $0x2b8] sm:$0xff]
    %v2336 = vld [vmem:[#allocation11 + $0x2c0] sm:$0xff]
    %v2337 = vld [vmem:[#allocation11 + $0x2c8] sm:$0xff]
    %v2338 = vld [vmem:[#allocation11 + $0x2d0] sm:$0xff]
    %v2339 = vld [vmem:[#allocation11 + $0x2d8] sm:$0xff]
    %v2340 = vld [vmem:[#allocation11 + $0x2e0] sm:$0xff]
    %v2341 = vld [vmem:[#allocation11 + $0x2e8] sm:$0xff]
    %v2342 = vld [vmem:[#allocation11 + $0x2f0] sm:$0xff]
    %v2343 = vld [vmem:[#allocation11 + $0x2f8] sm:$0xff]
    %v2344 = vld [vmem:[#allocation11 + $0x300] sm:$0xff]
    %v2345 = vld [vmem:[#allocation11 + $0x308] sm:$0xff]
    %v2346 = vld [vmem:[#allocation11 + $0x310] sm:$0xff]
    %v2347 = vld [vmem:[#allocation11 + $0x318] sm:$0xff]
    %v2348 = vld [vmem:[#allocation11 + $0x320] sm:$0xff]
    %v2349 = vld [vmem:[#allocation11 + $0x328] sm:$0xff]
    %v2350 = vld [vmem:[#allocation11 + $0x330] sm:$0xff]
    %v2351 = vld [vmem:[#allocation11 + $0x338] sm:$0xff]
    %v2352 = vld [vmem:[#allocation11 + $0x340] sm:$0xff]
    %v2353 = vld [vmem:[#allocation11 + $0x348] sm:$0xff]
    %v2354 = vld [vmem:[#allocation11 + $0x350] sm:$0xff]
    %v2355 = vld [vmem:[#allocation11 + $0x358] sm:$0xff]
    %v2356 = vld [vmem:[#allocation11 + $0x360] sm:$0xff]
    %v2357 = vld [vmem:[#allocation11 + $0x368] sm:$0xff]
    %v2358 = vld [vmem:[#allocation11 + $0x370] sm:$0xff]
    %v2359 = vld [vmem:[#allocation11 + $0x378] sm:$0xff]
    %v2360 = vunpack.c.l.s8.bf16 %v2248
    %v2361 = vunpack.c.l.s8.bf16 %v2249
    %v2362 = vunpack.c.l.s8.bf16 %v2250
    %v2363 = vunpack.c.l.s8.bf16 %v2251
    %v2364 = vunpack.c.l.s8.bf16 %v2252
    %v2365 = vunpack.c.l.s8.bf16 %v2253
    %v2366 = vunpack.c.l.s8.bf16 %v2254
    %v2367 = vunpack.c.h.s8.bf16 %v2248
    %v2368 = vunpack.c.h.s8.bf16 %v2249
    %v2369 = vunpack.c.h.s8.bf16 %v2250
    %v2370 = vunpack.c.h.s8.bf16 %v2251
    %v2371 = vunpack.c.h.s8.bf16 %v2252
    %v2372 = vunpack.c.h.s8.bf16 %v2253
    %v2373 = vunpack.c.h.s8.bf16 %v2254
    %v2374 = vunpack.c.l.s8.bf16 %v2255
    %v2375 = vunpack.c.l.s8.bf16 %v2256
    %v2376 = vunpack.c.l.s8.bf16 %v2257
    %v2377 = vunpack.c.l.s8.bf16 %v2258
    %v2378 = vunpack.c.l.s8.bf16 %v2259
    %v2379 = vunpack.c.l.s8.bf16 %v2260
    %v2380 = vunpack.c.l.s8.bf16 %v2261
    %v2381 = vunpack.c.h.s8.bf16 %v2255
    %v2382 = vunpack.c.h.s8.bf16 %v2256
    %v2383 = vunpack.c.h.s8.bf16 %v2257
    %v2384 = vunpack.c.h.s8.bf16 %v2258
    %v2385 = vunpack.c.h.s8.bf16 %v2259
    %v2386 = vunpack.c.h.s8.bf16 %v2260
    %v2387 = vunpack.c.h.s8.bf16 %v2261
    %v2388 = vunpack.c.l.s8.bf16 %v2262
    %v2389 = vunpack.c.l.s8.bf16 %v2263
    %v2390 = vunpack.c.l.s8.bf16 %v2264
    %v2391 = vunpack.c.l.s8.bf16 %v2265
    %v2392 = vunpack.c.l.s8.bf16 %v2266
    %v2393 = vunpack.c.l.s8.bf16 %v2267
    %v2394 = vunpack.c.l.s8.bf16 %v2268
    %v2395 = vunpack.c.h.s8.bf16 %v2262
    %v2396 = vunpack.c.h.s8.bf16 %v2263
    %v2397 = vunpack.c.h.s8.bf16 %v2264
    %v2398 = vunpack.c.h.s8.bf16 %v2265
    %v2399 = vunpack.c.h.s8.bf16 %v2266
    %v2400 = vunpack.c.h.s8.bf16 %v2267
    %v2401 = vunpack.c.h.s8.bf16 %v2268
    %v2402 = vunpack.c.l.s8.bf16 %v2269
    %v2403 = vunpack.c.l.s8.bf16 %v2270
    %v2404 = vunpack.c.l.s8.bf16 %v2271
    %v2405 = vunpack.c.l.s8.bf16 %v2272
    %v2406 = vunpack.c.l.s8.bf16 %v2273
    %v2407 = vunpack.c.l.s8.bf16 %v2274
    %v2408 = vunpack.c.l.s8.bf16 %v2275
    %v2409 = vunpack.c.h.s8.bf16 %v2269
    %v2410 = vunpack.c.h.s8.bf16 %v2270
    %v2411 = vunpack.c.h.s8.bf16 %v2271
    %v2412 = vunpack.c.h.s8.bf16 %v2272
    %v2413 = vunpack.c.h.s8.bf16 %v2273
    %v2414 = vunpack.c.h.s8.bf16 %v2274
    %v2415 = vunpack.c.h.s8.bf16 %v2275
    %v2416 = vunpack.c.l.s8.bf16 %v2276
    %v2417 = vunpack.c.l.s8.bf16 %v2277
    %v2418 = vunpack.c.l.s8.bf16 %v2278
    %v2419 = vunpack.c.l.s8.bf16 %v2279
    %v2420 = vunpack.c.l.s8.bf16 %v2280
    %v2421 = vunpack.c.l.s8.bf16 %v2281
    %v2422 = vunpack.c.l.s8.bf16 %v2282
    %v2423 = vunpack.c.h.s8.bf16 %v2276
    %v2424 = vunpack.c.h.s8.bf16 %v2277
    %v2425 = vunpack.c.h.s8.bf16 %v2278
    %v2426 = vunpack.c.h.s8.bf16 %v2279
    %v2427 = vunpack.c.h.s8.bf16 %v2280
    %v2428 = vunpack.c.h.s8.bf16 %v2281
    %v2429 = vunpack.c.h.s8.bf16 %v2282
    %v2430 = vunpack.c.l.s8.bf16 %v2283
    %v2431 = vunpack.c.l.s8.bf16 %v2284
    %v2432 = vunpack.c.l.s8.bf16 %v2285
    %v2433 = vunpack.c.l.s8.bf16 %v2286
    %v2434 = vunpack.c.l.s8.bf16 %v2287
    %v2435 = vunpack.c.l.s8.bf16 %v2288
    %v2436 = vunpack.c.l.s8.bf16 %v2289
    %v2437 = vunpack.c.h.s8.bf16 %v2283
    %v2438 = vunpack.c.h.s8.bf16 %v2284
    %v2439 = vunpack.c.h.s8.bf16 %v2285
    %v2440 = vunpack.c.h.s8.bf16 %v2286
    %v2441 = vunpack.c.h.s8.bf16 %v2287
    %v2442 = vunpack.c.h.s8.bf16 %v2288
    %v2443 = vunpack.c.h.s8.bf16 %v2289
    %v2444 = vunpack.c.l.s8.bf16 %v2290
    %v2445 = vunpack.c.l.s8.bf16 %v2291
    %v2446 = vunpack.c.l.s8.bf16 %v2292
    %v2447 = vunpack.c.l.s8.bf16 %v2293
    %v2448 = vunpack.c.l.s8.bf16 %v2294
    %v2449 = vunpack.c.l.s8.bf16 %v2295
    %v2450 = vunpack.c.l.s8.bf16 %v2296
    %v2451 = vunpack.c.h.s8.bf16 %v2290
    %v2452 = vunpack.c.h.s8.bf16 %v2291
    %v2453 = vunpack.c.h.s8.bf16 %v2292
    %v2454 = vunpack.c.h.s8.bf16 %v2293
    %v2455 = vunpack.c.h.s8.bf16 %v2294
    %v2456 = vunpack.c.h.s8.bf16 %v2295
    %v2457 = vunpack.c.h.s8.bf16 %v2296
    %v2458 = vunpack.c.l.s8.bf16 %v2297
    %v2459 = vunpack.c.l.s8.bf16 %v2298
    %v2460 = vunpack.c.l.s8.bf16 %v2299
    %v2461 = vunpack.c.l.s8.bf16 %v2300
    %v2462 = vunpack.c.l.s8.bf16 %v2301
    %v2463 = vunpack.c.l.s8.bf16 %v2302
    %v2464 = vunpack.c.l.s8.bf16 %v2303
    %v2465 = vunpack.c.h.s8.bf16 %v2297
    %v2466 = vunpack.c.h.s8.bf16 %v2298
    %v2467 = vunpack.c.h.s8.bf16 %v2299
    %v2468 = vunpack.c.h.s8.bf16 %v2300
    %v2469 = vunpack.c.h.s8.bf16 %v2301
    %v2470 = vunpack.c.h.s8.bf16 %v2302
    %v2471 = vunpack.c.h.s8.bf16 %v2303
    %v2472 = vunpack.c.l.s8.bf16 %v2304
    %v2473 = vunpack.c.l.s8.bf16 %v2305
    %v2474 = vunpack.c.l.s8.bf16 %v2306
    %v2475 = vunpack.c.l.s8.bf16 %v2307
    %v2476 = vunpack.c.l.s8.bf16 %v2308
    %v2477 = vunpack.c.l.s8.bf16 %v2309
    %v2478 = vunpack.c.l.s8.bf16 %v2310
    %v2479 = vunpack.c.h.s8.bf16 %v2304
    %v2480 = vunpack.c.h.s8.bf16 %v2305
    %v2481 = vunpack.c.h.s8.bf16 %v2306
    %v2482 = vunpack.c.h.s8.bf16 %v2307
    %v2483 = vunpack.c.h.s8.bf16 %v2308
    %v2484 = vunpack.c.h.s8.bf16 %v2309
    %v2485 = vunpack.c.h.s8.bf16 %v2310
    %v2486 = vunpack.c.l.s8.bf16 %v2311
    %v2487 = vunpack.c.l.s8.bf16 %v2312
    %v2488 = vunpack.c.l.s8.bf16 %v2313
    %v2489 = vunpack.c.l.s8.bf16 %v2314
    %v2490 = vunpack.c.l.s8.bf16 %v2315
    %v2491 = vunpack.c.l.s8.bf16 %v2316
    %v2492 = vunpack.c.l.s8.bf16 %v2317
    %v2493 = vunpack.c.h.s8.bf16 %v2311
    %v2494 = vunpack.c.h.s8.bf16 %v2312
    %v2495 = vunpack.c.h.s8.bf16 %v2313
    %v2496 = vunpack.c.h.s8.bf16 %v2314
    %v2497 = vunpack.c.h.s8.bf16 %v2315
    %v2498 = vunpack.c.h.s8.bf16 %v2316
    %v2499 = vunpack.c.h.s8.bf16 %v2317
    %v2500 = vunpack.c.l.s8.bf16 %v2318
    %v2501 = vunpack.c.l.s8.bf16 %v2319
    %v2502 = vunpack.c.l.s8.bf16 %v2320
    %v2503 = vunpack.c.l.s8.bf16 %v2321
    %v2504 = vunpack.c.l.s8.bf16 %v2322
    %v2505 = vunpack.c.l.s8.bf16 %v2323
    %v2506 = vunpack.c.l.s8.bf16 %v2324
    %v2507 = vunpack.c.h.s8.bf16 %v2318
    %v2508 = vunpack.c.h.s8.bf16 %v2319
    %v2509 = vunpack.c.h.s8.bf16 %v2320
    %v2510 = vunpack.c.h.s8.bf16 %v2321
    %v2511 = vunpack.c.h.s8.bf16 %v2322
    %v2512 = vunpack.c.h.s8.bf16 %v2323
    %v2513 = vunpack.c.h.s8.bf16 %v2324
    %v2514 = vunpack.c.l.s8.bf16 %v2325
    %v2515 = vunpack.c.l.s8.bf16 %v2326
    %v2516 = vunpack.c.l.s8.bf16 %v2327
    %v2517 = vunpack.c.l.s8.bf16 %v2328
    %v2518 = vunpack.c.l.s8.bf16 %v2329
    %v2519 = vunpack.c.l.s8.bf16 %v2330
    %v2520 = vunpack.c.l.s8.bf16 %v2331
    %v2521 = vunpack.c.h.s8.bf16 %v2325
    %v2522 = vunpack.c.h.s8.bf16 %v2326
    %v2523 = vunpack.c.h.s8.bf16 %v2327
    %v2524 = vunpack.c.h.s8.bf16 %v2328
    %v2525 = vunpack.c.h.s8.bf16 %v2329
    %v2526 = vunpack.c.h.s8.bf16 %v2330
    %v2527 = vunpack.c.h.s8.bf16 %v2331
    %v2528 = vunpack.c.l.s8.bf16 %v2332
    %v2529 = vunpack.c.l.s8.bf16 %v2333
    %v2530 = vunpack.c.l.s8.bf16 %v2334
    %v2531 = vunpack.c.l.s8.bf16 %v2335
    %v2532 = vunpack.c.l.s8.bf16 %v2336
    %v2533 = vunpack.c.l.s8.bf16 %v2337
    %v2534 = vunpack.c.l.s8.bf16 %v2338
    %v2535 = vunpack.c.h.s8.bf16 %v2332
    %v2536 = vunpack.c.h.s8.bf16 %v2333
    %v2537 = vunpack.c.h.s8.bf16 %v2334
    %v2538 = vunpack.c.h.s8.bf16 %v2335
    %v2539 = vunpack.c.h.s8.bf16 %v2336
    %v2540 = vunpack.c.h.s8.bf16 %v2337
    %v2541 = vunpack.c.h.s8.bf16 %v2338
    %v2542 = vunpack.c.l.s8.bf16 %v2339
    %v2543 = vunpack.c.l.s8.bf16 %v2340
    %v2544 = vunpack.c.l.s8.bf16 %v2341
    %v2545 = vunpack.c.l.s8.bf16 %v2342
    %v2546 = vunpack.c.l.s8.bf16 %v2343
    %v2547 = vunpack.c.l.s8.bf16 %v2344
    %v2548 = vunpack.c.l.s8.bf16 %v2345
    %v2549 = vunpack.c.h.s8.bf16 %v2339
    %v2550 = vunpack.c.h.s8.bf16 %v2340
    %v2551 = vunpack.c.h.s8.bf16 %v2341
    %v2552 = vunpack.c.h.s8.bf16 %v2342
    %v2553 = vunpack.c.h.s8.bf16 %v2343
    %v2554 = vunpack.c.h.s8.bf16 %v2344
    %v2555 = vunpack.c.h.s8.bf16 %v2345
    %v2556 = vunpack.c.l.s8.bf16 %v2346
    %v2557 = vunpack.c.l.s8.bf16 %v2347
    %v2558 = vunpack.c.l.s8.bf16 %v2348
    %v2559 = vunpack.c.l.s8.bf16 %v2349
    %v2560 = vunpack.c.l.s8.bf16 %v2350
    %v2561 = vunpack.c.l.s8.bf16 %v2351
    %v2562 = vunpack.c.l.s8.bf16 %v2352
    %v2563 = vunpack.c.h.s8.bf16 %v2346
    %v2564 = vunpack.c.h.s8.bf16 %v2347
    %v2565 = vunpack.c.h.s8.bf16 %v2348
    %v2566 = vunpack.c.h.s8.bf16 %v2349
    %v2567 = vunpack.c.h.s8.bf16 %v2350
    %v2568 = vunpack.c.h.s8.bf16 %v2351
    %v2569 = vunpack.c.h.s8.bf16 %v2352
    %v2570 = vunpack.c.l.s8.bf16 %v2353
    %v2571 = vunpack.c.l.s8.bf16 %v2354
    %v2572 = vunpack.c.l.s8.bf16 %v2355
    %v2573 = vunpack.c.l.s8.bf16 %v2356
    %v2574 = vunpack.c.l.s8.bf16 %v2357
    %v2575 = vunpack.c.l.s8.bf16 %v2358
    %v2576 = vunpack.c.l.s8.bf16 %v2359
    %v2577 = vunpack.c.h.s8.bf16 %v2353
    %v2578 = vunpack.c.h.s8.bf16 %v2354
    %v2579 = vunpack.c.h.s8.bf16 %v2355
    %v2580 = vunpack.c.h.s8.bf16 %v2356
    %v2581 = vunpack.c.h.s8.bf16 %v2357
    %v2582 = vunpack.c.h.s8.bf16 %v2358
    %v2583 = vunpack.c.h.s8.bf16 %v2359
    %v2584 = vpack.c.bf16 %v2244, %v2244
    %v2585 = vpack.c.bf16 %v2245, %v2245
    %v2586 = vpack.c.bf16 %v2246, %v2246
    %v2587 = vpack.c.bf16 %v2247, %v2247
    %2588 = vmatprep.subr.bf16.mxu0 %v2361
    %2589 = vmatpush1.bf16.msra.mxu0 %v2360
    %2590 = vmatprep.subr.bf16.mxu0 %v2368
    %2591 = vmatpush1.bf16.msra.mxu0 %v2367
    %2592 = vmatprep.subr.bf16.mxu0 %v2375
    %2593 = vmatpush1.bf16.msra.mxu0 %v2374
    %2594 = vmatprep.subr.bf16.mxu0 %v2382
    %2595 = vmatpush1.bf16.msra.mxu0 %v2381
    %2596 = vmatprep.subr.bf16.mxu0 %v2389
    %2597 = vmatpush1.bf16.msra.mxu0 %v2388
    %2598 = vmatprep.subr.bf16.mxu0 %v2396
    %2599 = vmatpush1.bf16.msra.mxu0 %v2395
    %2600 = vmatprep.subr.bf16.mxu0 %v2403
    %2601 = vmatpush1.bf16.msra.mxu0 %v2402
    %2602 = vmatprep.subr.bf16.mxu0 %v2410
    %2603 = vmatpush1.bf16.msra.mxu0 %v2409
    %2604 = vmatprep.subr.bf16.mxu0 %v2417
    %2605 = vmatpush1.bf16.msra.mxu0 %v2416
    %2606 = vmatprep.subr.bf16.mxu0 %v2424
    %2607 = vmatpush1.bf16.msra.mxu0 %v2423
    %2608 = vmatprep.subr.bf16.mxu0 %v2431
    %2609 = vmatpush1.bf16.msra.mxu0 %v2430
    %2610 = vmatprep.subr.bf16.mxu0 %v2438
    %2611 = vmatpush1.bf16.msra.mxu0 %v2437
    %2612 = vmatprep.subr.bf16.mxu0 %v2445
    %2613 = vmatpush1.bf16.msra.mxu0 %v2444
    %2614 = vmatprep.subr.bf16.mxu0 %v2452
    %2615 = vmatpush1.bf16.msra.mxu0 %v2451
    %2616 = vmatprep.subr.bf16.mxu0 %v2459
    %2617 = vmatpush1.bf16.msra.mxu0 %v2458
    %2618 = vmatprep.subr.bf16.mxu0 %v2466
    %2619 = vmatpush1.bf16.msra.mxu0 %v2465
    %2620 = vmatprep.mubr.bf16.mxu0 %v2585
    %2621 = vmatmul.mubr.bf16.gmra.mrb[0].mxu0 %v2584
    %v2622 = vpop.f32.mrb[0].mxu0
    %v2623 = vadd.f32 0.0, %v2622
    %v2624 = vpop.f32.mrb[0].mxu0
    %v2625 = vadd.f32 0.0, %v2624
    %v2626 = vpop.f32.mrb[0].mxu0
    %v2627 = vpop.f32.mrb[0].mxu0
    %2628 = vdwg.mxu0
    %2629 = vmatprep.subr.bf16.mxu0 %v2473
    %2630 = vmatpush1.bf16.msra.mxu0 %v2472
    %2631 = vmatprep.subr.bf16.mxu0 %v2480
    %2632 = vmatpush1.bf16.msra.mxu0 %v2479
    %2633 = vmatprep.subr.bf16.mxu0 %v2487
    %2634 = vmatpush1.bf16.msra.mxu0 %v2486
    %2635 = vmatprep.subr.bf16.mxu0 %v2494
    %2636 = vmatpush1.bf16.msra.mxu0 %v2493
    %2637 = vmatprep.subr.bf16.mxu0 %v2501
    %2638 = vmatpush1.bf16.msra.mxu0 %v2500
    %2639 = vmatprep.subr.bf16.mxu0 %v2508
    %2640 = vmatpush1.bf16.msra.mxu0 %v2507
    %2641 = vmatprep.subr.bf16.mxu0 %v2515
    %2642 = vmatpush1.bf16.msra.mxu0 %v2514
    %2643 = vmatprep.subr.bf16.mxu0 %v2522
    %2644 = vmatpush1.bf16.msra.mxu0 %v2521
    %2645 = vmatprep.subr.bf16.mxu0 %v2529
    %2646 = vmatpush1.bf16.msra.mxu0 %v2528
    %2647 = vmatprep.subr.bf16.mxu0 %v2536
    %2648 = vmatpush1.bf16.msra.mxu0 %v2535
    %2649 = vmatprep.subr.bf16.mxu0 %v2543
    %2650 = vmatpush1.bf16.msra.mxu0 %v2542
    %2651 = vmatprep.subr.bf16.mxu0 %v2550
    %2652 = vmatpush1.bf16.msra.mxu0 %v2549
    %2653 = vmatprep.subr.bf16.mxu0 %v2557
    %2654 = vmatpush1.bf16.msra.mxu0 %v2556
    %2655 = vmatprep.subr.bf16.mxu0 %v2564
    %2656 = vmatpush1.bf16.msra.mxu0 %v2563
    %2657 = vmatprep.subr.bf16.mxu0 %v2571
    %2658 = vmatpush1.bf16.msra.mxu0 %v2570
    %2659 = vmatprep.subr.bf16.mxu0 %v2578
    %2660 = vmatpush1.bf16.msra.mxu0 %v2577
    %2661 = vmatprep.mubr.bf16.mxu0 %v2587
    %2662 = vmatmul.mubr.bf16.gmra.mrb[0].mxu0 %v2586
    %v2663 = vpop.f32.mrb[0].mxu0
    %v2664 = vadd.f32 %v2623, %v2663
    %v2665 = vpop.f32.mrb[0].mxu0
    %v2666 = vadd.f32 %v2625, %v2665
    %v2667 = vpop.f32.mrb[0].mxu0
    %v2668 = vpop.f32.mrb[0].mxu0
    %2669 = vdwg.mxu0
    %2670 = vmatprep.subr.bf16.mxu0 %v2363
    %2671 = vmatpush1.bf16.msra.mxu0 %v2362
    %2672 = vmatprep.subr.bf16.mxu0 %v2370
    %2673 = vmatpush1.bf16.msra.mxu0 %v2369
    %2674 = vmatprep.subr.bf16.mxu0 %v2377
    %2675 = vmatpush1.bf16.msra.mxu0 %v2376
    %2676 = vmatprep.subr.bf16.mxu0 %v2384
    %2677 = vmatpush1.bf16.msra.mxu0 %v2383
    %2678 = vmatprep.subr.bf16.mxu0 %v2391
    %2679 = vmatpush1.bf16.msra.mxu0 %v2390
    %2680 = vmatprep.subr.bf16.mxu0 %v2398
    %2681 = vmatpush1.bf16.msra.mxu0 %v2397
    %2682 = vmatprep.subr.bf16.mxu0 %v2405
    %2683 = vmatpush1.bf16.msra.mxu0 %v2404
    %2684 = vmatprep.subr.bf16.mxu0 %v2412
    %2685 = vmatpush1.bf16.msra.mxu0 %v2411
    %2686 = vmatprep.subr.bf16.mxu0 %v2419
    %2687 = vmatpush1.bf16.msra.mxu0 %v2418
    %2688 = vmatprep.subr.bf16.mxu0 %v2426
    %2689 = vmatpush1.bf16.msra.mxu0 %v2425
    %2690 = vmatprep.subr.bf16.mxu0 %v2433
    %2691 = vmatpush1.bf16.msra.mxu0 %v2432
    %2692 = vmatprep.subr.bf16.mxu0 %v2440
    %2693 = vmatpush1.bf16.msra.mxu0 %v2439
    %2694 = vmatprep.subr.bf16.mxu0 %v2447
    %2695 = vmatpush1.bf16.msra.mxu0 %v2446
    %2696 = vmatprep.subr.bf16.mxu0 %v2454
    %2697 = vmatpush1.bf16.msra.mxu0 %v2453
    %2698 = vmatprep.subr.bf16.mxu0 %v2461
    %2699 = vmatpush1.bf16.msra.mxu0 %v2460
    %2700 = vmatprep.subr.bf16.mxu0 %v2468
    %2701 = vmatpush1.bf16.msra.mxu0 %v2467
    %2702 = vmatprep.mubr.bf16.mxu0 %v2585
    %2703 = vmatmul.mubr.bf16.gmra.mrb[0].mxu0 %v2584
    %v2704 = vpop.f32.mrb[0].mxu0
    %v2705 = vadd.f32 0.0, %v2704
    %v2706 = vpop.f32.mrb[0].mxu0
    %v2707 = vadd.f32 0.0, %v2706
    %v2708 = vpop.f32.mrb[0].mxu0
    %v2709 = vpop.f32.mrb[0].mxu0
    %2710 = vdwg.mxu0
    %2711 = vmatprep.subr.bf16.mxu0 %v2475
    %2712 = vmatpush1.bf16.msra.mxu0 %v2474
    %2713 = vmatprep.subr.bf16.mxu0 %v2482
    %2714 = vmatpush1.bf16.msra.mxu0 %v2481
    %2715 = vmatprep.subr.bf16.mxu0 %v2489
    %2716 = vmatpush1.bf16.msra.mxu0 %v2488
    %2717 = vmatprep.subr.bf16.mxu0 %v2496
    %2718 = vmatpush1.bf16.msra.mxu0 %v2495
    %2719 = vmatprep.subr.bf16.mxu0 %v2503
    %2720 = vmatpush1.bf16.msra.mxu0 %v2502
    %2721 = vmatprep.subr.bf16.mxu0 %v2510
    %2722 = vmatpush1.bf16.msra.mxu0 %v2509
    %2723 = vmatprep.subr.bf16.mxu0 %v2517
    %2724 = vmatpush1.bf16.msra.mxu0 %v2516
    %2725 = vmatprep.subr.bf16.mxu0 %v2524
    %2726 = vmatpush1.bf16.msra.mxu0 %v2523
    %2727 = vmatprep.subr.bf16.mxu0 %v2531
    %2728 = vmatpush1.bf16.msra.mxu0 %v2530
    %2729 = vmatprep.subr.bf16.mxu0 %v2538
    %2730 = vmatpush1.bf16.msra.mxu0 %v2537
    %2731 = vmatprep.subr.bf16.mxu0 %v2545
    %2732 = vmatpush1.bf16.msra.mxu0 %v2544
    %2733 = vmatprep.subr.bf16.mxu0 %v2552
    %2734 = vmatpush1.bf16.msra.mxu0 %v2551
    %2735 = vmatprep.subr.bf16.mxu0 %v2559
    %2736 = vmatpush1.bf16.msra.mxu0 %v2558
    %2737 = vmatprep.subr.bf16.mxu0 %v2566
    %2738 = vmatpush1.bf16.msra.mxu0 %v2565
    %2739 = vmatprep.subr.bf16.mxu0 %v2573
    %2740 = vmatpush1.bf16.msra.mxu0 %v2572
    %2741 = vmatprep.subr.bf16.mxu0 %v2580
    %2742 = vmatpush1.bf16.msra.mxu0 %v2579
    %2743 = vmatprep.mubr.bf16.mxu0 %v2587
    %2744 = vmatmul.mubr.bf16.gmra.mrb[0].mxu0 %v2586
    %v2745 = vpop.f32.mrb[0].mxu0
    %v2746 = vadd.f32 %v2705, %v2745
    %v2747 = vpop.f32.mrb[0].mxu0
    %v2748 = vadd.f32 %v2707, %v2747
    %v2749 = vpop.f32.mrb[0].mxu0
    %v2750 = vpop.f32.mrb[0].mxu0
    %2751 = vdwg.mxu0
    %2752 = vmatprep.subr.bf16.mxu0 %v2365
    %2753 = vmatpush1.bf16.msra.mxu0 %v2364
    %2754 = vmatprep.subr.bf16.mxu0 %v2372
    %2755 = vmatpush1.bf16.msra.mxu0 %v2371
    %2756 = vmatprep.subr.bf16.mxu0 %v2379
    %2757 = vmatpush1.bf16.msra.mxu0 %v2378
    %2758 = vmatprep.subr.bf16.mxu0 %v2386
    %2759 = vmatpush1.bf16.msra.mxu0 %v2385
    %2760 = vmatprep.subr.bf16.mxu0 %v2393
    %2761 = vmatpush1.bf16.msra.mxu0 %v2392
    %2762 = vmatprep.subr.bf16.mxu0 %v2400
    %2763 = vmatpush1.bf16.msra.mxu0 %v2399
    %2764 = vmatprep.subr.bf16.mxu0 %v2407
    %2765 = vmatpush1.bf16.msra.mxu0 %v2406
    %2766 = vmatprep.subr.bf16.mxu0 %v2414
    %2767 = vmatpush1.bf16.msra.mxu0 %v2413
    %2768 = vmatprep.subr.bf16.mxu0 %v2421
    %2769 = vmatpush1.bf16.msra.mxu0 %v2420
    %2770 = vmatprep.subr.bf16.mxu0 %v2428
    %2771 = vmatpush1.bf16.msra.mxu0 %v2427
    %2772 = vmatprep.subr.bf16.mxu0 %v2435
    %2773 = vmatpush1.bf16.msra.mxu0 %v2434
    %2774 = vmatprep.subr.bf16.mxu0 %v2442
    %2775 = vmatpush1.bf16.msra.mxu0 %v2441
    %2776 = vmatprep.subr.bf16.mxu0 %v2449
    %2777 = vmatpush1.bf16.msra.mxu0 %v2448
    %2778 = vmatprep.subr.bf16.mxu0 %v2456
    %2779 = vmatpush1.bf16.msra.mxu0 %v2455
    %2780 = vmatprep.subr.bf16.mxu0 %v2463
    %2781 = vmatpush1.bf16.msra.mxu0 %v2462
    %2782 = vmatprep.subr.bf16.mxu0 %v2470
    %2783 = vmatpush1.bf16.msra.mxu0 %v2469
    %2784 = vmatprep.mubr.bf16.mxu0 %v2585
    %2785 = vmatmul.mubr.bf16.gmra.mrb[0].mxu0 %v2584
    %v2786 = vpop.f32.mrb[0].mxu0
    %v2787 = vadd.f32 0.0, %v2786
    %v2788 = vpop.f32.mrb[0].mxu0
    %v2789 = vadd.f32 0.0, %v2788
    %v2790 = vpop.f32.mrb[0].mxu0
    %v2791 = vpop.f32.mrb[0].mxu0
    %2792 = vdwg.mxu0
    %2793 = vmatprep.subr.bf16.mxu0 %v2477
    %2794 = vmatpush1.bf16.msra.mxu0 %v2476
    %2795 = vmatprep.subr.bf16.mxu0 %v2484
    %2796 = vmatpush1.bf16.msra.mxu0 %v2483
    %2797 = vmatprep.subr.bf16.mxu0 %v2491
    %2798 = vmatpush1.bf16.msra.mxu0 %v2490
    %2799 = vmatprep.subr.bf16.mxu0 %v2498
    %2800 = vmatpush1.bf16.msra.mxu0 %v2497
    %2801 = vmatprep.subr.bf16.mxu0 %v2505
    %2802 = vmatpush1.bf16.msra.mxu0 %v2504
    %2803 = vmatprep.subr.bf16.mxu0 %v2512
    %2804 = vmatpush1.bf16.msra.mxu0 %v2511
    %2805 = vmatprep.subr.bf16.mxu0 %v2519
    %2806 = vmatpush1.bf16.msra.mxu0 %v2518
    %2807 = vmatprep.subr.bf16.mxu0 %v2526
    %2808 = vmatpush1.bf16.msra.mxu0 %v2525
    %2809 = vmatprep.subr.bf16.mxu0 %v2533
    %2810 = vmatpush1.bf16.msra.mxu0 %v2532
    %2811 = vmatprep.subr.bf16.mxu0 %v2540
    %2812 = vmatpush1.bf16.msra.mxu0 %v2539
    %2813 = vmatprep.subr.bf16.mxu0 %v2547
    %2814 = vmatpush1.bf16.msra.mxu0 %v2546
    %2815 = vmatprep.subr.bf16.mxu0 %v2554
    %2816 = vmatpush1.bf16.msra.mxu0 %v2553
    %2817 = vmatprep.subr.bf16.mxu0 %v2561
    %2818 = vmatpush1.bf16.msra.mxu0 %v2560
    %2819 = vmatprep.subr.bf16.mxu0 %v2568
    %2820 = vmatpush1.bf16.msra.mxu0 %v2567
    %2821 = vmatprep.subr.bf16.mxu0 %v2575
    %2822 = vmatpush1.bf16.msra.mxu0 %v2574
    %2823 = vmatprep.subr.bf16.mxu0 %v2582
    %2824 = vmatpush1.bf16.msra.mxu0 %v2581
    %2825 = vmatprep.mubr.bf16.mxu0 %v2587
    %2826 = vmatmul.mubr.bf16.gmra.mrb[0].mxu0 %v2586
    %v2827 = vpop.f32.mrb[0].mxu0
    %v2828 = vadd.f32 %v2787, %v2827
    %v2829 = vpop.f32.mrb[0].mxu0
    %v2830 = vadd.f32 %v2789, %v2829
    %v2831 = vpop.f32.mrb[0].mxu0
    %v2832 = vpop.f32.mrb[0].mxu0
    %2833 = vdwg.mxu0
    %2834 = vmatprep.subr.bf16.mxu0 0
    %2835 = vmatpush1.bf16.msra.mxu0 %v2366
    %2836 = vmatprep.subr.bf16.mxu0 0
    %2837 = vmatpush1.bf16.msra.mxu0 %v2373
    %2838 = vmatprep.subr.bf16.mxu0 0
    %2839 = vmatpush1.bf16.msra.mxu0 %v2380
    %2840 = vmatprep.subr.bf16.mxu0 0
    %2841 = vmatpush1.bf16.msra.mxu0 %v2387
    %2842 = vmatprep.subr.bf16.mxu0 0
    %2843 = vmatpush1.bf16.msra.mxu0 %v2394
    %2844 = vmatprep.subr.bf16.mxu0 0
    %2845 = vmatpush1.bf16.msra.mxu0 %v2401
    %2846 = vmatprep.subr.bf16.mxu0 0
    %2847 = vmatpush1.bf16.msra.mxu0 %v2408
    %2848 = vmatprep.subr.bf16.mxu0 0
    %2849 = vmatpush1.bf16.msra.mxu0 %v2415
    %2850 = vmatprep.subr.bf16.mxu0 0
    %2851 = vmatpush1.bf16.msra.mxu0 %v2422
    %2852 = vmatprep.subr.bf16.mxu0 0
    %2853 = vmatpush1.bf16.msra.mxu0 %v2429
    %2854 = vmatprep.subr.bf16.mxu0 0
    %2855 = vmatpush1.bf16.msra.mxu0 %v2436
    %2856 = vmatprep.subr.bf16.mxu0 0
    %2857 = vmatpush1.bf16.msra.mxu0 %v2443
    %2858 = vmatprep.subr.bf16.mxu0 0
    %2859 = vmatpush1.bf16.msra.mxu0 %v2450
    %2860 = vmatprep.subr.bf16.mxu0 0
    %2861 = vmatpush1.bf16.msra.mxu0 %v2457
    %2862 = vmatprep.subr.bf16.mxu0 0
    %2863 = vmatpush1.bf16.msra.mxu0 %v2464
    %2864 = vmatprep.subr.bf16.mxu0 0
    %2865 = vmatpush1.bf16.msra.mxu0 %v2471
    %2866 = vmatprep.mubr.bf16.mxu0 %v2585
    %2867 = vmatmul.mubr.bf16.gmra.mrb[0].mxu0 %v2584
    %v2868 = vpop.f32.mrb[0].mxu0
    %v2869 = vadd.f32 0.0, %v2868
    %v2870 = vpop.f32.mrb[0].mxu0
    %v2871 = vpop.f32.mrb[0].mxu0
    %v2872 = vpop.f32.mrb[0].mxu0
    %2873 = vdwg.mxu0
    %2874 = vmatprep.subr.bf16.mxu0 0
    %2875 = vmatpush1.bf16.msra.mxu0 %v2478
    %2876 = vmatprep.subr.bf16.mxu0 0
    %2877 = vmatpush1.bf16.msra.mxu0 %v2485
    %2878 = vmatprep.subr.bf16.mxu0 0
    %2879 = vmatpush1.bf16.msra.mxu0 %v2492
    %2880 = vmatprep.subr.bf16.mxu0 0
    %2881 = vmatpush1.bf16.msra.mxu0 %v2499
    %2882 = vmatprep.subr.bf16.mxu0 0
    %2883 = vmatpush1.bf16.msra.mxu0 %v2506
    %2884 = vmatprep.subr.bf16.mxu0 0
    %2885 = vmatpush1.bf16.msra.mxu0 %v2513
    %2886 = vmatprep.subr.bf16.mxu0 0
    %2887 = vmatpush1.bf16.msra.mxu0 %v2520
    %2888 = vmatprep.subr.bf16.mxu0 0
    %2889 = vmatpush1.bf16.msra.mxu0 %v2527
    %2890 = vmatprep.subr.bf16.mxu0 0
    %2891 = vmatpush1.bf16.msra.mxu0 %v2534
    %2892 = vmatprep.subr.bf16.mxu0 0
    %2893 = vmatpush1.bf16.msra.mxu0 %v2541
    %2894 = vmatprep.subr.bf16.mxu0 0
    %2895 = vmatpush1.bf16.msra.mxu0 %v2548
    %2896 = vmatprep.subr.bf16.mxu0 0
    %2897 = vmatpush1.bf16.msra.mxu0 %v2555
    %2898 = vmatprep.subr.bf16.mxu0 0
    %2899 = vmatpush1.bf16.msra.mxu0 %v2562
    %2900 = vmatprep.subr.bf16.mxu0 0
    %2901 = vmatpush1.bf16.msra.mxu0 %v2569
    %2902 = vmatprep.subr.bf16.mxu0 0
    %2903 = vmatpush1.bf16.msra.mxu0 %v2576
    %2904 = vmatprep.subr.bf16.mxu0 0
    %2905 = vmatpush1.bf16.msra.mxu0 %v2583
    %2906 = vmatprep.mubr.bf16.mxu0 %v2587
    %2907 = vmatmul.mubr.bf16.gmra.mrb[0].mxu0 %v2586
    %v2908 = vpop.f32.mrb[0].mxu0
    %v2909 = vadd.f32 %v2869, %v2908
    %v2910 = vpop.f32.mrb[0].mxu0
    %v2911 = vpop.f32.mrb[0].mxu0
    %v2912 = vpop.f32.mrb[0].mxu0
    %2913 = vdwg.mxu0
    %v2914 = vld [vmem:[%s18] sm:$0xff]
    %v2916 = vlaneseq
    %v2917 = vshrl.u32 %v2916, 7
    %v2918 = vsub.s32 0, %v2917
    %v2919 = vrot.slane %v2914, %v2918
    %v2920 = vlaneseq
    %v2921 = vshrl.u32 %v2920, 7
    %v2922 = vsub.s32 1, %v2921
    %v2923 = vrot.slane %v2914, %v2922
    %v2924 = vlaneseq
    %v2925 = vshrl.u32 %v2924, 7
    %v2926 = vsub.s32 2, %v2925
    %v2927 = vrot.slane %v2914, %v2926
    %v2928 = vlaneseq
    %v2929 = vshrl.u32 %v2928, 7
    %v2930 = vsub.s32 3, %v2929
    %v2931 = vrot.slane %v2914, %v2930
    %v2932 = vlaneseq
    %v2933 = vshrl.u32 %v2932, 7
    %v2934 = vsub.s32 4, %v2933
    %v2935 = vrot.slane %v2914, %v2934
    %v2936 = vlaneseq
    %v2937 = vshrl.u32 %v2936, 7
    %v2938 = vsub.s32 5, %v2937
    %v2939 = vrot.slane %v2914, %v2938
    %v2940 = vlaneseq
    %v2941 = vshrl.u32 %v2940, 7
    %v2942 = vsub.s32 6, %v2941
    %v2943 = vrot.slane %v2914, %v2942
    %v2951 = vmul.f32 %v2664, %v2919
    %v2952 = vmul.f32 %v2666, %v2923
    %v2953 = vmul.f32 %v2746, %v2927
    %v2954 = vmul.f32 %v2748, %v2931
    %v2955 = vmul.f32 %v2828, %v2935
    %v2956 = vmul.f32 %v2830, %v2939
    %v2957 = vmul.f32 %v2909, %v2943
    %v2958 = vld [vmem:[%s19] sm:$0xff]
    %v2960 = vlaneseq
    %v2961 = vshrl.u32 %v2960, 7
    %v2962 = vsub.s32 0, %v2961
    %v2963 = vrot.slane %v2958, %v2962
    %v2964 = vlaneseq
    %v2965 = vshrl.u32 %v2964, 7
    %v2966 = vsub.s32 1, %v2965
    %v2967 = vrot.slane %v2958, %v2966
    %v2968 = vlaneseq
    %v2969 = vshrl.u32 %v2968, 7
    %v2970 = vsub.s32 2, %v2969
    %v2971 = vrot.slane %v2958, %v2970
    %v2972 = vlaneseq
    %v2973 = vshrl.u32 %v2972, 7
    %v2974 = vsub.s32 3, %v2973
    %v2975 = vrot.slane %v2958, %v2974
    %v2976 = vlaneseq
    %v2977 = vshrl.u32 %v2976, 7
    %v2978 = vsub.s32 4, %v2977
    %v2979 = vrot.slane %v2958, %v2978
    %v2980 = vlaneseq
    %v2981 = vshrl.u32 %v2980, 7
    %v2982 = vsub.s32 5, %v2981
    %v2983 = vrot.slane %v2958, %v2982
    %v2984 = vlaneseq
    %v2985 = vshrl.u32 %v2984, 7
    %v2986 = vsub.s32 6, %v2985
    %v2987 = vrot.slane %v2958, %v2986
    %v2995 = vadd.f32 %v2951, %v2963
    %v2996 = vadd.f32 %v2952, %v2967
    %v2997 = vadd.f32 %v2953, %v2971
    %v2998 = vadd.f32 %v2954, %v2975
    %v2999 = vadd.f32 %v2955, %v2979
    %v3000 = vadd.f32 %v2956, %v2983
    %v3001 = vadd.f32 %v2957, %v2987
    %v3002 = vmul.f32 %v2995, 0.5
    %v3003 = vmul.f32 %v2996, 0.5
    %v3004 = vmul.f32 %v2997, 0.5
    %v3005 = vmul.f32 %v2998, 0.5
    %v3006 = vmul.f32 %v2999, 0.5
    %v3007 = vmul.f32 %v3000, 0.5
    %v3008 = vmul.f32 %v3001, 0.5
    %v3009 = vtanh.pop %v3002
    %v3010 = vtanh.pop %v3003
    %v3011 = vtanh.pop %v3004
    %v3012 = vtanh.pop %v3005
    %v3013 = vtanh.pop %v3006
    %v3014 = vtanh.pop %v3007
    %v3015 = vtanh.pop %v3008
    %v3016 = vmul.f32 %v3009, 0.5
    %v3017 = vmul.f32 %v3010, 0.5
    %v3018 = vmul.f32 %v3011, 0.5
    %v3019 = vmul.f32 %v3012, 0.5
    %v3020 = vmul.f32 %v3013, 0.5
    %v3021 = vmul.f32 %v3014, 0.5
    %v3022 = vmul.f32 %v3015, 0.5
    %v3023 = vadd.f32 %v3016, 0.5
    %v3024 = vadd.f32 %v3017, 0.5
    %v3025 = vadd.f32 %v3018, 0.5
    %v3026 = vadd.f32 %v3019, 0.5
    %v3027 = vadd.f32 %v3020, 0.5
    %v3028 = vadd.f32 %v3021, 0.5
    %v3029 = vadd.f32 %v3022, 0.5
    %3030 = vst [vmem:[#allocation13] sm:$0xff] %v3023
    %3031 = vst [vmem:[#allocation13 + $0x8] sm:$0xff] %v3024
    %3032 = vst [vmem:[#allocation13 + $0x10] sm:$0xff] %v3025
    %3033 = vst [vmem:[#allocation13 + $0x18] sm:$0xff] %v3026
    %3034 = vst [vmem:[#allocation13 + $0x20] sm:$0xff] %v3027
    %3035 = vst [vmem:[#allocation13 + $0x28] sm:$0xff] %v3028
    %3036 = vst [vmem:[#allocation13 + $0x30] sm:$0xff] %v3029
    %3037 = vst [vmem:[#allocation14] sm:$0xff] %v1573
    %3038 = vst [vmem:[#allocation16] sm:$0xff] %v1574
    // Predicated region
    $region106: #{vae_forward.1} parent=1 // pred_check
      _
    $region107: #{vae_forward.1} parent=1 // pred_check_branch
      %3040 = sbr.rel (0) target = $region109
    $region108: #{vae_forward.1} parent=1 // pred_region
      %s3042 = ssub.s32 896, 896
      %3043 = vsyncadd [#allocation4], %s3042
      %s3045 = sshll.u32 [#allocation13], 4
      %s3046 = int_to_ptr.vmem [resolvable:$true] %s3045
      %3048 = dma.vmem_to_hbm [thread:$0]  %s3046, 896, %s20, [#allocation4]
    $region109: #{vae_forward.1} parent=1 // pred_fallthru
      _
    // Predicated region
    $region110: #{vae_forward.1} parent=1 // pred_check
      _
    $region111: #{vae_forward.1} parent=1 // pred_check_branch
      %3050 = sbr.rel (0) target = $region113
    $region112: #{vae_forward.1} parent=1 // pred_region
      %s3052 = ssub.s32 128, 128
      %3053 = vsyncadd [#allocation15], %s3052
      %s3055 = sshll.u32 [#allocation14], 4
      %s3056 = int_to_ptr.vmem [resolvable:$true] %s3055
      %3058 = dma.vmem_to_hbm [thread:$0]  %s3056, 128, %s21, [#allocation15]
    $region113: #{vae_forward.1} parent=1 // pred_fallthru
      _
    // Predicated region
    $region114: #{vae_forward.1} parent=1 // pred_check
      _
    $region115: #{vae_forward.1} parent=1 // pred_check_branch
      %3060 = sbr.rel (0) target = $region117
    $region116: #{vae_forward.1} parent=1 // pred_region
      %s3062 = ssub.s32 128, 128
      %3063 = vsyncadd [#allocation15], %s3062
      %s3065 = sshll.u32 [#allocation16], 4
      %s3066 = int_to_ptr.vmem [resolvable:$true] %s3065
      %3068 = dma.vmem_to_hbm [thread:$0]  %s3066, 128, %s22, [#allocation15]
    $region117: #{vae_forward.1} parent=1 // pred_fallthru
      _
    // Predicated region
    $region118: #{vae_forward.1} parent=1 // pred_check
      _
    $region119: #{vae_forward.1} parent=1 // pred_check_branch
      %3070 = sbr.rel (0) target = $region121
    $region120: #{vae_forward.1} parent=1 // pred_region
      %3071 = dma.done [#allocation4], 896
    $region121: #{vae_forward.1} parent=1 // pred_fallthru
      _
    // Predicated region
    $region122: #{vae_forward.1} parent=1 // pred_check
      _
    $region123: #{vae_forward.1} parent=1 // pred_check_branch
      %3073 = sbr.rel (0) target = $region125
    $region124: #{vae_forward.1} parent=1 // pred_region
      %3074 = dma.done [#allocation15], 128
    $region125: #{vae_forward.1} parent=1 // pred_fallthru
      _
    // Predicated region
    $region126: #{vae_forward.1} parent=1 // pred_check
      _
    $region127: #{vae_forward.1} parent=1 // pred_check_branch
      %3076 = sbr.rel (0) target = $region129
    $region128: #{vae_forward.1} parent=1 // pred_region
      %3077 = dma.done [#allocation15], 128
    $region129: #{vae_forward.1} parent=1 // pred_fallthru
      _
    %3078 = vsyncpa [#allocation3], 1
    %3079 = vsyncpa [#allocation6], 1
    %3080 = vsyncpa [#allocation9], 1
    %3081 = vsyncpa [#allocation12], 1
    %3082 = vsyncpa [#allocation4], 1
    %3083 = vsyncpa [#allocation15], 1

</llo_original>
